<compile_context>
chip_gen: v6e
topology: v6e:2x2x1
jax: 0.10.0
libtpu: 0.0.40
codegen_flags: <defaults>
</compile_context>

<pallas_src>
import functools

import jax
import jax.numpy as jnp
from jax.experimental import pallas as pl
from jax.experimental.pallas import tpu as pltpu

EPS = 1e-6


def _gelu_exact(u):
    # torch.nn.GELU() default = exact erf GELU (kept for semantic parity with the module;
    # the kernel is MXU/DMA-bound at these sizes so the extra VPU work is hidden).
    return 0.5 * u * (1.0 + jax.lax.erf(u * 0.7071067811865475))


# ---------------------------------------------------------------------------
# Pass 0: partial BN statistics of x: per patch channel, summed over (batch tile, D)
# ---------------------------------------------------------------------------
def _x_stats_kernel(x_ref, stats_ref):
    x = x_ref[...].astype(jnp.float32)                       # (bb, P, D)
    s = jnp.sum(x, axis=(0, 2), keepdims=True)               # (1, P, 1)
    ss = jnp.sum(x * x, axis=(0, 2), keepdims=True)          # (1, P, 1)
    stats_ref[:, :, 0:1] = s
    stats_ref[:, :, 1:2] = ss


# ---------------------------------------------------------------------------
# Pass 1: x1 = x + mlp1(BN1(x))   (token mixing) + fused partial stats of x1
# ---------------------------------------------------------------------------
def _stage1_kernel(x_ref, a1_ref, c1_ref, w1a_ref, b1a_ref, w1b_ref, b1b_ref,
                   x1_ref, stats_ref):
    bb, P, D = x_ref.shape
    a1 = a1_ref[...]                                          # (P, 1) f32  gamma*rsqrt(var+eps)
    c1 = c1_ref[...]                                          # (P, 1) f32  beta - mean*a1
    w1a = w1a_ref[...]                                        # (P, P) PyTorch (out, in) layout
    w1b = w1b_ref[...]
    b1a = b1a_ref[...]                                        # (P, 1) f32
    b1b = b1b_ref[...]

    s_acc = jnp.zeros((P, 1), jnp.float32)
    ss_acc = jnp.zeros((P, 1), jnp.float32)
    # Static unroll over the small batch tile: each step is two lane-dense (P,P)@(P,D)
    # MXU matmuls; using (out,in) weights as left multipliers removes all transposes.
    for i in range(bb):
        x_i = x_ref[i].astype(jnp.float32)                    # (P, D)
        xn = x_i * a1 + c1                                    # BN1 in f32
        h = jnp.dot(w1a, xn.astype(w1a.dtype),
                    preferred_element_type=jnp.float32) + b1a
        h = _gelu_exact(h)
        m1 = jnp.dot(w1b, h.astype(w1b.dtype),
                     preferred_element_type=jnp.float32) + b1b
        x1_i = x_i + m1                                       # residual 1 (f32)
        x1_ref[i] = x1_i.astype(x1_ref.dtype)
        # fused BN2 partial statistics (so x1 is never re-read from HBM)
        s_acc = s_acc + jnp.sum(x1_i, axis=1, keepdims=True)
        ss_acc = ss_acc + jnp.sum(x1_i * x1_i, axis=1, keepdims=True)
    stats_ref[0:1, :, 0:1] = s_acc.reshape(1, P, 1)
    stats_ref[0:1, :, 1:2] = ss_acc.reshape(1, P, 1)


# ---------------------------------------------------------------------------
# Pass 2: out = x1 + mlp2(BN2(x1))   (channel mixing)
# ---------------------------------------------------------------------------
def _stage2_kernel(x1_ref, a2_ref, c2_ref, w2a_ref, b2a_ref, w2b_ref, b2b_ref,
                   out_ref):
    bb, P, D = x1_ref.shape
    H = out_ref.shape[2]
    x1 = x1_ref[...].astype(jnp.float32)                      # (bb, P, D)
    a2 = a2_ref[...].reshape(1, P, 1)
    c2 = c2_ref[...].reshape(1, P, 1)
    x2n = x1 * a2 + c2                                        # BN2 in f32
    # Collapse the batch tile into a single lane-dense 2-D MXU matmul: (bb*P, D) @ (D, P)
    x2n_2d = x2n.reshape(bb * P, D).astype(w2a_ref.dtype)
    g = jnp.dot(x2n_2d, w2a_ref[...],
                preferred_element_type=jnp.float32) + b2a_ref[...]     # (bb*P, P)
    g = _gelu_exact(g)
    y = jnp.dot(g.astype(w2b_ref.dtype), w2b_ref[...],
                preferred_element_type=jnp.float32) + b2b_ref[...]     # (bb*P, H)
    out_ref[...] = (x1 + y.reshape(bb, P, H)).astype(out_ref.dtype)


def _bn_scale_shift(sums, count, gamma, beta):
    # sums: (P, 2) = [sum, sum of squares]; biased variance (BN training-mode normalization).
    mean = sums[:, 0] / count
    var = jnp.maximum(sums[:, 1] / count - mean * mean, 0.0)
    a = gamma * jax.lax.rsqrt(var + EPS)
    c = beta - mean * a
    return (a.reshape(-1, 1).astype(jnp.float32),
            c.reshape(-1, 1).astype(jnp.float32))


@functools.partial(jax.jit, static_argnames=("block_b", "compute_dtype"))
def mlp_mixer_layer(x, params, *, block_b=4, compute_dtype=jnp.bfloat16):
    """Forward pass of MLPMixerlayer.

    x: (B, P, D) float32.  params use PyTorch layouts: Linear weights (out, in),
    biases (out,), BatchNorm gamma/beta (P,).
    """
    B, P, D = x.shape
    H = params["w2b"].shape[0]
    assert H == D, "residual x1 + mlp2(x1) requires hidden_units == embedding_dim"

    bb = min(block_b, B)
    while B % bb:
        bb -= 1
    nb = B // bb

    f32 = jnp.float32
    gamma = params["bn_gamma"].astype(f32)
    beta = params["bn_beta"].astype(f32)
    # mlp1 weights stay in (out, in) layout (left-multipliers); mlp2 weights are pre-transposed
    # host-side so the kernel does a plain (rows, D) @ (D, P) matmul with no in-kernel transpose.
    w1a = params["w1a"].astype(compute_dtype)                 # (P, P)
    w1b = params["w1b"].astype(compute_dtype)                 # (P, P)
    b1a = params["b1a"].astype(f32).reshape(P, 1)
    b1b = params["b1b"].astype(f32).reshape(P, 1)
    w2a_t = params["w2a"].T.astype(compute_dtype)             # (D, P)
    w2b_t = params["w2b"].T.astype(compute_dtype)             # (P, H)
    b2a = params["b2a"].astype(f32).reshape(1, P)
    b2b = params["b2b"].astype(f32).reshape(1, H)

    parallel = pltpu.CompilerParams(dimension_semantics=("parallel",))

    def resident(shape):
        # Full-array block + constant index_map: stays resident in VMEM across grid steps.
        return pl.BlockSpec(shape, lambda b: (0,) * len(shape))

    x_spec = pl.BlockSpec((bb, P, D), lambda b: (b, 0, 0))
    stats_spec = pl.BlockSpec((1, P, 2), lambda b: (b, 0, 0))

    # ---- pass 0: BN1 statistics of x --------------------------------------
    part0 = pl.pallas_call(
        _x_stats_kernel,
        grid=(nb,),
        in_specs=[x_spec],
        out_specs=stats_spec,
        out_shape=jax.ShapeDtypeStruct((nb, P, 2), f32),
        compiler_params=parallel,
    )(x)
    a1, c1 = _bn_scale_shift(jnp.sum(part0, axis=0), B * D, gamma, beta)

    # ---- pass 1: token mixing + residual, fused BN2 partial stats ----------
    x1, part1 = pl.pallas_call(
        _stage1_kernel,
        grid=(nb,),
        in_specs=[x_spec,
                  resident((P, 1)), resident((P, 1)),
                  resident((P, P)), resident((P, 1)),
                  resident((P, P)), resident((P, 1))],
        out_specs=[x_spec, stats_spec],
        out_shape=[jax.ShapeDtypeStruct((B, P, D), x.dtype),
                   jax.ShapeDtypeStruct((nb, P, 2), f32)],
        compiler_params=parallel,
    )(x, a1, c1, w1a, b1a, w1b, b1b)
    a2, c2 = _bn_scale_shift(jnp.sum(part1, axis=0), B * D, gamma, beta)

    # ---- pass 2: channel mixing + residual ---------------------------------
    out = pl.pallas_call(
        _stage2_kernel,
        grid=(nb,),
        in_specs=[x_spec,
                  resident((P, 1)), resident((P, 1)),
                  resident((D, P)), resident((1, P)),
                  resident((P, H)), resident((1, H))],
        out_specs=pl.BlockSpec((bb, P, H), lambda b: (b, 0, 0)),
        out_shape=jax.ShapeDtypeStruct((B, P, H), x.dtype),
        compiler_params=parallel,
    )(x1, a2, c2, w2a_t, b2a, w2b_t, b2b)
    return out


def init_params(key, num_patches, embedding_dim, hidden_units):
    P, D, H = num_patches, embedding_dim, hidden_units
    ks = jax.random.split(key, 10)
    s = 0.02

    def n(k, shape, scale=s):
        return (scale * jax.random.normal(k, shape)).astype(jnp.float32)

    return {
        # BatchNorm1d affine (default is gamma=1, beta=0; perturbed to exercise the path)
        "bn_gamma": 1.0 + n(ks[0], (P,), 0.1),
        "bn_beta": n(ks[1], (P,), 0.1),
        # mlp1: Linear(P,P) -> GELU -> Linear(P,P)    (PyTorch weight layout (out, in))
        "w1a": n(ks[2], (P, P)), "b1a": n(ks[3], (P,), 0.01),
        "w1b": n(ks[4], (P, P)), "b1b": n(ks[5], (P,), 0.01),
        # mlp2: Linear(D,P) -> GELU -> Linear(P,H)
        "w2a": n(ks[6], (P, D)), "b2a": n(ks[7], (P,), 0.01),
        "w2b": n(ks[8], (H, P)), "b2b": n(ks[9], (H,), 0.01),
    }


def reference_forward(x, p):
    """Pure-JAX f32 reference with the same math as the PyTorch module forward."""
    gamma = p["bn_gamma"].reshape(1, -1, 1)
    beta = p["bn_beta"].reshape(1, -1, 1)

    def bn(v):
        m = jnp.mean(v, axis=(0, 2), keepdims=True)
        va = jnp.mean((v - m) ** 2, axis=(0, 2), keepdims=True)
        return (v - m) / jnp.sqrt(va + EPS) * gamma + beta

    xn = bn(x)
    xc = jnp.transpose(xn, (0, 2, 1))                          # (B, D, P)
    h = _gelu_exact(xc @ p["w1a"].T + p["b1a"]) @ p["w1b"].T + p["b1b"]
    x1 = x + jnp.transpose(h, (0, 2, 1))
    g = _gelu_exact(bn(x1) @ p["w2a"].T + p["b2a"]) @ p["w2b"].T + p["b2b"]
    return x1 + g


if __name__ == "__main__":
    # Small shapes consistent with the module: image_size=64, patch_size=8 -> num_patches=64,
    # embedding_dim=256; hidden_units must equal embedding_dim for the residual (as in the model).
    B, P, D = 8, 64, 256
    H = D

    key = jax.random.PRNGKey(0)
    kx, kp = jax.random.split(key)
    x = jax.random.normal(kx, (B, P, D), dtype=jnp.float32)
    params = init_params(kp, num_patches=P, embedding_dim=D, hidden_units=H)

    ref = reference_forward(x, params)

    # f32 compute path: tight structural/math check against the reference.
    out_f32 = jax.block_until_ready(
        mlp_mixer_layer(x, params, block_b=4, compute_dtype=jnp.float32))
    assert out_f32.shape == (B, P, H)
    assert jnp.allclose(out_f32, ref, atol=1e-4, rtol=1e-4), "f32 kernel mismatch vs reference"

    # bf16 matmul operands with f32 accumulation: the performance path.
    out_bf16 = jax.block_until_ready(
        mlp_mixer_layer(x, params, block_b=4, compute_dtype=jnp.bfloat16))
    assert out_bf16.shape == (B, P, H)
    assert jnp.allclose(out_bf16, ref, atol=2e-2, rtol=2e-2), "bf16 kernel mismatch vs reference"

    print("KERNEL_OK")
</pallas_src>

<mosaic_0001>
module attributes {stable_mosaic.version = 11 : i64} {
  func.func @_x_stats_kernel(%arg0: i32, %arg1: memref<4x64x256xf32, #tpu.memory_space<vmem>>, %arg2: memref<1x64x2xf32, #tpu.memory_space<vmem>>) attributes {dimension_semantics = [#tpu.dimension_semantics<parallel>], iteration_bounds = array<i64: 2>, scalar_prefetch = 0 : i64, scratch_operands = 0 : i64, tpu.core_type = #tpu.core_type<tc>, window_params = [{transform_indices = @transform_0, window_bounds = array<i64: 4, 64, 256>}, {transform_indices = @transform_1, window_bounds = array<i64: 1, 64, 2>}]} {
    %c0 = arith.constant 0 : index
    %c0_0 = arith.constant 0 : index
    %c0_1 = arith.constant 0 : index
    %0 = vector.load %arg1[%c0, %c0_0, %c0_1] : memref<4x64x256xf32, #tpu.memory_space<vmem>>, vector<4x64x256xf32>
    %cst = arith.constant dense<0.000000e+00> : vector<64xf32>
    %1 = vector.multi_reduction <add>, %0, %cst [0, 2] : vector<4x64x256xf32> to vector<64xf32>
    %2 = vector.shape_cast %1 : vector<64xf32> to vector<1x64x1xf32>
    %3 = arith.mulf %0, %0 : vector<4x64x256xf32>
    %cst_2 = arith.constant dense<0.000000e+00> : vector<64xf32>
    %4 = vector.multi_reduction <add>, %3, %cst_2 [0, 2] : vector<4x64x256xf32> to vector<64xf32>
    %5 = vector.shape_cast %4 : vector<64xf32> to vector<1x64x1xf32>
    %c0_3 = arith.constant 0 : index
    %c0_4 = arith.constant 0 : index
    %c0_5 = arith.constant 0 : index
    %6 = vector.load %arg2[%c0_3, %c0_4, %c0_5] : memref<1x64x2xf32, #tpu.memory_space<vmem>>, vector<1x64x1xf32>
    tpu.vector_store %arg2[%c0_3, %c0_4, %c0_5], %2 {strides = array<i32>} : memref<1x64x2xf32, #tpu.memory_space<vmem>>, vector<1x64x1xf32>,
    %c0_6 = arith.constant 0 : index
    %c0_7 = arith.constant 0 : index
    %c1 = arith.constant 1 : index
    %7 = vector.load %arg2[%c0_6, %c0_7, %c1] : memref<1x64x2xf32, #tpu.memory_space<vmem>>, vector<1x64x1xf32>
    tpu.vector_store %arg2[%c0_6, %c0_7, %c1], %5 {strides = array<i32>} : memref<1x64x2xf32, #tpu.memory_space<vmem>>, vector<1x64x1xf32>,
    return
  }
  func.func @transform_0(%arg0: i32) -> (i32, i32, i32) {
    %c0_i32 = arith.constant 0 : i32
    %c0_i32_0 = arith.constant 0 : i32
    %c0_i32_1 = arith.constant 0 : i32
    return %arg0, %c0_i32, %c0_i32_0 : i32, i32, i32
  }
  func.func @transform_1(%arg0: i32) -> (i32, i32, i32) {
    %c0_i32 = arith.constant 0 : i32
    %c0_i32_0 = arith.constant 0 : i32
    %c0_i32_1 = arith.constant 0 : i32
    return %arg0, %c0_i32, %c0_i32_0 : i32, i32, i32
  }
}

module attributes {stable_mosaic.version = 11 : i64} {
  func.func @_stage2_kernel(%arg0: i32, %arg1: memref<4x64x256xf32, #tpu.memory_space<vmem>>, %arg2: memref<64x1xf32, #tpu.memory_space<vmem>>, %arg3: memref<64x1xf32, #tpu.memory_space<vmem>>, %arg4: memref<256x64xf32, #tpu.memory_space<vmem>>, %arg5: memref<1x64xf32, #tpu.memory_space<vmem>>, %arg6: memref<64x256xf32, #tpu.memory_space<vmem>>, %arg7: memref<1x256xf32, #tpu.memory_space<vmem>>, %arg8: memref<4x64x256xf32, #tpu.memory_space<vmem>>) attributes {dimension_semantics = [#tpu.dimension_semantics<parallel>], iteration_bounds = array<i64: 2>, scalar_prefetch = 0 : i64, scratch_operands = 0 : i64, tpu.core_type = #tpu.core_type<tc>, window_params = [{transform_indices = @transform_0, window_bounds = array<i64: 4, 64, 256>}, {pipeline_mode = #tpu.pipeline_mode<synchronous>, transform_indices = @transform_1, window_bounds = array<i64: 64, 1>}, {pipeline_mode = #tpu.pipeline_mode<synchronous>, transform_indices = @transform_2, window_bounds = array<i64: 64, 1>}, {pipeline_mode = #tpu.pipeline_mode<synchronous>, transform_indices = @transform_3, window_bounds = array<i64: 256, 64>}, {pipeline_mode = #tpu.pipeline_mode<synchronous>, transform_indices = @transform_4, window_bounds = array<i64: 1, 64>}, {pipeline_mode = #tpu.pipeline_mode<synchronous>, transform_indices = @transform_5, window_bounds = array<i64: 64, 256>}, {pipeline_mode = #tpu.pipeline_mode<synchronous>, transform_indices = @transform_6, window_bounds = array<i64: 1, 256>}, {transform_indices = @transform_7, window_bounds = array<i64: 4, 64, 256>}]} {
    %c0 = arith.constant 0 : index
    %c0_0 = arith.constant 0 : index
    %c0_1 = arith.constant 0 : index
    %0 = vector.load %arg1[%c0, %c0_0, %c0_1] : memref<4x64x256xf32, #tpu.memory_space<vmem>>, vector<4x64x256xf32>
    %c0_2 = arith.constant 0 : index
    %c0_3 = arith.constant 0 : index
    %1 = vector.load %arg2[%c0_2, %c0_3] : memref<64x1xf32, #tpu.memory_space<vmem>>, vector<64x1xf32>
    %2 = vector.shape_cast %1 : vector<64x1xf32> to vector<1x64x1xf32>
    %c0_4 = arith.constant 0 : index
    %c0_5 = arith.constant 0 : index
    %3 = vector.load %arg3[%c0_4, %c0_5] : memref<64x1xf32, #tpu.memory_space<vmem>>, vector<64x1xf32>
    %4 = vector.shape_cast %3 : vector<64x1xf32> to vector<1x64x1xf32>
    %5 = vector.broadcast %2 : vector<1x64x1xf32> to vector<4x64x256xf32>
    %6 = arith.mulf %0, %5 : vector<4x64x256xf32>
    %7 = vector.broadcast %4 : vector<1x64x1xf32> to vector<4x64x256xf32>
    %8 = arith.addf %6, %7 : vector<4x64x256xf32>
    %9 = vector.shape_cast %8 : vector<4x64x256xf32> to vector<256x256xf32>
    %c0_6 = arith.constant 0 : index
    %c0_7 = arith.constant 0 : index
    %10 = vector.load %arg4[%c0_6, %c0_7] : memref<256x64xf32, #tpu.memory_space<vmem>>, vector<256x64xf32>
    %cst = arith.constant dense<0.000000e+00> : vector<256x64xf32>
    %11 = tpu.matmul %9, %10, %cst {dimension_numbers = #tpu.dot_dimension_numbers<[1], [0], [0], [1], [0, 0, 1, 1], [], []>} : vector<256x256xf32>, vector<256x64xf32>, vector<256x64xf32> -> vector<256x64xf32>
    %c0_8 = arith.constant 0 : index
    %c0_9 = arith.constant 0 : index
    %12 = vector.load %arg5[%c0_8, %c0_9] : memref<1x64xf32, #tpu.memory_space<vmem>>, vector<1x64xf32>
    %13 = vector.broadcast %12 : vector<1x64xf32> to vector<256x64xf32>
    %14 = arith.addf %11, %13 : vector<256x64xf32>
    %cst_10 = arith.constant 5.000000e-01 : f32
    %15 = vector.broadcast %cst_10 : f32 to vector<256x64xf32>
    %16 = arith.mulf %15, %14 : vector<256x64xf32>
    %cst_11 = arith.constant 0.707106769 : f32
    %17 = vector.broadcast %cst_11 : f32 to vector<256x64xf32>
    %18 = arith.mulf %14, %17 : vector<256x64xf32>
    %19 = math.erf %18 : vector<256x64xf32>
    %cst_12 = arith.constant 1.000000e+00 : f32
    %20 = vector.broadcast %cst_12 : f32 to vector<256x64xf32>
    %21 = arith.addf %20, %19 : vector<256x64xf32>
    %22 = arith.mulf %16, %21 : vector<256x64xf32>
    %c0_13 = arith.constant 0 : index
    %c0_14 = arith.constant 0 : index
    %23 = vector.load %arg6[%c0_13, %c0_14] : memref<64x256xf32, #tpu.memory_space<vmem>>, vector<64x256xf32>
    %cst_15 = arith.constant dense<0.000000e+00> : vector<256x256xf32>
    %24 = tpu.matmul %22, %23, %cst_15 {dimension_numbers = #tpu.dot_dimension_numbers<[1], [0], [0], [1], [0, 0, 1, 1], [], []>} : vector<256x64xf32>, vector<64x256xf32>, vector<256x256xf32> -> vector<256x256xf32>
    %c0_16 = arith.constant 0 : index
    %c0_17 = arith.constant 0 : index
    %25 = vector.load %arg7[%c0_16, %c0_17] : memref<1x256xf32, #tpu.memory_space<vmem>>, vector<1x256xf32>
    %26 = vector.broadcast %25 : vector<1x256xf32> to vector<256x256xf32>
    %27 = arith.addf %24, %26 : vector<256x256xf32>
    %28 = vector.shape_cast %27 : vector<256x256xf32> to vector<4x64x256xf32>
    %29 = arith.addf %0, %28 : vector<4x64x256xf32>
    %c0_18 = arith.constant 0 : index
    %c0_19 = arith.constant 0 : index
    %c0_20 = arith.constant 0 : index
    %30 = vector.load %arg8[%c0_18, %c0_19, %c0_20] : memref<4x64x256xf32, #tpu.memory_space<vmem>>, vector<4x64x256xf32>
    tpu.vector_store %arg8[%c0_18, %c0_19, %c0_20], %29 {strides = array<i32>} : memref<4x64x256xf32, #tpu.memory_space<vmem>>, vector<4x64x256xf32>,
    return
  }
  func.func @transform_0(%arg0: i32) -> (i32, i32, i32) {
    %c0_i32 = arith.constant 0 : i32
    %c0_i32_0 = arith.constant 0 : i32
    %c0_i32_1 = arith.constant 0 : i32
    return %arg0, %c0_i32, %c0_i32_0 : i32, i32, i32
  }
  func.func @transform_1(%arg0: i32) -> (i32, i32) {
    %c0_i32 = arith.constant 0 : i32
    %c0_i32_0 = arith.constant 0 : i32
    %c0_i32_1 = arith.constant 0 : i32
    return %c0_i32, %c0_i32_0 : i32, i32
  }
  func.func @transform_2(%arg0: i32) -> (i32, i32) {
    %c0_i32 = arith.constant 0 : i32
    %c0_i32_0 = arith.constant 0 : i32
    %c0_i32_1 = arith.constant 0 : i32
    return %c0_i32, %c0_i32_0 : i32, i32
  }
  func.func @transform_3(%arg0: i32) -> (i32, i32) {
    %c0_i32 = arith.constant 0 : i32
    %c0_i32_0 = arith.constant 0 : i32
    %c0_i32_1 = arith.constant 0 : i32
    return %c0_i32, %c0_i32_0 : i32, i32
  }
  func.func @transform_4(%arg0: i32) -> (i32, i32) {
    %c0_i32 = arith.constant 0 : i32
    %c0_i32_0 = arith.constant 0 : i32
    %c0_i32_1 = arith.constant 0 : i32
    return %c0_i32, %c0_i32_0 : i32, i32
  }
  func.func @transform_5(%arg0: i32) -> (i32, i32) {
    %c0_i32 = arith.constant 0 : i32
    %c0_i32_0 = arith.constant 0 : i32
    %c0_i32_1 = arith.constant 0 : i32
    return %c0_i32, %c0_i32_0 : i32, i32
  }
  func.func @transform_6(%arg0: i32) -> (i32, i32) {
    %c0_i32 = arith.constant 0 : i32
    %c0_i32_0 = arith.constant 0 : i32
    %c0_i32_1 = arith.constant 0 : i32
    return %c0_i32, %c0_i32_0 : i32, i32
  }
  func.func @transform_7(%arg0: i32) -> (i32, i32, i32) {
    %c0_i32 = arith.constant 0 : i32
    %c0_i32_0 = arith.constant 0 : i32
    %c0_i32_1 = arith.constant 0 : i32
    return %arg0, %c0_i32, %c0_i32_0 : i32, i32, i32
  }
}

module attributes {stable_mosaic.version = 11 : i64} {
  func.func @_stage1_kernel(%arg0: i32, %arg1: memref<4x64x256xf32, #tpu.memory_space<vmem>>, %arg2: memref<64x1xf32, #tpu.memory_space<vmem>>, %arg3: memref<64x1xf32, #tpu.memory_space<vmem>>, %arg4: memref<64x64xf32, #tpu.memory_space<vmem>>, %arg5: memref<64x1xf32, #tpu.memory_space<vmem>>, %arg6: memref<64x64xf32, #tpu.memory_space<vmem>>, %arg7: memref<64x1xf32, #tpu.memory_space<vmem>>, %arg8: memref<4x64x256xf32, #tpu.memory_space<vmem>>, %arg9: memref<1x64x2xf32, #tpu.memory_space<vmem>>) attributes {dimension_semantics = [#tpu.dimension_semantics<parallel>], iteration_bounds = array<i64: 2>, scalar_prefetch = 0 : i64, scratch_operands = 0 : i64, tpu.core_type = #tpu.core_type<tc>, window_params = [{transform_indices = @transform_0, window_bounds = array<i64: 4, 64, 256>}, {pipeline_mode = #tpu.pipeline_mode<synchronous>, transform_indices = @transform_1, window_bounds = array<i64: 64, 1>}, {pipeline_mode = #tpu.pipeline_mode<synchronous>, transform_indices = @transform_2, window_bounds = array<i64: 64, 1>}, {pipeline_mode = #tpu.pipeline_mode<synchronous>, transform_indices = @transform_3, window_bounds = array<i64: 64, 64>}, {pipeline_mode = #tpu.pipeline_mode<synchronous>, transform_indices = @transform_4, window_bounds = array<i64: 64, 1>}, {pipeline_mode = #tpu.pipeline_mode<synchronous>, transform_indices = @transform_5, window_bounds = array<i64: 64, 64>}, {pipeline_mode = #tpu.pipeline_mode<synchronous>, transform_indices = @transform_6, window_bounds = array<i64: 64, 1>}, {transform_indices = @transform_7, window_bounds = array<i64: 4, 64, 256>}, {transform_indices = @transform_8, window_bounds = array<i64: 1, 64, 2>}]} {
    %c0 = arith.constant 0 : index
    %c0_0 = arith.constant 0 : index
    %0 = vector.load %arg2[%c0, %c0_0] : memref<64x1xf32, #tpu.memory_space<vmem>>, vector<64x1xf32>
    %c0_1 = arith.constant 0 : index
    %c0_2 = arith.constant 0 : index
    %1 = vector.load %arg3[%c0_1, %c0_2] : memref<64x1xf32, #tpu.memory_space<vmem>>, vector<64x1xf32>
    %c0_3 = arith.constant 0 : index
    %c0_4 = arith.constant 0 : index
    %2 = vector.load %arg4[%c0_3, %c0_4] : memref<64x64xf32, #tpu.memory_space<vmem>>, vector<64x64xf32>
    %c0_5 = arith.constant 0 : index
    %c0_6 = arith.constant 0 : index
    %3 = vector.load %arg6[%c0_5, %c0_6] : memref<64x64xf32, #tpu.memory_space<vmem>>, vector<64x64xf32>
    %c0_7 = arith.constant 0 : index
    %c0_8 = arith.constant 0 : index
    %4 = vector.load %arg5[%c0_7, %c0_8] : memref<64x1xf32, #tpu.memory_space<vmem>>, vector<64x1xf32>
    %c0_9 = arith.constant 0 : index
    %c0_10 = arith.constant 0 : index
    %5 = vector.load %arg7[%c0_9, %c0_10] : memref<64x1xf32, #tpu.memory_space<vmem>>, vector<64x1xf32>
    %cst = arith.constant 0.000000e+00 : f32
    %6 = vector.broadcast %cst : f32 to vector<64x1xf32>
    %cst_11 = arith.constant 0.000000e+00 : f32
    %7 = vector.broadcast %cst_11 : f32 to vector<64x1xf32>
    %c0_12 = arith.constant 0 : index
    %c0_13 = arith.constant 0 : index
    %c0_14 = arith.constant 0 : index
    %8 = vector.load %arg1[%c0_12, %c0_13, %c0_14] : memref<4x64x256xf32, #tpu.memory_space<vmem>>, vector<1x64x256xf32>
    %9 = vector.shape_cast %8 : vector<1x64x256xf32> to vector<64x256xf32>
    %10 = vector.broadcast %0 : vector<64x1xf32> to vector<64x256xf32>
    %11 = arith.mulf %9, %10 : vector<64x256xf32>
    %12 = vector.broadcast %1 : vector<64x1xf32> to vector<64x256xf32>
    %13 = arith.addf %11, %12 : vector<64x256xf32>
    %cst_15 = arith.constant dense<0.000000e+00> : vector<64x256xf32>
    %14 = tpu.matmul %2, %13, %cst_15 {dimension_numbers = #tpu.dot_dimension_numbers<[1], [0], [0], [1], [0, 0, 1, 1], [], []>} : vector<64x64xf32>, vector<64x256xf32>, vector<64x256xf32> -> vector<64x256xf32>
    %15 = vector.broadcast %4 : vector<64x1xf32> to vector<64x256xf32>
    %16 = arith.addf %14, %15 : vector<64x256xf32>
    %cst_16 = arith.constant 5.000000e-01 : f32
    %17 = vector.broadcast %cst_16 : f32 to vector<64x256xf32>
    %18 = arith.mulf %17, %16 : vector<64x256xf32>
    %cst_17 = arith.constant 0.707106769 : f32
    %19 = vector.broadcast %cst_17 : f32 to vector<64x256xf32>
    %20 = arith.mulf %16, %19 : vector<64x256xf32>
    %21 = math.erf %20 : vector<64x256xf32>
    %cst_18 = arith.constant 1.000000e+00 : f32
    %22 = vector.broadcast %cst_18 : f32 to vector<64x256xf32>
    %23 = arith.addf %22, %21 : vector<64x256xf32>
    %24 = arith.mulf %18, %23 : vector<64x256xf32>
    %cst_19 = arith.constant dense<0.000000e+00> : vector<64x256xf32>
    %25 = tpu.matmul %3, %24, %cst_19 {dimension_numbers = #tpu.dot_dimension_numbers<[1], [0], [0], [1], [0, 0, 1, 1], [], []>} : vector<64x64xf32>, vector<64x256xf32>, vector<64x256xf32> -> vector<64x256xf32>
    %26 = vector.broadcast %5 : vector<64x1xf32> to vector<64x256xf32>
    %27 = arith.addf %25, %26 : vector<64x256xf32>
    %28 = arith.addf %9, %27 : vector<64x256xf32>
    %c0_20 = arith.constant 0 : index
    %c0_21 = arith.constant 0 : index
    %c0_22 = arith.constant 0 : index
    %29 = vector.load %arg8[%c0_20, %c0_21, %c0_22] : memref<4x64x256xf32, #tpu.memory_space<vmem>>, vector<1x64x256xf32>
    %30 = vector.shape_cast %29 : vector<1x64x256xf32> to vector<64x256xf32>
    %31 = vector.shape_cast %28 : vector<64x256xf32> to vector<1x64x256xf32>
    tpu.vector_store %arg8[%c0_20, %c0_21, %c0_22], %31 {strides = array<i32>} : memref<4x64x256xf32, #tpu.memory_space<vmem>>, vector<1x64x256xf32>,
    %cst_23 = arith.constant dense<0.000000e+00> : vector<64xf32>
    %32 = vector.multi_reduction <add>, %28, %cst_23 [1] : vector<64x256xf32> to vector<64xf32>
    %33 = vector.shape_cast %32 : vector<64xf32> to vector<64x1xf32>
    %34 = arith.addf %6, %33 : vector<64x1xf32>
    %35 = arith.mulf %28, %28 : vector<64x256xf32>
    %cst_24 = arith.constant dense<0.000000e+00> : vector<64xf32>
    %36 = vector.multi_reduction <add>, %35, %cst_24 [1] : vector<64x256xf32> to vector<64xf32>
    %37 = vector.shape_cast %36 : vector<64xf32> to vector<64x1xf32>
    %38 = arith.addf %7, %37 : vector<64x1xf32>
    %c1 = arith.constant 1 : index
    %c0_25 = arith.constant 0 : index
    %c0_26 = arith.constant 0 : index
    %39 = vector.load %arg1[%c1, %c0_25, %c0_26] : memref<4x64x256xf32, #tpu.memory_space<vmem>>, vector<1x64x256xf32>
    %40 = vector.shape_cast %39 : vector<1x64x256xf32> to vector<64x256xf32>
    %41 = vector.broadcast %0 : vector<64x1xf32> to vector<64x256xf32>
    %42 = arith.mulf %40, %41 : vector<64x256xf32>
    %43 = vector.broadcast %1 : vector<64x1xf32> to vector<64x256xf32>
    %44 = arith.addf %42, %43 : vector<64x256xf32>
    %cst_27 = arith.constant dense<0.000000e+00> : vector<64x256xf32>
    %45 = tpu.matmul %2, %44, %cst_27 {dimension_numbers = #tpu.dot_dimension_numbers<[1], [0], [0], [1], [0, 0, 1, 1], [], []>} : vector<64x64xf32>, vector<64x256xf32>, vector<64x256xf32> -> vector<64x256xf32>
    %46 = vector.broadcast %4 : vector<64x1xf32> to vector<64x256xf32>
    %47 = arith.addf %45, %46 : vector<64x256xf32>
    %cst_28 = arith.constant 5.000000e-01 : f32
    %48 = vector.broadcast %cst_28 : f32 to vector<64x256xf32>
    %49 = arith.mulf %48, %47 : vector<64x256xf32>
    %cst_29 = arith.constant 0.707106769 : f32
    %50 = vector.broadcast %cst_29 : f32 to vector<64x256xf32>
    %51 = arith.mulf %47, %50 : vector<64x256xf32>
    %52 = math.erf %51 : vector<64x256xf32>
    %cst_30 = arith.constant 1.000000e+00 : f32
    %53 = vector.broadcast %cst_30 : f32 to vector<64x256xf32>
    %54 = arith.addf %53, %52 : vector<64x256xf32>
    %55 = arith.mulf %49, %54 : vector<64x256xf32>
    %cst_31 = arith.constant dense<0.000000e+00> : vector<64x256xf32>
    %56 = tpu.matmul %3, %55, %cst_31 {dimension_numbers = #tpu.dot_dimension_numbers<[1], [0], [0], [1], [0, 0, 1, 1], [], []>} : vector<64x64xf32>, vector<64x256xf32>, vector<64x256xf32> -> vector<64x256xf32>
    %57 = vector.broadcast %5 : vector<64x1xf32> to vector<64x256xf32>
    %58 = arith.addf %56, %57 : vector<64x256xf32>
    %59 = arith.addf %40, %58 : vector<64x256xf32>
    %c1_32 = arith.constant 1 : index
    %c0_33 = arith.constant 0 : index
    %c0_34 = arith.constant 0 : index
    %60 = vector.load %arg8[%c1_32, %c0_33, %c0_34] : memref<4x64x256xf32, #tpu.memory_space<vmem>>, vector<1x64x256xf32>
    %61 = vector.shape_cast %60 : vector<1x64x256xf32> to vector<64x256xf32>
    %62 = vector.shape_cast %59 : vector<64x256xf32> to vector<1x64x256xf32>
    tpu.vector_store %arg8[%c1_32, %c0_33, %c0_34], %62 {strides = array<i32>} : memref<4x64x256xf32, #tpu.memory_space<vmem>>, vector<1x64x256xf32>,
    %cst_35 = arith.constant dense<0.000000e+00> : vector<64xf32>
    %63 = vector.multi_reduction <add>, %59, %cst_35 [1] : vector<64x256xf32> to vector<64xf32>
    %64 = vector.shape_cast %63 : vector<64xf32> to vector<64x1xf32>
    %65 = arith.addf %34, %64 : vector<64x1xf32>
    %66 = arith.mulf %59, %59 : vector<64x256xf32>
    %cst_36 = arith.constant dense<0.000000e+00> : vector<64xf32>
    %67 = vector.multi_reduction <add>, %66, %cst_36 [1] : vector<64x256xf32> to vector<64xf32>
    %68 = vector.shape_cast %67 : vector<64xf32> to vector<64x1xf32>
    %69 = arith.addf %38, %68 : vector<64x1xf32>
    %c2 = arith.constant 2 : index
    %c0_37 = arith.constant 0 : index
    %c0_38 = arith.constant 0 : index
    %70 = vector.load %arg1[%c2, %c0_37, %c0_38] : memref<4x64x256xf32, #tpu.memory_space<vmem>>, vector<1x64x256xf32>
    %71 = vector.shape_cast %70 : vector<1x64x256xf32> to vector<64x256xf32>
    %72 = vector.broadcast %0 : vector<64x1xf32> to vector<64x256xf32>
    %73 = arith.mulf %71, %72 : vector<64x256xf32>
    %74 = vector.broadcast %1 : vector<64x1xf32> to vector<64x256xf32>
    %75 = arith.addf %73, %74 : vector<64x256xf32>
    %cst_39 = arith.constant dense<0.000000e+00> : vector<64x256xf32>
    %76 = tpu.matmul %2, %75, %cst_39 {dimension_numbers = #tpu.dot_dimension_numbers<[1], [0], [0], [1], [0, 0, 1, 1], [], []>} : vector<64x64xf32>, vector<64x256xf32>, vector<64x256xf32> -> vector<64x256xf32>
    %77 = vector.broadcast %4 : vector<64x1xf32> to vector<64x256xf32>
    %78 = arith.addf %76, %77 : vector<64x256xf32>
    %cst_40 = arith.constant 5.000000e-01 : f32
    %79 = vector.broadcast %cst_40 : f32 to vector<64x256xf32>
    %80 = arith.mulf %79, %78 : vector<64x256xf32>
    %cst_41 = arith.constant 0.707106769 : f32
    %81 = vector.broadcast %cst_41 : f32 to vector<64x256xf32>
    %82 = arith.mulf %78, %81 : vector<64x256xf32>
    %83 = math.erf %82 : vector<64x256xf32>
    %cst_42 = arith.constant 1.000000e+00 : f32
    %84 = vector.broadcast %cst_42 : f32 to vector<64x256xf32>
    %85 = arith.addf %84, %83 : vector<64x256xf32>
    %86 = arith.mulf %80, %85 : vector<64x256xf32>
    %cst_43 = arith.constant dense<0.000000e+00> : vector<64x256xf32>
    %87 = tpu.matmul %3, %86, %cst_43 {dimension_numbers = #tpu.dot_dimension_numbers<[1], [0], [0], [1], [0, 0, 1, 1], [], []>} : vector<64x64xf32>, vector<64x256xf32>, vector<64x256xf32> -> vector<64x256xf32>
    %88 = vector.broadcast %5 : vector<64x1xf32> to vector<64x256xf32>
    %89 = arith.addf %87, %88 : vector<64x256xf32>
    %90 = arith.addf %71, %89 : vector<64x256xf32>
    %c2_44 = arith.constant 2 : index
    %c0_45 = arith.constant 0 : index
    %c0_46 = arith.constant 0 : index
    %91 = vector.load %arg8[%c2_44, %c0_45, %c0_46] : memref<4x64x256xf32, #tpu.memory_space<vmem>>, vector<1x64x256xf32>
    %92 = vector.shape_cast %91 : vector<1x64x256xf32> to vector<64x256xf32>
    %93 = vector.shape_cast %90 : vector<64x256xf32> to vector<1x64x256xf32>
    tpu.vector_store %arg8[%c2_44, %c0_45, %c0_46], %93 {strides = array<i32>} : memref<4x64x256xf32, #tpu.memory_space<vmem>>, vector<1x64x256xf32>,
    %cst_47 = arith.constant dense<0.000000e+00> : vector<64xf32>
    %94 = vector.multi_reduction <add>, %90, %cst_47 [1] : vector<64x256xf32> to vector<64xf32>
    %95 = vector.shape_cast %94 : vector<64xf32> to vector<64x1xf32>
    %96 = arith.addf %65, %95 : vector<64x1xf32>
    %97 = arith.mulf %90, %90 : vector<64x256xf32>
    %cst_48 = arith.constant dense<0.000000e+00> : vector<64xf32>
    %98 = vector.multi_reduction <add>, %97, %cst_48 [1] : vector<64x256xf32> to vector<64xf32>
    %99 = vector.shape_cast %98 : vector<64xf32> to vector<64x1xf32>
    %100 = arith.addf %69, %99 : vector<64x1xf32>
    %c3 = arith.constant 3 : index
    %c0_49 = arith.constant 0 : index
    %c0_50 = arith.constant 0 : index
    %101 = vector.load %arg1[%c3, %c0_49, %c0_50] : memref<4x64x256xf32, #tpu.memory_space<vmem>>, vector<1x64x256xf32>
    %102 = vector.shape_cast %101 : vector<1x64x256xf32> to vector<64x256xf32>
    %103 = vector.broadcast %0 : vector<64x1xf32> to vector<64x256xf32>
    %104 = arith.mulf %102, %103 : vector<64x256xf32>
    %105 = vector.broadcast %1 : vector<64x1xf32> to vector<64x256xf32>
    %106 = arith.addf %104, %105 : vector<64x256xf32>
    %cst_51 = arith.constant dense<0.000000e+00> : vector<64x256xf32>
    %107 = tpu.matmul %2, %106, %cst_51 {dimension_numbers = #tpu.dot_dimension_numbers<[1], [0], [0], [1], [0, 0, 1, 1], [], []>} : vector<64x64xf32>, vector<64x256xf32>, vector<64x256xf32> -> vector<64x256xf32>
    %108 = vector.broadcast %4 : vector<64x1xf32> to vector<64x256xf32>
    %109 = arith.addf %107, %108 : vector<64x256xf32>
    %cst_52 = arith.constant 5.000000e-01 : f32
    %110 = vector.broadcast %cst_52 : f32 to vector<64x256xf32>
    %111 = arith.mulf %110, %109 : vector<64x256xf32>
    %cst_53 = arith.constant 0.707106769 : f32
    %112 = vector.broadcast %cst_53 : f32 to vector<64x256xf32>
    %113 = arith.mulf %109, %112 : vector<64x256xf32>
    %114 = math.erf %113 : vector<64x256xf32>
    %cst_54 = arith.constant 1.000000e+00 : f32
    %115 = vector.broadcast %cst_54 : f32 to vector<64x256xf32>
    %116 = arith.addf %115, %114 : vector<64x256xf32>
    %117 = arith.mulf %111, %116 : vector<64x256xf32>
    %cst_55 = arith.constant dense<0.000000e+00> : vector<64x256xf32>
    %118 = tpu.matmul %3, %117, %cst_55 {dimension_numbers = #tpu.dot_dimension_numbers<[1], [0], [0], [1], [0, 0, 1, 1], [], []>} : vector<64x64xf32>, vector<64x256xf32>, vector<64x256xf32> -> vector<64x256xf32>
    %119 = vector.broadcast %5 : vector<64x1xf32> to vector<64x256xf32>
    %120 = arith.addf %118, %119 : vector<64x256xf32>
    %121 = arith.addf %102, %120 : vector<64x256xf32>
    %c3_56 = arith.constant 3 : index
    %c0_57 = arith.constant 0 : index
    %c0_58 = arith.constant 0 : index
    %122 = vector.load %arg8[%c3_56, %c0_57, %c0_58] : memref<4x64x256xf32, #tpu.memory_space<vmem>>, vector<1x64x256xf32>
    %123 = vector.shape_cast %122 : vector<1x64x256xf32> to vector<64x256xf32>
    %124 = vector.shape_cast %121 : vector<64x256xf32> to vector<1x64x256xf32>
    tpu.vector_store %arg8[%c3_56, %c0_57, %c0_58], %124 {strides = array<i32>} : memref<4x64x256xf32, #tpu.memory_space<vmem>>, vector<1x64x256xf32>,
    %cst_59 = arith.constant dense<0.000000e+00> : vector<64xf32>
    %125 = vector.multi_reduction <add>, %121, %cst_59 [1] : vector<64x256xf32> to vector<64xf32>
    %126 = vector.shape_cast %125 : vector<64xf32> to vector<64x1xf32>
    %127 = arith.addf %96, %126 : vector<64x1xf32>
    %128 = arith.mulf %121, %121 : vector<64x256xf32>
    %cst_60 = arith.constant dense<0.000000e+00> : vector<64xf32>
    %129 = vector.multi_reduction <add>, %128, %cst_60 [1] : vector<64x256xf32> to vector<64xf32>
    %130 = vector.shape_cast %129 : vector<64xf32> to vector<64x1xf32>
    %131 = arith.addf %100, %130 : vector<64x1xf32>
    %132 = vector.shape_cast %127 : vector<64x1xf32> to vector<1x64x1xf32>
    %c0_61 = arith.constant 0 : index
    %c0_62 = arith.constant 0 : index
    %c0_63 = arith.constant 0 : index
    %133 = vector.load %arg9[%c0_61, %c0_62, %c0_63] : memref<1x64x2xf32, #tpu.memory_space<vmem>>, vector<1x64x1xf32>
    tpu.vector_store %arg9[%c0_61, %c0_62, %c0_63], %132 {strides = array<i32>} : memref<1x64x2xf32, #tpu.memory_space<vmem>>, vector<1x64x1xf32>,
    %134 = vector.shape_cast %131 : vector<64x1xf32> to vector<1x64x1xf32>
    %c0_64 = arith.constant 0 : index
    %c0_65 = arith.constant 0 : index
    %c1_66 = arith.constant 1 : index
    %135 = vector.load %arg9[%c0_64, %c0_65, %c1_66] : memref<1x64x2xf32, #tpu.memory_space<vmem>>, vector<1x64x1xf32>
    tpu.vector_store %arg9[%c0_64, %c0_65, %c1_66], %134 {strides = array<i32>} : memref<1x64x2xf32, #tpu.memory_space<vmem>>, vector<1x64x1xf32>,
    return
  }
  func.func @transform_0(%arg0: i32) -> (i32, i32, i32) {
    %c0_i32 = arith.constant 0 : i32
    %c0_i32_0 = arith.constant 0 : i32
    %c0_i32_1 = arith.constant 0 : i32
    return %arg0, %c0_i32, %c0_i32_0 : i32, i32, i32
  }
  func.func @transform_1(%arg0: i32) -> (i32, i32) {
    %c0_i32 = arith.constant 0 : i32
    %c0_i32_0 = arith.constant 0 : i32
    %c0_i32_1 = arith.constant 0 : i32
    return %c0_i32, %c0_i32_0 : i32, i32
  }
  func.func @transform_2(%arg0: i32) -> (i32, i32) {
    %c0_i32 = arith.constant 0 : i32
    %c0_i32_0 = arith.constant 0 : i32
    %c0_i32_1 = arith.constant 0 : i32
    return %c0_i32, %c0_i32_0 : i32, i32
  }
  func.func @transform_3(%arg0: i32) -> (i32, i32) {
    %c0_i32 = arith.constant 0 : i32
    %c0_i32_0 = arith.constant 0 : i32
    %c0_i32_1 = arith.constant 0 : i32
    return %c0_i32, %c0_i32_0 : i32, i32
  }
  func.func @transform_4(%arg0: i32) -> (i32, i32) {
    %c0_i32 = arith.constant 0 : i32
    %c0_i32_0 = arith.constant 0 : i32
    %c0_i32_1 = arith.constant 0 : i32
    return %c0_i32, %c0_i32_0 : i32, i32
  }
  func.func @transform_5(%arg0: i32) -> (i32, i32) {
    %c0_i32 = arith.constant 0 : i32
    %c0_i32_0 = arith.constant 0 : i32
    %c0_i32_1 = arith.constant 0 : i32
    return %c0_i32, %c0_i32_0 : i32, i32
  }
  func.func @transform_6(%arg0: i32) -> (i32, i32) {
    %c0_i32 = arith.constant 0 : i32
    %c0_i32_0 = arith.constant 0 : i32
    %c0_i32_1 = arith.constant 0 : i32
    return %c0_i32, %c0_i32_0 : i32, i32
  }
  func.func @transform_7(%arg0: i32) -> (i32, i32, i32) {
    %c0_i32 = arith.constant 0 : i32
    %c0_i32_0 = arith.constant 0 : i32
    %c0_i32_1 = arith.constant 0 : i32
    return %arg0, %c0_i32, %c0_i32_0 : i32, i32, i32
  }
  func.func @transform_8(%arg0: i32) -> (i32, i32, i32) {
    %c0_i32 = arith.constant 0 : i32
    %c0_i32_0 = arith.constant 0 : i32
    %c0_i32_1 = arith.constant 0 : i32
    return %arg0, %c0_i32, %c0_i32_0 : i32, i32, i32
  }
}

</mosaic_0001>

<llo_original>
// kernel: mlp_mixer_layer.3
$region0: #{mlp_mixer_layer.3}
  #allocation0 [shape = 'u32[]', space=smem, size = 0x4, offset = 0x4, fixed_abs, tag = 'smem constant byte address 0x4 - core index']
  #allocation1 [shape = 'u32[144,128]{1,0:T(1,128)}', space=vmem, size = 0x12000, scoped, tag = 'internal scratch']
  %s0 = inlined_call_operand.hbm [shape: f32[8,64,256], index: 0, kind: input, shape index: {}]
  %s1 = inlined_call_operand.vmem [shape: f32[2,64,2], index: 1, kind: output, shape index: {}]
  %s2 = sld [smem:[#allocation0]]
  $region41: #{mlp_mixer_layer.3} parent=0
    _
  %s4 = ssub.s32 1, %s2
  %s5 = scalar_select 0, %s4, %s2
  $region1: #{mlp_mixer_layer.3} parent=0
    #allocation2 [shape = 'u8[524288]{0}', space=vmem, size = 0x80000, scoped, tag = 'input window, operand 0']
    #allocation3 [shape = 's32[2]{0}', space=sflag, size = 0x8, scoped, tag = 'scoped memory for mlp_mixer_layer.3']
    %6 = vsyncpa [#allocation3], 0
    %s7 = scalar_lea.sflag [#allocation3], 1
    %8 = vsyncpa %s7, 0
    loop: start=0, step=1, limit=4
    $region2: #{mlp_mixer_layer.3} parent=1 // loop_pre_header
      _
    $region3: #{mlp_mixer_layer.3} parent=1 // loop_header
      %s10 = sphi 0, %s14
      %p11 = scmp.ge.s32.totalorder %s10, 4
      %s20 = sphi 0, %s22
      %s23 = sphi 0, %s20
      %s24 = sphi 0, %s23
      %s40 = sphi 0, %s24
      %s46 = sphi 0, %s48
      %s49 = sphi 0, %s46
      %s50 = sphi 0, %s49
      %s66 = sphi 0, %s50
    $region4: #{mlp_mixer_layer.3} parent=1 // loop_header_branch
      %13 = sbr.rel (%p11) target = $region8
    $region5: #{mlp_mixer_layer.3} parent=1 // loop_body
      %s15 = ssub.s32 %s10, 1
      %s16 = ssub.s32 %s10, 2
      %s17 = sadd.s32 %s10, 1
      %s18 = ssub.s32 %s10, %s17
      %p19 = scmp.eq.s32.totalorder %s18, 0
      %s21 = sadd.s32 %s20, 1
      %s22 = scalar_select %p19, %s20, %s21
      %p25 = pneg %p19
      %p26 = scmp.eq.s32.totalorder %s10, 1
      %p27 = por %p25, %p26
      %p28 = scmp.ne.s32.totalorder %s20, %s23
      %p29 = scmp.eq.s32.totalorder %s10, 0
      %p30 = por %p28, %p29
      %p31 = scmp.ne.s32.totalorder %s20, %s23
      %p32 = scmp.eq.s32.totalorder %s15, 1
      %p33 = por %p31, %p32
      %p34 = scmp.ne.s32.totalorder %s23, %s24
      %p35 = scmp.eq.s32.totalorder %s15, 0
      %p36 = por %p34, %p35
      %p37 = scmp.ne.s32.totalorder %s23, %s24
      %p38 = scmp.eq.s32.totalorder %s16, 1
      %p39 = por %p37, %p38
      %p41 = scmp.ne.s32.totalorder %s24, %s40
      %p42 = scmp.eq.s32.totalorder %s16, 0
      %p43 = por %p41, %p42
      %s44 = ssub.s32 %s10, %s17
      %p45 = scmp.eq.s32.totalorder %s44, 0
      %s47 = sadd.s32 %s46, 1
      %s48 = scalar_select %p45, %s46, %s47
      %p51 = pneg %p45
      %p52 = scmp.eq.s32.totalorder %s10, 1
      %p53 = por %p51, %p52
      %p54 = scmp.ne.s32.totalorder %s46, %s49
      %p55 = scmp.eq.s32.totalorder %s10, 0
      %p56 = por %p54, %p55
      %p57 = scmp.ne.s32.totalorder %s46, %s49
      %p58 = scmp.eq.s32.totalorder %s15, 1
      %p59 = por %p57, %p58
      %p60 = scmp.ne.s32.totalorder %s49, %s50
      %p61 = scmp.eq.s32.totalorder %s15, 0
      %p62 = por %p60, %p61
      %p63 = scmp.ne.s32.totalorder %s49, %s50
      %p64 = scmp.eq.s32.totalorder %s16, 1
      %p65 = por %p63, %p64
      %p67 = scmp.ne.s32.totalorder %s50, %s66
      %p68 = scmp.eq.s32.totalorder %s16, 0
      %p69 = por %p67, %p68
      %p70 = scmp.le.s32.totalorder 1, %s10
      %p71 = scmp.lt.s32.totalorder %s10, 3
      %p72 = pnand %p70, %p71
      %p73 = pneg %p72
      // Predicated region
      $region9: #{mlp_mixer_layer.3} parent=5 // pred_check
        _
      $region10: #{mlp_mixer_layer.3} parent=5 // pred_check_branch
        %75 = sbr.rel (%p72) target = $region12
      $region11: #{mlp_mixer_layer.3} parent=5 // pred_region
        %s76 = ssub.s32 %s10, 1
      $region12: #{mlp_mixer_layer.3} parent=5 // pred_fallthru
        _
      %p77 = scmp.lt.s32.totalorder %s10, 2
      // Predicated region
      $region13: #{mlp_mixer_layer.3} parent=5 // pred_check
        %p78 = pneg %p77
      $region14: #{mlp_mixer_layer.3} parent=5 // pred_check_branch
        %80 = sbr.rel (%p78) target = $region16
      $region15: #{mlp_mixer_layer.3} parent=5 // pred_region
        // Predicated region
        $region17: #{mlp_mixer_layer.3} parent=15 // pred_check
          %p81 = pneg %p30
        $region18: #{mlp_mixer_layer.3} parent=15 // pred_check_branch
          %83 = sbr.rel (%p81) target = $region20
        $region19: #{mlp_mixer_layer.3} parent=15 // pred_region
          %s84 = sand.u32 %s20, 1
          %s85 = scalar_lea.sflag [#allocation3], %s84
          %s86 = sand.u32 %s20, 1
          %s87 = smul.addr %s86, 512
          %s88 = scalar_lea.vmem [#allocation2], %s87
          %s89 = smul.u32 4, %s10
          %s91 = ssub.s32 8192, 8192
          %92 = vsyncadd %s85, %s91
          %s93 = smul.addr %s89, 16
          %s94 = smul.addr %s93, 128
          %s95 = scalar_lea.hbm %s0, %s94
          %s96 = sshll.u32 %s88, 4
          %s97 = int_to_ptr.vmem [resolvable:$true] %s96
          %102 = dma.hbm_to_vmem [thread:$0]  %s95, 8192, %s97, %s85, 256, 256, 16
        $region20: #{mlp_mixer_layer.3} parent=15 // pred_fallthru
          _
      $region16: #{mlp_mixer_layer.3} parent=5 // pred_fallthru
        _
      %p103 = scmp.le.s32.totalorder 1, %s10
      %p104 = scmp.lt.s32.totalorder %s10, 3
      %p105 = pnand %p103, %p104
      %p106 = pneg %p105
      // Predicated region
      $region21: #{mlp_mixer_layer.3} parent=5 // pred_check
        _
      $region22: #{mlp_mixer_layer.3} parent=5 // pred_check_branch
        %108 = sbr.rel (%p105) target = $region24
      $region23: #{mlp_mixer_layer.3} parent=5 // pred_region
        %s109 = ssub.s32 %s10, 1
        %s110 = sand.u32 %s23, 1
        %s111 = scalar_lea.sflag [#allocation3], %s110
        %s112 = sand.u32 %s23, 1
        %s113 = smul.addr %s112, 512
        %s114 = scalar_lea.vmem [#allocation2], %s113
        // Predicated region
        $region25: #{mlp_mixer_layer.3} parent=23 // pred_check
          %p115 = pneg %p36
        $region26: #{mlp_mixer_layer.3} parent=23 // pred_check_branch
          %117 = sbr.rel (%p115) target = $region28
        $region27: #{mlp_mixer_layer.3} parent=23 // pred_region
          %118 = dma.done %s111, 8192
        $region28: #{mlp_mixer_layer.3} parent=23 // pred_fallthru
          _
        %s119 = sand.u32 %s23, 1
        %s120 = scalar_lea.sflag [#allocation3], %s119
        %s121 = sand.u32 %s23, 1
        %s122 = smul.addr %s121, 512
        %s123 = scalar_lea.vmem [#allocation2], %s122
        %p124 = pneg %p36
        %p125 = pneg %p33
        %p126 = pneg %p62
        %p127 = pneg %p59
        %p128 = scmp.lt.s32.totalorder %s15, 1
        %s129 = scalar_select %p128, %s15, 1
        %s130 = smul.addr %s129, 8
        %s131 = smul.addr %s130, 8
        %s132 = scalar_lea.vmem %s1, %s131
        %s133 = smul.u32 4, %s15
        %p134 = scmp.lt.s32.totalorder %s15, 1
        %s135 = scalar_select %p134, %s15, 1
        %s136 = smul.addr %s135, 8
        %s137 = smul.addr %s136, 8
        %s138 = scalar_lea.vmem %s1, %s137
        %v139 = vld [vmem:[%s114] sm:$0xff]
        %v140 = vld [vmem:[%s114 + $0x8] sm:$0xff]
        %v141 = vld [vmem:[%s114 + $0x10] sm:$0xff]
        %v142 = vld [vmem:[%s114 + $0x18] sm:$0xff]
        %v143 = vld [vmem:[%s114 + $0x20] sm:$0xff]
        %v144 = vld [vmem:[%s114 + $0x28] sm:$0xff]
        %v145 = vld [vmem:[%s114 + $0x30] sm:$0xff]
        %v146 = vld [vmem:[%s114 + $0x38] sm:$0xff]
        %v147 = vld [vmem:[%s114 + $0x40] sm:$0xff]
        %v148 = vld [vmem:[%s114 + $0x48] sm:$0xff]
        %v149 = vld [vmem:[%s114 + $0x50] sm:$0xff]
        %v150 = vld [vmem:[%s114 + $0x58] sm:$0xff]
        %v151 = vld [vmem:[%s114 + $0x60] sm:$0xff]
        %v152 = vld [vmem:[%s114 + $0x68] sm:$0xff]
        %v153 = vld [vmem:[%s114 + $0x70] sm:$0xff]
        %v154 = vld [vmem:[%s114 + $0x78] sm:$0xff]
        %v155 = vld [vmem:[%s114 + $0x80] sm:$0xff]
        %v156 = vld [vmem:[%s114 + $0x88] sm:$0xff]
        %v157 = vld [vmem:[%s114 + $0x90] sm:$0xff]
        %v158 = vld [vmem:[%s114 + $0x98] sm:$0xff]
        %v159 = vld [vmem:[%s114 + $0xa0] sm:$0xff]
        %v160 = vld [vmem:[%s114 + $0xa8] sm:$0xff]
        %v161 = vld [vmem:[%s114 + $0xb0] sm:$0xff]
        %v162 = vld [vmem:[%s114 + $0xb8] sm:$0xff]
        %v163 = vld [vmem:[%s114 + $0xc0] sm:$0xff]
        %v164 = vld [vmem:[%s114 + $0xc8] sm:$0xff]
        %v165 = vld [vmem:[%s114 + $0xd0] sm:$0xff]
        %v166 = vld [vmem:[%s114 + $0xd8] sm:$0xff]
        %v167 = vld [vmem:[%s114 + $0xe0] sm:$0xff]
        %v168 = vld [vmem:[%s114 + $0xe8] sm:$0xff]
        %v169 = vld [vmem:[%s114 + $0xf0] sm:$0xff]
        %v170 = vld [vmem:[%s114 + $0xf8] sm:$0xff]
        %v171 = vld [vmem:[%s114 + $0x100] sm:$0xff]
        %v172 = vld [vmem:[%s114 + $0x108] sm:$0xff]
        %v173 = vld [vmem:[%s114 + $0x110] sm:$0xff]
        %v174 = vld [vmem:[%s114 + $0x118] sm:$0xff]
        %v175 = vld [vmem:[%s114 + $0x120] sm:$0xff]
        %v176 = vld [vmem:[%s114 + $0x128] sm:$0xff]
        %v177 = vld [vmem:[%s114 + $0x130] sm:$0xff]
        %v178 = vld [vmem:[%s114 + $0x138] sm:$0xff]
        %v179 = vld [vmem:[%s114 + $0x140] sm:$0xff]
        %v180 = vld [vmem:[%s114 + $0x148] sm:$0xff]
        %v181 = vld [vmem:[%s114 + $0x150] sm:$0xff]
        %v182 = vld [vmem:[%s114 + $0x158] sm:$0xff]
        %v183 = vld [vmem:[%s114 + $0x160] sm:$0xff]
        %v184 = vld [vmem:[%s114 + $0x168] sm:$0xff]
        %v185 = vld [vmem:[%s114 + $0x170] sm:$0xff]
        %v186 = vld [vmem:[%s114 + $0x178] sm:$0xff]
        %v187 = vld [vmem:[%s114 + $0x180] sm:$0xff]
        %v188 = vld [vmem:[%s114 + $0x188] sm:$0xff]
        %v189 = vld [vmem:[%s114 + $0x190] sm:$0xff]
        %v190 = vld [vmem:[%s114 + $0x198] sm:$0xff]
        %v191 = vld [vmem:[%s114 + $0x1a0] sm:$0xff]
        %v192 = vld [vmem:[%s114 + $0x1a8] sm:$0xff]
        %v193 = vld [vmem:[%s114 + $0x1b0] sm:$0xff]
        %v194 = vld [vmem:[%s114 + $0x1b8] sm:$0xff]
        %v195 = vld [vmem:[%s114 + $0x1c0] sm:$0xff]
        %v196 = vld [vmem:[%s114 + $0x1c8] sm:$0xff]
        %v197 = vld [vmem:[%s114 + $0x1d0] sm:$0xff]
        %v198 = vld [vmem:[%s114 + $0x1d8] sm:$0xff]
        %v199 = vld [vmem:[%s114 + $0x1e0] sm:$0xff]
        %v200 = vld [vmem:[%s114 + $0x1e8] sm:$0xff]
        %v201 = vld [vmem:[%s114 + $0x1f0] sm:$0xff]
        %v202 = vld [vmem:[%s114 + $0x1f8] sm:$0xff]
        %v203 = vadd.f32 %v139, %v140
        %v204 = vadd.f32 %v203, %v155
        %v205 = vadd.f32 %v204, %v156
        %v206 = vadd.f32 %v205, %v171
        %v207 = vadd.f32 %v206, %v172
        %v208 = vadd.f32 %v207, %v187
        %v209 = vadd.f32 %v208, %v188
        %210 = vadd.xlane.f32.xlu0 %v209
        %v211 = vpop.xlane.xlu0 %210
        %v212 = vadd.f32 %v141, %v142
        %v213 = vadd.f32 %v212, %v157
        %v214 = vadd.f32 %v213, %v158
        %v215 = vadd.f32 %v214, %v173
        %v216 = vadd.f32 %v215, %v174
        %v217 = vadd.f32 %v216, %v189
        %v218 = vadd.f32 %v217, %v190
        %219 = vadd.xlane.f32.xlu0 %v218
        %v220 = vpop.xlane.xlu0 %219
        %v221 = vadd.f32 %v143, %v144
        %v222 = vadd.f32 %v221, %v159
        %v223 = vadd.f32 %v222, %v160
        %v224 = vadd.f32 %v223, %v175
        %v225 = vadd.f32 %v224, %v176
        %v226 = vadd.f32 %v225, %v191
        %v227 = vadd.f32 %v226, %v192
        %228 = vadd.xlane.f32.xlu0 %v227
        %v229 = vpop.xlane.xlu0 %228
        %v230 = vadd.f32 %v145, %v146
        %v231 = vadd.f32 %v230, %v161
        %v232 = vadd.f32 %v231, %v162
        %v233 = vadd.f32 %v232, %v177
        %v234 = vadd.f32 %v233, %v178
        %v235 = vadd.f32 %v234, %v193
        %v236 = vadd.f32 %v235, %v194
        %237 = vadd.xlane.f32.xlu0 %v236
        %v238 = vpop.xlane.xlu0 %237
        %v239 = vadd.f32 %v147, %v148
        %v240 = vadd.f32 %v239, %v163
        %v241 = vadd.f32 %v240, %v164
        %v242 = vadd.f32 %v241, %v179
        %v243 = vadd.f32 %v242, %v180
        %v244 = vadd.f32 %v243, %v195
        %v245 = vadd.f32 %v244, %v196
        %246 = vadd.xlane.f32.xlu0 %v245
        %v247 = vpop.xlane.xlu0 %246
        %v248 = vadd.f32 %v149, %v150
        %v249 = vadd.f32 %v248, %v165
        %v250 = vadd.f32 %v249, %v166
        %v251 = vadd.f32 %v250, %v181
        %v252 = vadd.f32 %v251, %v182
        %v253 = vadd.f32 %v252, %v197
        %v254 = vadd.f32 %v253, %v198
        %255 = vadd.xlane.f32.xlu0 %v254
        %v256 = vpop.xlane.xlu0 %255
        %v257 = vadd.f32 %v151, %v152
        %v258 = vadd.f32 %v257, %v167
        %v259 = vadd.f32 %v258, %v168
        %v260 = vadd.f32 %v259, %v183
        %v261 = vadd.f32 %v260, %v184
        %v262 = vadd.f32 %v261, %v199
        %v263 = vadd.f32 %v262, %v200
        %264 = vadd.xlane.f32.xlu0 %v263
        %v265 = vpop.xlane.xlu0 %264
        %v266 = vadd.f32 %v153, %v154
        %v267 = vadd.f32 %v266, %v169
        %v268 = vadd.f32 %v267, %v170
        %v269 = vadd.f32 %v268, %v185
        %v270 = vadd.f32 %v269, %v186
        %v271 = vadd.f32 %v270, %v201
        %v272 = vadd.f32 %v271, %v202
        %273 = vadd.xlane.f32.xlu0 %v272
        %v274 = vpop.xlane.xlu0 %273
        %v275 = vmul.f32 %v139, %v139
        %v276 = vmul.f32 %v140, %v140
        %v277 = vmul.f32 %v141, %v141
        %v278 = vmul.f32 %v142, %v142
        %v279 = vmul.f32 %v143, %v143
        %v280 = vmul.f32 %v144, %v144
        %v281 = vmul.f32 %v145, %v145
        %v282 = vmul.f32 %v146, %v146
        %v283 = vmul.f32 %v147, %v147
        %v284 = vmul.f32 %v148, %v148
        %v285 = vmul.f32 %v149, %v149
        %v286 = vmul.f32 %v150, %v150
        %v287 = vmul.f32 %v151, %v151
        %v288 = vmul.f32 %v152, %v152
        %v289 = vmul.f32 %v153, %v153
        %v290 = vmul.f32 %v154, %v154
        %v291 = vmul.f32 %v155, %v155
        %v292 = vmul.f32 %v156, %v156
        %v293 = vmul.f32 %v157, %v157
        %v294 = vmul.f32 %v158, %v158
        %v295 = vmul.f32 %v159, %v159
        %v296 = vmul.f32 %v160, %v160
        %v297 = vmul.f32 %v161, %v161
        %v298 = vmul.f32 %v162, %v162
        %v299 = vmul.f32 %v163, %v163
        %v300 = vmul.f32 %v164, %v164
        %v301 = vmul.f32 %v165, %v165
        %v302 = vmul.f32 %v166, %v166
        %v303 = vmul.f32 %v167, %v167
        %v304 = vmul.f32 %v168, %v168
        %v305 = vmul.f32 %v169, %v169
        %v306 = vmul.f32 %v170, %v170
        %v307 = vmul.f32 %v171, %v171
        %v308 = vmul.f32 %v172, %v172
        %v309 = vmul.f32 %v173, %v173
        %v310 = vmul.f32 %v174, %v174
        %v311 = vmul.f32 %v175, %v175
        %v312 = vmul.f32 %v176, %v176
        %v313 = vmul.f32 %v177, %v177
        %v314 = vmul.f32 %v178, %v178
        %v315 = vmul.f32 %v179, %v179
        %v316 = vmul.f32 %v180, %v180
        %v317 = vmul.f32 %v181, %v181
        %v318 = vmul.f32 %v182, %v182
        %v319 = vmul.f32 %v183, %v183
        %v320 = vmul.f32 %v184, %v184
        %v321 = vmul.f32 %v185, %v185
        %v322 = vmul.f32 %v186, %v186
        %v323 = vmul.f32 %v187, %v187
        %v324 = vmul.f32 %v188, %v188
        %v325 = vmul.f32 %v189, %v189
        %v326 = vmul.f32 %v190, %v190
        %v327 = vmul.f32 %v191, %v191
        %v328 = vmul.f32 %v192, %v192
        %v329 = vmul.f32 %v193, %v193
        %v330 = vmul.f32 %v194, %v194
        %v331 = vmul.f32 %v195, %v195
        %v332 = vmul.f32 %v196, %v196
        %v333 = vmul.f32 %v197, %v197
        %v334 = vmul.f32 %v198, %v198
        %v335 = vmul.f32 %v199, %v199
        %v336 = vmul.f32 %v200, %v200
        %v337 = vmul.f32 %v201, %v201
        %v338 = vmul.f32 %v202, %v202
        %v339 = vadd.f32 %v275, %v276
        %v340 = vadd.f32 %v339, %v291
        %v341 = vadd.f32 %v340, %v292
        %v342 = vadd.f32 %v341, %v307
        %v343 = vadd.f32 %v342, %v308
        %v344 = vadd.f32 %v343, %v323
        %v345 = vadd.f32 %v344, %v324
        %346 = vadd.xlane.f32.xlu0 %v345
        %v347 = vpop.xlane.xlu0 %346
        %v348 = vadd.f32 %v277, %v278
        %v349 = vadd.f32 %v348, %v293
        %v350 = vadd.f32 %v349, %v294
        %v351 = vadd.f32 %v350, %v309
        %v352 = vadd.f32 %v351, %v310
        %v353 = vadd.f32 %v352, %v325
        %v354 = vadd.f32 %v353, %v326
        %355 = vadd.xlane.f32.xlu0 %v354
        %v356 = vpop.xlane.xlu0 %355
        %v357 = vadd.f32 %v279, %v280
        %v358 = vadd.f32 %v357, %v295
        %v359 = vadd.f32 %v358, %v296
        %v360 = vadd.f32 %v359, %v311
        %v361 = vadd.f32 %v360, %v312
        %v362 = vadd.f32 %v361, %v327
        %v363 = vadd.f32 %v362, %v328
        %364 = vadd.xlane.f32.xlu0 %v363
        %v365 = vpop.xlane.xlu0 %364
        %v366 = vadd.f32 %v281, %v282
        %v367 = vadd.f32 %v366, %v297
        %v368 = vadd.f32 %v367, %v298
        %v369 = vadd.f32 %v368, %v313
        %v370 = vadd.f32 %v369, %v314
        %v371 = vadd.f32 %v370, %v329
        %v372 = vadd.f32 %v371, %v330
        %373 = vadd.xlane.f32.xlu0 %v372
        %v374 = vpop.xlane.xlu0 %373
        %v375 = vadd.f32 %v283, %v284
        %v376 = vadd.f32 %v375, %v299
        %v377 = vadd.f32 %v376, %v300
        %v378 = vadd.f32 %v377, %v315
        %v379 = vadd.f32 %v378, %v316
        %v380 = vadd.f32 %v379, %v331
        %v381 = vadd.f32 %v380, %v332
        %382 = vadd.xlane.f32.xlu0 %v381
        %v383 = vpop.xlane.xlu0 %382
        %v384 = vadd.f32 %v285, %v286
        %v385 = vadd.f32 %v384, %v301
        %v386 = vadd.f32 %v385, %v302
        %v387 = vadd.f32 %v386, %v317
        %v388 = vadd.f32 %v387, %v318
        %v389 = vadd.f32 %v388, %v333
        %v390 = vadd.f32 %v389, %v334
        %391 = vadd.xlane.f32.xlu0 %v390
        %v392 = vpop.xlane.xlu0 %391
        %v393 = vadd.f32 %v287, %v288
        %v394 = vadd.f32 %v393, %v303
        %v395 = vadd.f32 %v394, %v304
        %v396 = vadd.f32 %v395, %v319
        %v397 = vadd.f32 %v396, %v320
        %v398 = vadd.f32 %v397, %v335
        %v399 = vadd.f32 %v398, %v336
        %400 = vadd.xlane.f32.xlu0 %v399
        %v401 = vpop.xlane.xlu0 %400
        %v402 = vadd.f32 %v289, %v290
        %v403 = vadd.f32 %v402, %v305
        %v404 = vadd.f32 %v403, %v306
        %v405 = vadd.f32 %v404, %v321
        %v406 = vadd.f32 %v405, %v322
        %v407 = vadd.f32 %v406, %v337
        %v408 = vadd.f32 %v407, %v338
        %409 = vadd.xlane.f32.xlu0 %v408
        %v410 = vpop.xlane.xlu0 %409
        %vm411 = vcmask 7168
        %412 = vst.msk [vmem:[%s138] sm:$0xff] %vm411, %v211
        %413 = vst.msk [vmem:[%s138 + $0x8] sm:$0xff] %vm411, %v220
        %414 = vst.msk [vmem:[%s138 + $0x10] sm:$0xff] %vm411, %v229
        %415 = vst.msk [vmem:[%s138 + $0x18] sm:$0xff] %vm411, %v238
        %416 = vst.msk [vmem:[%s138 + $0x20] sm:$0xff] %vm411, %v247
        %417 = vst.msk [vmem:[%s138 + $0x28] sm:$0xff] %vm411, %v256
        %418 = vst.msk [vmem:[%s138 + $0x30] sm:$0xff] %vm411, %v265
        %419 = vst.msk [vmem:[%s138 + $0x38] sm:$0xff] %vm411, %v274
        %vm420 = vcmask 15368
        %421 = vst.msk [vmem:[%s138] sm:$0xff] %vm420, %v347
        %422 = vst.msk [vmem:[%s138 + $0x8] sm:$0xff] %vm420, %v356
        %423 = vst.msk [vmem:[%s138 + $0x10] sm:$0xff] %vm420, %v365
        %424 = vst.msk [vmem:[%s138 + $0x18] sm:$0xff] %vm420, %v374
        %425 = vst.msk [vmem:[%s138 + $0x20] sm:$0xff] %vm420, %v383
        %426 = vst.msk [vmem:[%s138 + $0x28] sm:$0xff] %vm420, %v392
        %427 = vst.msk [vmem:[%s138 + $0x30] sm:$0xff] %vm420, %v401
        %428 = vst.msk [vmem:[%s138 + $0x38] sm:$0xff] %vm420, %v410
        %p429 = scmp.lt.s32.totalorder %s15, 1
        %s430 = scalar_select %p429, %s15, 1
        %s431 = smul.addr %s430, 8
        %s432 = smul.addr %s431, 8
        %s433 = scalar_lea.vmem %s1, %s432
        // Predicated region
        $region29: #{mlp_mixer_layer.3} parent=23 // pred_check
          %p434 = pneg %p59
        $region30: #{mlp_mixer_layer.3} parent=23 // pred_check_branch
          %436 = sbr.rel (%p434) target = $region32
        $region31: #{mlp_mixer_layer.3} parent=23 // pred_region
          _
        $region32: #{mlp_mixer_layer.3} parent=23 // pred_fallthru
          _
      $region24: #{mlp_mixer_layer.3} parent=5 // pred_fallthru
        _
      %p437 = scmp.le.s32.totalorder 2, %s10
      // Predicated region
      $region33: #{mlp_mixer_layer.3} parent=5 // pred_check
        %p438 = pneg %p437
      $region34: #{mlp_mixer_layer.3} parent=5 // pred_check_branch
        %440 = sbr.rel (%p438) target = $region36
      $region35: #{mlp_mixer_layer.3} parent=5 // pred_region
        %s441 = ssub.s32 %s10, 2
        // Predicated region
        $region37: #{mlp_mixer_layer.3} parent=35 // pred_check
          %p442 = pneg %p65
        $region38: #{mlp_mixer_layer.3} parent=35 // pred_check_branch
          %444 = sbr.rel (%p442) target = $region40
        $region39: #{mlp_mixer_layer.3} parent=35 // pred_region
          %p445 = scmp.lt.s32.totalorder %s16, 1
          %s446 = scalar_select %p445, %s16, 1
          %s447 = smul.addr %s446, 8
          %s448 = smul.addr %s447, 8
          %s449 = scalar_lea.vmem %s1, %s448
        $region40: #{mlp_mixer_layer.3} parent=35 // pred_fallthru
          _
      $region36: #{mlp_mixer_layer.3} parent=5 // pred_fallthru
        _
    $region6: #{mlp_mixer_layer.3} parent=1 // loop_footer
      %s14 = sadd.s32 1, %s10
    $region7: #{mlp_mixer_layer.3} parent=1 // loop_footer_branch
      %9 = sbr.rel target = $region3
    $region8: #{mlp_mixer_layer.3} parent=1 // loop_exit
      _
    %450 = vsyncpa [#allocation3], 1
    %s451 = scalar_lea.sflag [#allocation3], 1
    %452 = vsyncpa %s451, 1

// kernel: mlp_mixer_layer.5
$region0: #{mlp_mixer_layer.5}
  #allocation0 [shape = 'u32[]', space=smem, size = 0x4, offset = 0x4, fixed_abs, tag = 'smem constant byte address 0x4 - core index']
  #allocation1 [shape = 'u32[144,128]{1,0:T(1,128)}', space=vmem, size = 0x12000, scoped, tag = 'internal scratch']
  %s0 = inlined_call_operand.vmem [shape: f32[8,64,256], index: 0, kind: input, shape index: {}]
  %s1 = inlined_call_operand.vmem [shape: f32[64,1], index: 1, kind: input, shape index: {}]
  %s2 = inlined_call_operand.vmem [shape: f32[64,1], index: 2, kind: input, shape index: {}]
  %s3 = inlined_call_operand.vmem [shape: f32[256,64], index: 3, kind: input, shape index: {}]
  %s4 = inlined_call_operand.vmem [shape: f32[1,64], index: 4, kind: input, shape index: {}]
  %s5 = inlined_call_operand.vmem [shape: f32[64,256], index: 5, kind: input, shape index: {}]
  %s6 = inlined_call_operand.vmem [shape: f32[1,256], index: 6, kind: input, shape index: {}]
  %s7 = inlined_call_operand.hbm [shape: f32[8,64,256], index: 7, kind: output, shape index: {}]
  %s8 = sld [smem:[#allocation0]]
  $region61: #{mlp_mixer_layer.5} parent=0
    _
  %s10 = ssub.s32 1, %s8
  %s11 = scalar_select 0, %s10, %s8
  $region1: #{mlp_mixer_layer.5} parent=0
    #allocation2 [shape = 'u8[524288]{0}', space=vmem, size = 0x80000, scoped, tag = 'output window, operand 0']
    #allocation3 [shape = 's32[2]{0}', space=sflag, size = 0x8, scoped, tag = 'scoped memory for mlp_mixer_layer.5']
    %12 = vsyncpa [#allocation3], 0
    %s13 = scalar_lea.sflag [#allocation3], 1
    %14 = vsyncpa %s13, 0
    loop: start=0, step=1, limit=4
    $region2: #{mlp_mixer_layer.5} parent=1 // loop_pre_header
      _
    $region3: #{mlp_mixer_layer.5} parent=1 // loop_header
      %s16 = sphi 0, %s20
      %p17 = scmp.ge.s32.totalorder %s16, 4
      %s26 = sphi 0, %s28
      %s29 = sphi 0, %s26
      %s30 = sphi 0, %s29
      %s46 = sphi 0, %s30
      %s50 = sphi 0, %s50
      %s52 = sphi 0, %s50
      %s53 = sphi 0, %s52
      %s67 = sphi 0, %s53
      %s71 = sphi 0, %s71
      %s73 = sphi 0, %s71
      %s74 = sphi 0, %s73
      %s88 = sphi 0, %s74
      %s92 = sphi 0, %s92
      %s94 = sphi 0, %s92
      %s95 = sphi 0, %s94
      %s109 = sphi 0, %s95
      %s113 = sphi 0, %s113
      %s115 = sphi 0, %s113
      %s116 = sphi 0, %s115
      %s130 = sphi 0, %s116
      %s134 = sphi 0, %s134
      %s136 = sphi 0, %s134
      %s137 = sphi 0, %s136
      %s151 = sphi 0, %s137
      %s155 = sphi 0, %s155
      %s157 = sphi 0, %s155
      %s158 = sphi 0, %s157
      %s172 = sphi 0, %s158
      %s178 = sphi 0, %s180
      %s181 = sphi 0, %s178
      %s182 = sphi 0, %s181
      %s198 = sphi 0, %s182
    $region4: #{mlp_mixer_layer.5} parent=1 // loop_header_branch
      %19 = sbr.rel (%p17) target = $region8
    $region5: #{mlp_mixer_layer.5} parent=1 // loop_body
      %s21 = ssub.s32 %s16, 1
      %s22 = ssub.s32 %s16, 2
      %s23 = sadd.s32 %s16, 1
      %s24 = ssub.s32 %s16, %s23
      %p25 = scmp.eq.s32.totalorder %s24, 0
      %s27 = sadd.s32 %s26, 1
      %s28 = scalar_select %p25, %s26, %s27
      %p31 = pneg %p25
      %p32 = scmp.eq.s32.totalorder %s16, 1
      %p33 = por %p31, %p32
      %p34 = scmp.ne.s32.totalorder %s26, %s29
      %p35 = scmp.eq.s32.totalorder %s16, 0
      %p36 = por %p34, %p35
      %p37 = scmp.ne.s32.totalorder %s26, %s29
      %p38 = scmp.eq.s32.totalorder %s21, 1
      %p39 = por %p37, %p38
      %p40 = scmp.ne.s32.totalorder %s29, %s30
      %p41 = scmp.eq.s32.totalorder %s21, 0
      %p42 = por %p40, %p41
      %p43 = scmp.ne.s32.totalorder %s29, %s30
      %p44 = scmp.eq.s32.totalorder %s22, 1
      %p45 = por %p43, %p44
      %p47 = scmp.ne.s32.totalorder %s30, %s46
      %p48 = scmp.eq.s32.totalorder %s22, 0
      %p49 = por %p47, %p48
      %s51 = sadd.s32 %s50, 1
      %p54 = scmp.eq.s32.totalorder %s16, 1
      %p55 = scmp.ne.s32.totalorder %s50, %s52
      %p56 = scmp.eq.s32.totalorder %s16, 0
      %p57 = por %p55, %p56
      %p58 = scmp.ne.s32.totalorder %s50, %s52
      %p59 = scmp.eq.s32.totalorder %s21, 1
      %p60 = por %p58, %p59
      %p61 = scmp.ne.s32.totalorder %s52, %s53
      %p62 = scmp.eq.s32.totalorder %s21, 0
      %p63 = por %p61, %p62
      %p64 = scmp.ne.s32.totalorder %s52, %s53
      %p65 = scmp.eq.s32.totalorder %s22, 1
      %p66 = por %p64, %p65
      %p68 = scmp.ne.s32.totalorder %s53, %s67
      %p69 = scmp.eq.s32.totalorder %s22, 0
      %p70 = por %p68, %p69
      %s72 = sadd.s32 %s71, 1
      %p75 = scmp.eq.s32.totalorder %s16, 1
      %p76 = scmp.ne.s32.totalorder %s71, %s73
      %p77 = scmp.eq.s32.totalorder %s16, 0
      %p78 = por %p76, %p77
      %p79 = scmp.ne.s32.totalorder %s71, %s73
      %p80 = scmp.eq.s32.totalorder %s21, 1
      %p81 = por %p79, %p80
      %p82 = scmp.ne.s32.totalorder %s73, %s74
      %p83 = scmp.eq.s32.totalorder %s21, 0
      %p84 = por %p82, %p83
      %p85 = scmp.ne.s32.totalorder %s73, %s74
      %p86 = scmp.eq.s32.totalorder %s22, 1
      %p87 = por %p85, %p86
      %p89 = scmp.ne.s32.totalorder %s74, %s88
      %p90 = scmp.eq.s32.totalorder %s22, 0
      %p91 = por %p89, %p90
      %s93 = sadd.s32 %s92, 1
      %p96 = scmp.eq.s32.totalorder %s16, 1
      %p97 = scmp.ne.s32.totalorder %s92, %s94
      %p98 = scmp.eq.s32.totalorder %s16, 0
      %p99 = por %p97, %p98
      %p100 = scmp.ne.s32.totalorder %s92, %s94
      %p101 = scmp.eq.s32.totalorder %s21, 1
      %p102 = por %p100, %p101
      %p103 = scmp.ne.s32.totalorder %s94, %s95
      %p104 = scmp.eq.s32.totalorder %s21, 0
      %p105 = por %p103, %p104
      %p106 = scmp.ne.s32.totalorder %s94, %s95
      %p107 = scmp.eq.s32.totalorder %s22, 1
      %p108 = por %p106, %p107
      %p110 = scmp.ne.s32.totalorder %s95, %s109
      %p111 = scmp.eq.s32.totalorder %s22, 0
      %p112 = por %p110, %p111
      %s114 = sadd.s32 %s113, 1
      %p117 = scmp.eq.s32.totalorder %s16, 1
      %p118 = scmp.ne.s32.totalorder %s113, %s115
      %p119 = scmp.eq.s32.totalorder %s16, 0
      %p120 = por %p118, %p119
      %p121 = scmp.ne.s32.totalorder %s113, %s115
      %p122 = scmp.eq.s32.totalorder %s21, 1
      %p123 = por %p121, %p122
      %p124 = scmp.ne.s32.totalorder %s115, %s116
      %p125 = scmp.eq.s32.totalorder %s21, 0
      %p126 = por %p124, %p125
      %p127 = scmp.ne.s32.totalorder %s115, %s116
      %p128 = scmp.eq.s32.totalorder %s22, 1
      %p129 = por %p127, %p128
      %p131 = scmp.ne.s32.totalorder %s116, %s130
      %p132 = scmp.eq.s32.totalorder %s22, 0
      %p133 = por %p131, %p132
      %s135 = sadd.s32 %s134, 1
      %p138 = scmp.eq.s32.totalorder %s16, 1
      %p139 = scmp.ne.s32.totalorder %s134, %s136
      %p140 = scmp.eq.s32.totalorder %s16, 0
      %p141 = por %p139, %p140
      %p142 = scmp.ne.s32.totalorder %s134, %s136
      %p143 = scmp.eq.s32.totalorder %s21, 1
      %p144 = por %p142, %p143
      %p145 = scmp.ne.s32.totalorder %s136, %s137
      %p146 = scmp.eq.s32.totalorder %s21, 0
      %p147 = por %p145, %p146
      %p148 = scmp.ne.s32.totalorder %s136, %s137
      %p149 = scmp.eq.s32.totalorder %s22, 1
      %p150 = por %p148, %p149
      %p152 = scmp.ne.s32.totalorder %s137, %s151
      %p153 = scmp.eq.s32.totalorder %s22, 0
      %p154 = por %p152, %p153
      %s156 = sadd.s32 %s155, 1
      %p159 = scmp.eq.s32.totalorder %s16, 1
      %p160 = scmp.ne.s32.totalorder %s155, %s157
      %p161 = scmp.eq.s32.totalorder %s16, 0
      %p162 = por %p160, %p161
      %p163 = scmp.ne.s32.totalorder %s155, %s157
      %p164 = scmp.eq.s32.totalorder %s21, 1
      %p165 = por %p163, %p164
      %p166 = scmp.ne.s32.totalorder %s157, %s158
      %p167 = scmp.eq.s32.totalorder %s21, 0
      %p168 = por %p166, %p167
      %p169 = scmp.ne.s32.totalorder %s157, %s158
      %p170 = scmp.eq.s32.totalorder %s22, 1
      %p171 = por %p169, %p170
      %p173 = scmp.ne.s32.totalorder %s158, %s172
      %p174 = scmp.eq.s32.totalorder %s22, 0
      %p175 = por %p173, %p174
      %s176 = ssub.s32 %s16, %s23
      %p177 = scmp.eq.s32.totalorder %s176, 0
      %s179 = sadd.s32 %s178, 1
      %s180 = scalar_select %p177, %s178, %s179
      %p183 = pneg %p177
      %p184 = scmp.eq.s32.totalorder %s16, 1
      %p185 = por %p183, %p184
      %p186 = scmp.ne.s32.totalorder %s178, %s181
      %p187 = scmp.eq.s32.totalorder %s16, 0
      %p188 = por %p186, %p187
      %p189 = scmp.ne.s32.totalorder %s178, %s181
      %p190 = scmp.eq.s32.totalorder %s21, 1
      %p191 = por %p189, %p190
      %p192 = scmp.ne.s32.totalorder %s181, %s182
      %p193 = scmp.eq.s32.totalorder %s21, 0
      %p194 = por %p192, %p193
      %p195 = scmp.ne.s32.totalorder %s181, %s182
      %p196 = scmp.eq.s32.totalorder %s22, 1
      %p197 = por %p195, %p196
      %p199 = scmp.ne.s32.totalorder %s182, %s198
      %p200 = scmp.eq.s32.totalorder %s22, 0
      %p201 = por %p199, %p200
      %p202 = scmp.le.s32.totalorder 1, %s16
      %p203 = scmp.lt.s32.totalorder %s16, 3
      %p204 = pnand %p202, %p203
      %p205 = pneg %p204
      // Predicated region
      $region9: #{mlp_mixer_layer.5} parent=5 // pred_check
        _
      $region10: #{mlp_mixer_layer.5} parent=5 // pred_check_branch
        %207 = sbr.rel (%p204) target = $region12
      $region11: #{mlp_mixer_layer.5} parent=5 // pred_region
        %s208 = ssub.s32 %s16, 1
        // Predicated region
        $region13: #{mlp_mixer_layer.5} parent=11 // pred_check
          %p209 = pneg %p63
        $region14: #{mlp_mixer_layer.5} parent=11 // pred_check_branch
          %211 = sbr.rel (%p209) target = $region16
        $region15: #{mlp_mixer_layer.5} parent=11 // pred_region
          _
        $region16: #{mlp_mixer_layer.5} parent=11 // pred_fallthru
          _
        // Predicated region
        $region17: #{mlp_mixer_layer.5} parent=11 // pred_check
          %p212 = pneg %p84
        $region18: #{mlp_mixer_layer.5} parent=11 // pred_check_branch
          %214 = sbr.rel (%p212) target = $region20
        $region19: #{mlp_mixer_layer.5} parent=11 // pred_region
          _
        $region20: #{mlp_mixer_layer.5} parent=11 // pred_fallthru
          _
        // Predicated region
        $region21: #{mlp_mixer_layer.5} parent=11 // pred_check
          %p215 = pneg %p105
        $region22: #{mlp_mixer_layer.5} parent=11 // pred_check_branch
          %217 = sbr.rel (%p215) target = $region24
        $region23: #{mlp_mixer_layer.5} parent=11 // pred_region
          _
        $region24: #{mlp_mixer_layer.5} parent=11 // pred_fallthru
          _
        // Predicated region
        $region25: #{mlp_mixer_layer.5} parent=11 // pred_check
          %p218 = pneg %p126
        $region26: #{mlp_mixer_layer.5} parent=11 // pred_check_branch
          %220 = sbr.rel (%p218) target = $region28
        $region27: #{mlp_mixer_layer.5} parent=11 // pred_region
          _
        $region28: #{mlp_mixer_layer.5} parent=11 // pred_fallthru
          _
        // Predicated region
        $region29: #{mlp_mixer_layer.5} parent=11 // pred_check
          %p221 = pneg %p147
        $region30: #{mlp_mixer_layer.5} parent=11 // pred_check_branch
          %223 = sbr.rel (%p221) target = $region32
        $region31: #{mlp_mixer_layer.5} parent=11 // pred_region
          _
        $region32: #{mlp_mixer_layer.5} parent=11 // pred_fallthru
          _
        // Predicated region
        $region33: #{mlp_mixer_layer.5} parent=11 // pred_check
          %p224 = pneg %p168
        $region34: #{mlp_mixer_layer.5} parent=11 // pred_check_branch
          %226 = sbr.rel (%p224) target = $region36
        $region35: #{mlp_mixer_layer.5} parent=11 // pred_region
          _
        $region36: #{mlp_mixer_layer.5} parent=11 // pred_fallthru
          _
      $region12: #{mlp_mixer_layer.5} parent=5 // pred_fallthru
        _
      %p227 = scmp.lt.s32.totalorder %s16, 2
      // Predicated region
      $region37: #{mlp_mixer_layer.5} parent=5 // pred_check
        %p228 = pneg %p227
      $region38: #{mlp_mixer_layer.5} parent=5 // pred_check_branch
        %230 = sbr.rel (%p228) target = $region40
      $region39: #{mlp_mixer_layer.5} parent=5 // pred_region
        // Predicated region
        $region41: #{mlp_mixer_layer.5} parent=39 // pred_check
          %p231 = pneg %p36
        $region42: #{mlp_mixer_layer.5} parent=39 // pred_check_branch
          %233 = sbr.rel (%p231) target = $region44
        $region43: #{mlp_mixer_layer.5} parent=39 // pred_region
          %s234 = smul.u32 4, %s16
          %p235 = scmp.lt.s32.totalorder %s234, 7
          %s236 = scalar_select %p235, %s234, 7
          %s237 = smul.addr %s236, 16
          %s238 = smul.addr %s237, 8
          %s239 = scalar_lea.vmem %s0, %s238
          %s240 = smul.u32 4, %s16
        $region44: #{mlp_mixer_layer.5} parent=39 // pred_fallthru
          _
      $region40: #{mlp_mixer_layer.5} parent=5 // pred_fallthru
        _
      %p241 = scmp.le.s32.totalorder 1, %s16
      %p242 = scmp.lt.s32.totalorder %s16, 3
      %p243 = pnand %p241, %p242
      %p244 = pneg %p243
      // Predicated region
      $region45: #{mlp_mixer_layer.5} parent=5 // pred_check
        _
      $region46: #{mlp_mixer_layer.5} parent=5 // pred_check_branch
        %246 = sbr.rel (%p243) target = $region48
      $region47: #{mlp_mixer_layer.5} parent=5 // pred_region
        %s247 = ssub.s32 %s16, 1
        %s248 = smul.u32 4, %s21
        %p249 = scmp.lt.s32.totalorder %s248, 7
        %s250 = scalar_select %p249, %s248, 7
        %s251 = smul.addr %s250, 16
        %s252 = smul.addr %s251, 8
        %s253 = scalar_lea.vmem %s0, %s252
        %p254 = pneg %p42
        %p255 = pneg %p39
        %p256 = pneg %p63
        %p257 = pneg %p60
        %p258 = pneg %p84
        %p259 = pneg %p81
        %p260 = pneg %p105
        %p261 = pneg %p102
        %p262 = pneg %p126
        %p263 = pneg %p123
        %p264 = pneg %p147
        %p265 = pneg %p144
        %p266 = pneg %p168
        %p267 = pneg %p165
        %p268 = pneg %p194
        %p269 = pneg %p191
        %s270 = sand.u32 %s181, 1
        %s271 = scalar_lea.sflag [#allocation3], %s270
        %s272 = sand.u32 %s181, 1
        %s273 = smul.addr %s272, 512
        %s274 = scalar_lea.vmem [#allocation2], %s273
        %s275 = smul.u32 4, %s21
        %p276 = scmp.lt.s32.totalorder %s275, 7
        %s277 = scalar_select %p276, %s275, 7
        %s278 = smul.addr %s277, 16
        %s279 = smul.addr %s278, 8
        %s280 = scalar_lea.vmem %s0, %s279
        %s281 = smul.u32 4, %s21
        %s282 = smul.u32 4, %s21
        %v283 = vld [vmem:[%s280] sm:$0xff]
        %v284 = vld [vmem:[%s280 + $0x8] sm:$0xff]
        %v285 = vld [vmem:[%s280 + $0x10] sm:$0xff]
        %v286 = vld [vmem:[%s280 + $0x18] sm:$0xff]
        %v287 = vld [vmem:[%s280 + $0x20] sm:$0xff]
        %v288 = vld [vmem:[%s280 + $0x28] sm:$0xff]
        %v289 = vld [vmem:[%s280 + $0x30] sm:$0xff]
        %v290 = vld [vmem:[%s280 + $0x38] sm:$0xff]
        %v291 = vld [vmem:[%s280 + $0x40] sm:$0xff]
        %v292 = vld [vmem:[%s280 + $0x48] sm:$0xff]
        %v293 = vld [vmem:[%s280 + $0x50] sm:$0xff]
        %v294 = vld [vmem:[%s280 + $0x58] sm:$0xff]
        %v295 = vld [vmem:[%s280 + $0x60] sm:$0xff]
        %v296 = vld [vmem:[%s280 + $0x68] sm:$0xff]
        %v297 = vld [vmem:[%s280 + $0x70] sm:$0xff]
        %v298 = vld [vmem:[%s280 + $0x78] sm:$0xff]
        %v299 = vld [vmem:[%s280 + $0x80] sm:$0xff]
        %v300 = vld [vmem:[%s280 + $0x88] sm:$0xff]
        %v301 = vld [vmem:[%s280 + $0x90] sm:$0xff]
        %v302 = vld [vmem:[%s280 + $0x98] sm:$0xff]
        %v303 = vld [vmem:[%s280 + $0xa0] sm:$0xff]
        %v304 = vld [vmem:[%s280 + $0xa8] sm:$0xff]
        %v305 = vld [vmem:[%s280 + $0xb0] sm:$0xff]
        %v306 = vld [vmem:[%s280 + $0xb8] sm:$0xff]
        %v307 = vld [vmem:[%s280 + $0xc0] sm:$0xff]
        %v308 = vld [vmem:[%s280 + $0xc8] sm:$0xff]
        %v309 = vld [vmem:[%s280 + $0xd0] sm:$0xff]
        %v310 = vld [vmem:[%s280 + $0xd8] sm:$0xff]
        %v311 = vld [vmem:[%s280 + $0xe0] sm:$0xff]
        %v312 = vld [vmem:[%s280 + $0xe8] sm:$0xff]
        %v313 = vld [vmem:[%s280 + $0xf0] sm:$0xff]
        %v314 = vld [vmem:[%s280 + $0xf8] sm:$0xff]
        %v315 = vld [vmem:[%s280 + $0x100] sm:$0xff]
        %v316 = vld [vmem:[%s280 + $0x108] sm:$0xff]
        %v317 = vld [vmem:[%s280 + $0x110] sm:$0xff]
        %v318 = vld [vmem:[%s280 + $0x118] sm:$0xff]
        %v319 = vld [vmem:[%s280 + $0x120] sm:$0xff]
        %v320 = vld [vmem:[%s280 + $0x128] sm:$0xff]
        %v321 = vld [vmem:[%s280 + $0x130] sm:$0xff]
        %v322 = vld [vmem:[%s280 + $0x138] sm:$0xff]
        %v323 = vld [vmem:[%s280 + $0x140] sm:$0xff]
        %v324 = vld [vmem:[%s280 + $0x148] sm:$0xff]
        %v325 = vld [vmem:[%s280 + $0x150] sm:$0xff]
        %v326 = vld [vmem:[%s280 + $0x158] sm:$0xff]
        %v327 = vld [vmem:[%s280 + $0x160] sm:$0xff]
        %v328 = vld [vmem:[%s280 + $0x168] sm:$0xff]
        %v329 = vld [vmem:[%s280 + $0x170] sm:$0xff]
        %v330 = vld [vmem:[%s280 + $0x178] sm:$0xff]
        %v331 = vld [vmem:[%s280 + $0x180] sm:$0xff]
        %v332 = vld [vmem:[%s280 + $0x188] sm:$0xff]
        %v333 = vld [vmem:[%s280 + $0x190] sm:$0xff]
        %v334 = vld [vmem:[%s280 + $0x198] sm:$0xff]
        %v335 = vld [vmem:[%s280 + $0x1a0] sm:$0xff]
        %v336 = vld [vmem:[%s280 + $0x1a8] sm:$0xff]
        %v337 = vld [vmem:[%s280 + $0x1b0] sm:$0xff]
        %v338 = vld [vmem:[%s280 + $0x1b8] sm:$0xff]
        %v339 = vld [vmem:[%s280 + $0x1c0] sm:$0xff]
        %v340 = vld [vmem:[%s280 + $0x1c8] sm:$0xff]
        %v341 = vld [vmem:[%s280 + $0x1d0] sm:$0xff]
        %v342 = vld [vmem:[%s280 + $0x1d8] sm:$0xff]
        %v343 = vld [vmem:[%s280 + $0x1e0] sm:$0xff]
        %v344 = vld [vmem:[%s280 + $0x1e8] sm:$0xff]
        %v345 = vld [vmem:[%s280 + $0x1f0] sm:$0xff]
        %v346 = vld [vmem:[%s280 + $0x1f8] sm:$0xff]
        %v347 = vld [vmem:[%s1] sm:$0xff]
        %v348 = vld [vmem:[%s1 + $0x8] sm:$0xff]
        %v349 = vld [vmem:[%s1 + $0x10] sm:$0xff]
        %v350 = vld [vmem:[%s1 + $0x18] sm:$0xff]
        %v351 = vld [vmem:[%s1 + $0x20] sm:$0xff]
        %v352 = vld [vmem:[%s1 + $0x28] sm:$0xff]
        %v353 = vld [vmem:[%s1 + $0x30] sm:$0xff]
        %v354 = vld [vmem:[%s1 + $0x38] sm:$0xff]
        %v355 = vld [vmem:[%s2] sm:$0xff]
        %v356 = vld [vmem:[%s2 + $0x8] sm:$0xff]
        %v357 = vld [vmem:[%s2 + $0x10] sm:$0xff]
        %v358 = vld [vmem:[%s2 + $0x18] sm:$0xff]
        %v359 = vld [vmem:[%s2 + $0x20] sm:$0xff]
        %v360 = vld [vmem:[%s2 + $0x28] sm:$0xff]
        %v361 = vld [vmem:[%s2 + $0x30] sm:$0xff]
        %v362 = vld [vmem:[%s2 + $0x38] sm:$0xff]
        %364 = vset.pattern.permute.xlu0 0
        %365 = vperm.xlu0 %364, %v347
        %v366 = vpop.permute.xlu0 %365
        %369 = vset.pattern.permute.xlu0 0
        %370 = vperm.xlu0 %369, %v348
        %v371 = vpop.permute.xlu0 %370
        %374 = vset.pattern.permute.xlu0 0
        %375 = vperm.xlu0 %374, %v349
        %v376 = vpop.permute.xlu0 %375
        %379 = vset.pattern.permute.xlu0 0
        %380 = vperm.xlu0 %379, %v350
        %v381 = vpop.permute.xlu0 %380
        %384 = vset.pattern.permute.xlu0 0
        %385 = vperm.xlu0 %384, %v351
        %v386 = vpop.permute.xlu0 %385
        %389 = vset.pattern.permute.xlu0 0
        %390 = vperm.xlu0 %389, %v352
        %v391 = vpop.permute.xlu0 %390
        %394 = vset.pattern.permute.xlu0 0
        %395 = vperm.xlu0 %394, %v353
        %v396 = vpop.permute.xlu0 %395
        %399 = vset.pattern.permute.xlu0 0
        %400 = vperm.xlu0 %399, %v354
        %v401 = vpop.permute.xlu0 %400
        %v403 = vmul.f32 %v283, %v366
        %v404 = vmul.f32 %v284, %v366
        %v405 = vmul.f32 %v285, %v371
        %v406 = vmul.f32 %v286, %v371
        %v407 = vmul.f32 %v287, %v376
        %v408 = vmul.f32 %v288, %v376
        %v409 = vmul.f32 %v289, %v381
        %v410 = vmul.f32 %v290, %v381
        %v411 = vmul.f32 %v291, %v386
        %v412 = vmul.f32 %v292, %v386
        %v413 = vmul.f32 %v293, %v391
        %v414 = vmul.f32 %v294, %v391
        %v415 = vmul.f32 %v295, %v396
        %v416 = vmul.f32 %v296, %v396
        %v417 = vmul.f32 %v297, %v401
        %v418 = vmul.f32 %v298, %v401
        %v419 = vmul.f32 %v299, %v366
        %v420 = vmul.f32 %v300, %v366
        %v421 = vmul.f32 %v301, %v371
        %v422 = vmul.f32 %v302, %v371
        %v423 = vmul.f32 %v303, %v376
        %v424 = vmul.f32 %v304, %v376
        %v425 = vmul.f32 %v305, %v381
        %v426 = vmul.f32 %v306, %v381
        %v427 = vmul.f32 %v307, %v386
        %v428 = vmul.f32 %v308, %v386
        %v429 = vmul.f32 %v309, %v391
        %v430 = vmul.f32 %v310, %v391
        %v431 = vmul.f32 %v311, %v396
        %v432 = vmul.f32 %v312, %v396
        %v433 = vmul.f32 %v313, %v401
        %v434 = vmul.f32 %v314, %v401
        %v435 = vmul.f32 %v315, %v366
        %v436 = vmul.f32 %v316, %v366
        %v437 = vmul.f32 %v317, %v371
        %v438 = vmul.f32 %v318, %v371
        %v439 = vmul.f32 %v319, %v376
        %v440 = vmul.f32 %v320, %v376
        %v441 = vmul.f32 %v321, %v381
        %v442 = vmul.f32 %v322, %v381
        %v443 = vmul.f32 %v323, %v386
        %v444 = vmul.f32 %v324, %v386
        %v445 = vmul.f32 %v325, %v391
        %v446 = vmul.f32 %v326, %v391
        %v447 = vmul.f32 %v327, %v396
        %v448 = vmul.f32 %v328, %v396
        %v449 = vmul.f32 %v329, %v401
        %v450 = vmul.f32 %v330, %v401
        %v451 = vmul.f32 %v331, %v366
        %v452 = vmul.f32 %v332, %v366
        %v453 = vmul.f32 %v333, %v371
        %v454 = vmul.f32 %v334, %v371
        %v455 = vmul.f32 %v335, %v376
        %v456 = vmul.f32 %v336, %v376
        %v457 = vmul.f32 %v337, %v381
        %v458 = vmul.f32 %v338, %v381
        %v459 = vmul.f32 %v339, %v386
        %v460 = vmul.f32 %v340, %v386
        %v461 = vmul.f32 %v341, %v391
        %v462 = vmul.f32 %v342, %v391
        %v463 = vmul.f32 %v343, %v396
        %v464 = vmul.f32 %v344, %v396
        %v465 = vmul.f32 %v345, %v401
        %v466 = vmul.f32 %v346, %v401
        %468 = vset.pattern.permute.xlu0 0
        %469 = vperm.xlu0 %468, %v355
        %v470 = vpop.permute.xlu0 %469
        %473 = vset.pattern.permute.xlu0 0
        %474 = vperm.xlu0 %473, %v356
        %v475 = vpop.permute.xlu0 %474
        %478 = vset.pattern.permute.xlu0 0
        %479 = vperm.xlu0 %478, %v357
        %v480 = vpop.permute.xlu0 %479
        %483 = vset.pattern.permute.xlu0 0
        %484 = vperm.xlu0 %483, %v358
        %v485 = vpop.permute.xlu0 %484
        %488 = vset.pattern.permute.xlu0 0
        %489 = vperm.xlu0 %488, %v359
        %v490 = vpop.permute.xlu0 %489
        %493 = vset.pattern.permute.xlu0 0
        %494 = vperm.xlu0 %493, %v360
        %v495 = vpop.permute.xlu0 %494
        %498 = vset.pattern.permute.xlu0 0
        %499 = vperm.xlu0 %498, %v361
        %v500 = vpop.permute.xlu0 %499
        %503 = vset.pattern.permute.xlu0 0
        %504 = vperm.xlu0 %503, %v362
        %v505 = vpop.permute.xlu0 %504
        %v507 = vadd.f32 %v403, %v470
        %v508 = vadd.f32 %v404, %v470
        %v509 = vadd.f32 %v405, %v475
        %v510 = vadd.f32 %v406, %v475
        %v511 = vadd.f32 %v407, %v480
        %v512 = vadd.f32 %v408, %v480
        %v513 = vadd.f32 %v409, %v485
        %v514 = vadd.f32 %v410, %v485
        %v515 = vadd.f32 %v411, %v490
        %v516 = vadd.f32 %v412, %v490
        %v517 = vadd.f32 %v413, %v495
        %v518 = vadd.f32 %v414, %v495
        %v519 = vadd.f32 %v415, %v500
        %v520 = vadd.f32 %v416, %v500
        %v521 = vadd.f32 %v417, %v505
        %v522 = vadd.f32 %v418, %v505
        %v523 = vadd.f32 %v419, %v470
        %v524 = vadd.f32 %v420, %v470
        %v525 = vadd.f32 %v421, %v475
        %v526 = vadd.f32 %v422, %v475
        %v527 = vadd.f32 %v423, %v480
        %v528 = vadd.f32 %v424, %v480
        %v529 = vadd.f32 %v425, %v485
        %v530 = vadd.f32 %v426, %v485
        %v531 = vadd.f32 %v427, %v490
        %v532 = vadd.f32 %v428, %v490
        %v533 = vadd.f32 %v429, %v495
        %v534 = vadd.f32 %v430, %v495
        %v535 = vadd.f32 %v431, %v500
        %v536 = vadd.f32 %v432, %v500
        %v537 = vadd.f32 %v433, %v505
        %v538 = vadd.f32 %v434, %v505
        %v539 = vadd.f32 %v435, %v470
        %v540 = vadd.f32 %v436, %v470
        %v541 = vadd.f32 %v437, %v475
        %v542 = vadd.f32 %v438, %v475
        %v543 = vadd.f32 %v439, %v480
        %v544 = vadd.f32 %v440, %v480
        %v545 = vadd.f32 %v441, %v485
        %v546 = vadd.f32 %v442, %v485
        %v547 = vadd.f32 %v443, %v490
        %v548 = vadd.f32 %v444, %v490
        %v549 = vadd.f32 %v445, %v495
        %v550 = vadd.f32 %v446, %v495
        %v551 = vadd.f32 %v447, %v500
        %v552 = vadd.f32 %v448, %v500
        %v553 = vadd.f32 %v449, %v505
        %v554 = vadd.f32 %v450, %v505
        %v555 = vadd.f32 %v451, %v470
        %v556 = vadd.f32 %v452, %v470
        %v557 = vadd.f32 %v453, %v475
        %v558 = vadd.f32 %v454, %v475
        %v559 = vadd.f32 %v455, %v480
        %v560 = vadd.f32 %v456, %v480
        %v561 = vadd.f32 %v457, %v485
        %v562 = vadd.f32 %v458, %v485
        %v563 = vadd.f32 %v459, %v490
        %v564 = vadd.f32 %v460, %v490
        %v565 = vadd.f32 %v461, %v495
        %v566 = vadd.f32 %v462, %v495
        %v567 = vadd.f32 %v463, %v500
        %v568 = vadd.f32 %v464, %v500
        %v569 = vadd.f32 %v465, %v505
        %v570 = vadd.f32 %v466, %v505
        %v571 = vld [vmem:[%s3] sm:$0xff]
        %v572 = vld [vmem:[%s3 + $0x8] sm:$0xff]
        %v573 = vld [vmem:[%s3 + $0x10] sm:$0xff]
        %v574 = vld [vmem:[%s3 + $0x18] sm:$0xff]
        %v575 = vld [vmem:[%s3 + $0x20] sm:$0xff]
        %v576 = vld [vmem:[%s3 + $0x28] sm:$0xff]
        %v577 = vld [vmem:[%s3 + $0x30] sm:$0xff]
        %v578 = vld [vmem:[%s3 + $0x38] sm:$0xff]
        %v579 = vld [vmem:[%s3 + $0x40] sm:$0xff]
        %v580 = vld [vmem:[%s3 + $0x48] sm:$0xff]
        %v581 = vld [vmem:[%s3 + $0x50] sm:$0xff]
        %v582 = vld [vmem:[%s3 + $0x58] sm:$0xff]
        %v583 = vld [vmem:[%s3 + $0x60] sm:$0xff]
        %v584 = vld [vmem:[%s3 + $0x68] sm:$0xff]
        %v585 = vld [vmem:[%s3 + $0x70] sm:$0xff]
        %v586 = vld [vmem:[%s3 + $0x78] sm:$0xff]
        %v587 = vld [vmem:[%s3 + $0x80] sm:$0xff]
        %v588 = vld [vmem:[%s3 + $0x88] sm:$0xff]
        %v589 = vld [vmem:[%s3 + $0x90] sm:$0xff]
        %v590 = vld [vmem:[%s3 + $0x98] sm:$0xff]
        %v591 = vld [vmem:[%s3 + $0xa0] sm:$0xff]
        %v592 = vld [vmem:[%s3 + $0xa8] sm:$0xff]
        %v593 = vld [vmem:[%s3 + $0xb0] sm:$0xff]
        %v594 = vld [vmem:[%s3 + $0xb8] sm:$0xff]
        %v595 = vld [vmem:[%s3 + $0xc0] sm:$0xff]
        %v596 = vld [vmem:[%s3 + $0xc8] sm:$0xff]
        %v597 = vld [vmem:[%s3 + $0xd0] sm:$0xff]
        %v598 = vld [vmem:[%s3 + $0xd8] sm:$0xff]
        %v599 = vld [vmem:[%s3 + $0xe0] sm:$0xff]
        %v600 = vld [vmem:[%s3 + $0xe8] sm:$0xff]
        %v601 = vld [vmem:[%s3 + $0xf0] sm:$0xff]
        %v602 = vld [vmem:[%s3 + $0xf8] sm:$0xff]
        %v603 = vld [vmem:[%s4] sm:$0x1]
        %v605 = vlaneseq
        %v606 = vshrl.u32 %v605, 7
        %v607 = vsub.s32 0, %v606
        %v608 = vrot.slane %v603, %v607
        %610 = vmatprep.subr.mxu0 0.0
        %611 = vmatpush1.msra.mxu0 %v586
        %612 = vmatprep.subr.mxu0 0.0
        %613 = vmatpush1.msra.mxu0 %v585
        %614 = vmatprep.subr.mxu0 0.0
        %615 = vmatpush1.msra.mxu0 %v584
        %616 = vmatprep.subr.mxu0 0.0
        %617 = vmatpush1.msra.mxu0 %v583
        %618 = vmatprep.subr.mxu0 0.0
        %619 = vmatpush1.msra.mxu0 %v582
        %620 = vmatprep.subr.mxu0 0.0
        %621 = vmatpush1.msra.mxu0 %v581
        %622 = vmatprep.subr.mxu0 0.0
        %623 = vmatpush1.msra.mxu0 %v580
        %624 = vmatprep.subr.mxu0 0.0
        %625 = vmatpush1.msra.mxu0 %v579
        %626 = vmatprep.subr.mxu0 0.0
        %627 = vmatpush1.msra.mxu0 %v578
        %628 = vmatprep.subr.mxu0 0.0
        %629 = vmatpush1.msra.mxu0 %v577
        %630 = vmatprep.subr.mxu0 0.0
        %631 = vmatpush1.msra.mxu0 %v576
        %632 = vmatprep.subr.mxu0 0.0
        %633 = vmatpush1.msra.mxu0 %v575
        %634 = vmatprep.subr.mxu0 0.0
        %635 = vmatpush1.msra.mxu0 %v574
        %636 = vmatprep.subr.mxu0 0.0
        %637 = vmatpush1.msra.mxu0 %v573
        %638 = vmatprep.subr.mxu0 0.0
        %639 = vmatpush1.msra.mxu0 %v572
        %640 = vmatprep.subr.mxu0 0.0
        %641 = vmatpush1.msra.mxu0 %v571
        %642 = vmatprep.subr.mxu0 0.0
        %643 = vmatpush2.msra.mxu0 %v602
        %644 = vmatprep.subr.mxu0 0.0
        %645 = vmatpush2.msra.mxu0 %v601
        %646 = vmatprep.subr.mxu0 0.0
        %647 = vmatpush2.msra.mxu0 %v600
        %648 = vmatprep.subr.mxu0 0.0
        %649 = vmatpush2.msra.mxu0 %v599
        %650 = vmatprep.subr.mxu0 0.0
        %651 = vmatpush2.msra.mxu0 %v598
        %652 = vmatprep.subr.mxu0 0.0
        %653 = vmatpush2.msra.mxu0 %v597
        %654 = vmatprep.subr.mxu0 0.0
        %655 = vmatpush2.msra.mxu0 %v596
        %656 = vmatprep.subr.mxu0 0.0
        %657 = vmatpush2.msra.mxu0 %v595
        %658 = vmatprep.subr.mxu0 0.0
        %659 = vmatpush2.msra.mxu0 %v594
        %660 = vmatprep.subr.mxu0 0.0
        %661 = vmatpush2.msra.mxu0 %v593
        %662 = vmatprep.subr.mxu0 0.0
        %663 = vmatpush2.msra.mxu0 %v592
        %664 = vmatprep.subr.mxu0 0.0
        %665 = vmatpush2.msra.mxu0 %v591
        %666 = vmatprep.subr.mxu0 0.0
        %667 = vmatpush2.msra.mxu0 %v590
        %668 = vmatprep.subr.mxu0 0.0
        %669 = vmatpush2.msra.mxu0 %v589
        %670 = vmatprep.subr.mxu0 0.0
        %671 = vmatpush2.msra.mxu0 %v588
        %672 = vmatprep.subr.mxu0 0.0
        %673 = vmatpush2.msra.mxu0 %v587
        %674 = vmatprep.mubr.f32.mxu0 %v508
        %675 = vmatmul.mubr.f32.gmra.mxu0 %v507
        %v676 = vpop.f32.mrf.mxu0
        %v677 = vadd.f32 %v608, %v676
        %v678 = vpop.f32.mrf.mxu0
        %679 = vmatprep.mubr.f32.mxu0 %v510
        %680 = vmatmul.mubr.f32.gmra.mxu0 %v509
        %v681 = vpop.f32.mrf.mxu0
        %v682 = vadd.f32 %v608, %v681
        %v683 = vpop.f32.mrf.mxu0
        %684 = vmatprep.mubr.f32.mxu0 %v512
        %685 = vmatmul.mubr.f32.gmra.mxu0 %v511
        %v686 = vpop.f32.mrf.mxu0
        %v687 = vadd.f32 %v608, %v686
        %v688 = vpop.f32.mrf.mxu0
        %689 = vmatprep.mubr.f32.mxu0 %v514
        %690 = vmatmul.mubr.f32.gmra.mxu0 %v513
        %v691 = vpop.f32.mrf.mxu0
        %v692 = vadd.f32 %v608, %v691
        %v693 = vpop.f32.mrf.mxu0
        %694 = vmatprep.mubr.f32.mxu0 %v516
        %695 = vmatmul.mubr.f32.gmra.mxu0 %v515
        %v696 = vpop.f32.mrf.mxu0
        %v697 = vadd.f32 %v608, %v696
        %v698 = vpop.f32.mrf.mxu0
        %699 = vmatprep.mubr.f32.mxu0 %v518
        %700 = vmatmul.mubr.f32.gmra.mxu0 %v517
        %v701 = vpop.f32.mrf.mxu0
        %v702 = vadd.f32 %v608, %v701
        %v703 = vpop.f32.mrf.mxu0
        %704 = vmatprep.mubr.f32.mxu0 %v520
        %705 = vmatmul.mubr.f32.gmra.mxu0 %v519
        %v706 = vpop.f32.mrf.mxu0
        %v707 = vadd.f32 %v608, %v706
        %v708 = vpop.f32.mrf.mxu0
        %709 = vmatprep.mubr.f32.mxu0 %v522
        %710 = vmatmul.mubr.f32.gmra.mxu0 %v521
        %v711 = vpop.f32.mrf.mxu0
        %v712 = vadd.f32 %v608, %v711
        %v713 = vpop.f32.mrf.mxu0
        %714 = vmatprep.mubr.f32.mxu0 %v524
        %715 = vmatmul.mubr.f32.gmra.mxu0 %v523
        %v716 = vpop.f32.mrf.mxu0
        %v717 = vadd.f32 %v608, %v716
        %v718 = vpop.f32.mrf.mxu0
        %719 = vmatprep.mubr.f32.mxu0 %v526
        %720 = vmatmul.mubr.f32.gmra.mxu0 %v525
        %v721 = vpop.f32.mrf.mxu0
        %v722 = vadd.f32 %v608, %v721
        %v723 = vpop.f32.mrf.mxu0
        %724 = vmatprep.mubr.f32.mxu0 %v528
        %725 = vmatmul.mubr.f32.gmra.mxu0 %v527
        %v726 = vpop.f32.mrf.mxu0
        %v727 = vadd.f32 %v608, %v726
        %v728 = vpop.f32.mrf.mxu0
        %729 = vmatprep.mubr.f32.mxu0 %v530
        %730 = vmatmul.mubr.f32.gmra.mxu0 %v529
        %v731 = vpop.f32.mrf.mxu0
        %v732 = vadd.f32 %v608, %v731
        %v733 = vpop.f32.mrf.mxu0
        %734 = vmatprep.mubr.f32.mxu0 %v532
        %735 = vmatmul.mubr.f32.gmra.mxu0 %v531
        %v736 = vpop.f32.mrf.mxu0
        %v737 = vadd.f32 %v608, %v736
        %v738 = vpop.f32.mrf.mxu0
        %739 = vmatprep.mubr.f32.mxu0 %v534
        %740 = vmatmul.mubr.f32.gmra.mxu0 %v533
        %v741 = vpop.f32.mrf.mxu0
        %v742 = vadd.f32 %v608, %v741
        %v743 = vpop.f32.mrf.mxu0
        %744 = vmatprep.mubr.f32.mxu0 %v536
        %745 = vmatmul.mubr.f32.gmra.mxu0 %v535
        %v746 = vpop.f32.mrf.mxu0
        %v747 = vadd.f32 %v608, %v746
        %v748 = vpop.f32.mrf.mxu0
        %749 = vmatprep.mubr.f32.mxu0 %v538
        %750 = vmatmul.mubr.f32.gmra.mxu0 %v537
        %v751 = vpop.f32.mrf.mxu0
        %v752 = vadd.f32 %v608, %v751
        %v753 = vpop.f32.mrf.mxu0
        %754 = vmatprep.mubr.f32.mxu0 %v540
        %755 = vmatmul.mubr.f32.gmra.mxu0 %v539
        %v756 = vpop.f32.mrf.mxu0
        %v757 = vadd.f32 %v608, %v756
        %v758 = vpop.f32.mrf.mxu0
        %759 = vmatprep.mubr.f32.mxu0 %v542
        %760 = vmatmul.mubr.f32.gmra.mxu0 %v541
        %v761 = vpop.f32.mrf.mxu0
        %v762 = vadd.f32 %v608, %v761
        %v763 = vpop.f32.mrf.mxu0
        %764 = vmatprep.mubr.f32.mxu0 %v544
        %765 = vmatmul.mubr.f32.gmra.mxu0 %v543
        %v766 = vpop.f32.mrf.mxu0
        %v767 = vadd.f32 %v608, %v766
        %v768 = vpop.f32.mrf.mxu0
        %769 = vmatprep.mubr.f32.mxu0 %v546
        %770 = vmatmul.mubr.f32.gmra.mxu0 %v545
        %v771 = vpop.f32.mrf.mxu0
        %v772 = vadd.f32 %v608, %v771
        %v773 = vpop.f32.mrf.mxu0
        %774 = vmatprep.mubr.f32.mxu0 %v548
        %775 = vmatmul.mubr.f32.gmra.mxu0 %v547
        %v776 = vpop.f32.mrf.mxu0
        %v777 = vadd.f32 %v608, %v776
        %v778 = vpop.f32.mrf.mxu0
        %779 = vmatprep.mubr.f32.mxu0 %v550
        %780 = vmatmul.mubr.f32.gmra.mxu0 %v549
        %v781 = vpop.f32.mrf.mxu0
        %v782 = vadd.f32 %v608, %v781
        %v783 = vpop.f32.mrf.mxu0
        %784 = vmatprep.mubr.f32.mxu0 %v552
        %785 = vmatmul.mubr.f32.gmra.mxu0 %v551
        %v786 = vpop.f32.mrf.mxu0
        %v787 = vadd.f32 %v608, %v786
        %v788 = vpop.f32.mrf.mxu0
        %789 = vmatprep.mubr.f32.mxu0 %v554
        %790 = vmatmul.mubr.f32.gmra.mxu0 %v553
        %v791 = vpop.f32.mrf.mxu0
        %v792 = vadd.f32 %v608, %v791
        %v793 = vpop.f32.mrf.mxu0
        %794 = vmatprep.mubr.f32.mxu0 %v556
        %795 = vmatmul.mubr.f32.gmra.mxu0 %v555
        %v796 = vpop.f32.mrf.mxu0
        %v797 = vadd.f32 %v608, %v796
        %v798 = vpop.f32.mrf.mxu0
        %799 = vmatprep.mubr.f32.mxu0 %v558
        %800 = vmatmul.mubr.f32.gmra.mxu0 %v557
        %v801 = vpop.f32.mrf.mxu0
        %v802 = vadd.f32 %v608, %v801
        %v803 = vpop.f32.mrf.mxu0
        %804 = vmatprep.mubr.f32.mxu0 %v560
        %805 = vmatmul.mubr.f32.gmra.mxu0 %v559
        %v806 = vpop.f32.mrf.mxu0
        %v807 = vadd.f32 %v608, %v806
        %v808 = vpop.f32.mrf.mxu0
        %809 = vmatprep.mubr.f32.mxu0 %v562
        %810 = vmatmul.mubr.f32.gmra.mxu0 %v561
        %v811 = vpop.f32.mrf.mxu0
        %v812 = vadd.f32 %v608, %v811
        %v813 = vpop.f32.mrf.mxu0
        %814 = vmatprep.mubr.f32.mxu0 %v564
        %815 = vmatmul.mubr.f32.gmra.mxu0 %v563
        %v816 = vpop.f32.mrf.mxu0
        %v817 = vadd.f32 %v608, %v816
        %v818 = vpop.f32.mrf.mxu0
        %819 = vmatprep.mubr.f32.mxu0 %v566
        %820 = vmatmul.mubr.f32.gmra.mxu0 %v565
        %v821 = vpop.f32.mrf.mxu0
        %v822 = vadd.f32 %v608, %v821
        %v823 = vpop.f32.mrf.mxu0
        %824 = vmatprep.mubr.f32.mxu0 %v568
        %825 = vmatmul.mubr.f32.gmra.mxu0 %v567
        %v826 = vpop.f32.mrf.mxu0
        %v827 = vadd.f32 %v608, %v826
        %v828 = vpop.f32.mrf.mxu0
        %829 = vmatprep.mubr.f32.mxu0 %v570
        %830 = vmatmul.mubr.f32.gmra.mxu0 %v569
        %v831 = vpop.f32.mrf.mxu0
        %v832 = vadd.f32 %v608, %v831
        %v833 = vpop.f32.mrf.mxu0
        %834 = vdwg.mxu0
        %v835 = vmul.f32 %v677, 0.5
        %v836 = vmul.f32 %v682, 0.5
        %v837 = vmul.f32 %v687, 0.5
        %v838 = vmul.f32 %v692, 0.5
        %v839 = vmul.f32 %v697, 0.5
        %v840 = vmul.f32 %v702, 0.5
        %v841 = vmul.f32 %v707, 0.5
        %v842 = vmul.f32 %v712, 0.5
        %v843 = vmul.f32 %v717, 0.5
        %v844 = vmul.f32 %v722, 0.5
        %v845 = vmul.f32 %v727, 0.5
        %v846 = vmul.f32 %v732, 0.5
        %v847 = vmul.f32 %v737, 0.5
        %v848 = vmul.f32 %v742, 0.5
        %v849 = vmul.f32 %v747, 0.5
        %v850 = vmul.f32 %v752, 0.5
        %v851 = vmul.f32 %v757, 0.5
        %v852 = vmul.f32 %v762, 0.5
        %v853 = vmul.f32 %v767, 0.5
        %v854 = vmul.f32 %v772, 0.5
        %v855 = vmul.f32 %v777, 0.5
        %v856 = vmul.f32 %v782, 0.5
        %v857 = vmul.f32 %v787, 0.5
        %v858 = vmul.f32 %v792, 0.5
        %v859 = vmul.f32 %v797, 0.5
        %v860 = vmul.f32 %v802, 0.5
        %v861 = vmul.f32 %v807, 0.5
        %v862 = vmul.f32 %v812, 0.5
        %v863 = vmul.f32 %v817, 0.5
        %v864 = vmul.f32 %v822, 0.5
        %v865 = vmul.f32 %v827, 0.5
        %v866 = vmul.f32 %v832, 0.5
        %v867 = vmul.f32 %v677, 0.70710677
        %v868 = vmul.f32 %v682, 0.70710677
        %v869 = vmul.f32 %v687, 0.70710677
        %v870 = vmul.f32 %v692, 0.70710677
        %v871 = vmul.f32 %v697, 0.70710677
        %v872 = vmul.f32 %v702, 0.70710677
        %v873 = vmul.f32 %v707, 0.70710677
        %v874 = vmul.f32 %v712, 0.70710677
        %v875 = vmul.f32 %v717, 0.70710677
        %v876 = vmul.f32 %v722, 0.70710677
        %v877 = vmul.f32 %v727, 0.70710677
        %v878 = vmul.f32 %v732, 0.70710677
        %v879 = vmul.f32 %v737, 0.70710677
        %v880 = vmul.f32 %v742, 0.70710677
        %v881 = vmul.f32 %v747, 0.70710677
        %v882 = vmul.f32 %v752, 0.70710677
        %v883 = vmul.f32 %v757, 0.70710677
        %v884 = vmul.f32 %v762, 0.70710677
        %v885 = vmul.f32 %v767, 0.70710677
        %v886 = vmul.f32 %v772, 0.70710677
        %v887 = vmul.f32 %v777, 0.70710677
        %v888 = vmul.f32 %v782, 0.70710677
        %v889 = vmul.f32 %v787, 0.70710677
        %v890 = vmul.f32 %v792, 0.70710677
        %v891 = vmul.f32 %v797, 0.70710677
        %v892 = vmul.f32 %v802, 0.70710677
        %v893 = vmul.f32 %v807, 0.70710677
        %v894 = vmul.f32 %v812, 0.70710677
        %v895 = vmul.f32 %v817, 0.70710677
        %v896 = vmul.f32 %v822, 0.70710677
        %v897 = vmul.f32 %v827, 0.70710677
        %v898 = vmul.f32 %v832, 0.70710677
        %v899 = verf.f32.pop %v867
        %v900 = verf.f32.pop %v868
        %v901 = verf.f32.pop %v869
        %v902 = verf.f32.pop %v870
        %v903 = verf.f32.pop %v871
        %v904 = verf.f32.pop %v872
        %v905 = verf.f32.pop %v873
        %v906 = verf.f32.pop %v874
        %v907 = verf.f32.pop %v875
        %v908 = verf.f32.pop %v876
        %v909 = verf.f32.pop %v877
        %v910 = verf.f32.pop %v878
        %v911 = verf.f32.pop %v879
        %v912 = verf.f32.pop %v880
        %v913 = verf.f32.pop %v881
        %v914 = verf.f32.pop %v882
        %v915 = verf.f32.pop %v883
        %v916 = verf.f32.pop %v884
        %v917 = verf.f32.pop %v885
        %v918 = verf.f32.pop %v886
        %v919 = verf.f32.pop %v887
        %v920 = verf.f32.pop %v888
        %v921 = verf.f32.pop %v889
        %v922 = verf.f32.pop %v890
        %v923 = verf.f32.pop %v891
        %v924 = verf.f32.pop %v892
        %v925 = verf.f32.pop %v893
        %v926 = verf.f32.pop %v894
        %v927 = verf.f32.pop %v895
        %v928 = verf.f32.pop %v896
        %v929 = verf.f32.pop %v897
        %v930 = verf.f32.pop %v898
        %v931 = vadd.f32 %v899, 1.0
        %v932 = vadd.f32 %v900, 1.0
        %v933 = vadd.f32 %v901, 1.0
        %v934 = vadd.f32 %v902, 1.0
        %v935 = vadd.f32 %v903, 1.0
        %v936 = vadd.f32 %v904, 1.0
        %v937 = vadd.f32 %v905, 1.0
        %v938 = vadd.f32 %v906, 1.0
        %v939 = vadd.f32 %v907, 1.0
        %v940 = vadd.f32 %v908, 1.0
        %v941 = vadd.f32 %v909, 1.0
        %v942 = vadd.f32 %v910, 1.0
        %v943 = vadd.f32 %v911, 1.0
        %v944 = vadd.f32 %v912, 1.0
        %v945 = vadd.f32 %v913, 1.0
        %v946 = vadd.f32 %v914, 1.0
        %v947 = vadd.f32 %v915, 1.0
        %v948 = vadd.f32 %v916, 1.0
        %v949 = vadd.f32 %v917, 1.0
        %v950 = vadd.f32 %v918, 1.0
        %v951 = vadd.f32 %v919, 1.0
        %v952 = vadd.f32 %v920, 1.0
        %v953 = vadd.f32 %v921, 1.0
        %v954 = vadd.f32 %v922, 1.0
        %v955 = vadd.f32 %v923, 1.0
        %v956 = vadd.f32 %v924, 1.0
        %v957 = vadd.f32 %v925, 1.0
        %v958 = vadd.f32 %v926, 1.0
        %v959 = vadd.f32 %v927, 1.0
        %v960 = vadd.f32 %v928, 1.0
        %v961 = vadd.f32 %v929, 1.0
        %v962 = vadd.f32 %v930, 1.0
        %v963 = vmul.f32 %v835, %v931
        %v964 = vmul.f32 %v836, %v932
        %v965 = vmul.f32 %v837, %v933
        %v966 = vmul.f32 %v838, %v934
        %v967 = vmul.f32 %v839, %v935
        %v968 = vmul.f32 %v840, %v936
        %v969 = vmul.f32 %v841, %v937
        %v970 = vmul.f32 %v842, %v938
        %v971 = vmul.f32 %v843, %v939
        %v972 = vmul.f32 %v844, %v940
        %v973 = vmul.f32 %v845, %v941
        %v974 = vmul.f32 %v846, %v942
        %v975 = vmul.f32 %v847, %v943
        %v976 = vmul.f32 %v848, %v944
        %v977 = vmul.f32 %v849, %v945
        %v978 = vmul.f32 %v850, %v946
        %v979 = vmul.f32 %v851, %v947
        %v980 = vmul.f32 %v852, %v948
        %v981 = vmul.f32 %v853, %v949
        %v982 = vmul.f32 %v854, %v950
        %v983 = vmul.f32 %v855, %v951
        %v984 = vmul.f32 %v856, %v952
        %v985 = vmul.f32 %v857, %v953
        %v986 = vmul.f32 %v858, %v954
        %v987 = vmul.f32 %v859, %v955
        %v988 = vmul.f32 %v860, %v956
        %v989 = vmul.f32 %v861, %v957
        %v990 = vmul.f32 %v862, %v958
        %v991 = vmul.f32 %v863, %v959
        %v992 = vmul.f32 %v864, %v960
        %v993 = vmul.f32 %v865, %v961
        %v994 = vmul.f32 %v866, %v962
        %v995 = vld [vmem:[%s5] sm:$0xff]
        %v996 = vld [vmem:[%s5 + $0x8] sm:$0xff]
        %v997 = vld [vmem:[%s5 + $0x10] sm:$0xff]
        %v998 = vld [vmem:[%s5 + $0x18] sm:$0xff]
        %v999 = vld [vmem:[%s5 + $0x20] sm:$0xff]
        %v1000 = vld [vmem:[%s5 + $0x28] sm:$0xff]
        %v1001 = vld [vmem:[%s5 + $0x30] sm:$0xff]
        %v1002 = vld [vmem:[%s5 + $0x38] sm:$0xff]
        %v1003 = vld [vmem:[%s5 + $0x40] sm:$0xff]
        %v1004 = vld [vmem:[%s5 + $0x48] sm:$0xff]
        %v1005 = vld [vmem:[%s5 + $0x50] sm:$0xff]
        %v1006 = vld [vmem:[%s5 + $0x58] sm:$0xff]
        %v1007 = vld [vmem:[%s5 + $0x60] sm:$0xff]
        %v1008 = vld [vmem:[%s5 + $0x68] sm:$0xff]
        %v1009 = vld [vmem:[%s5 + $0x70] sm:$0xff]
        %v1010 = vld [vmem:[%s5 + $0x78] sm:$0xff]
        %v1011 = vld [vmem:[%s6] sm:$0x3]
        %v1013 = vlaneseq
        %v1014 = vshrl.u32 %v1013, 7
        %v1015 = vsub.s32 0, %v1014
        %v1016 = vrot.slane %v1011, %v1015
        %v1017 = vlaneseq
        %v1018 = vshrl.u32 %v1017, 7
        %v1019 = vsub.s32 1, %v1018
        %v1020 = vrot.slane %v1011, %v1019
        %vm1023 = vcmask 523264
        %v1025 = vsel %vm1023, %v963, 0
        %v1028 = vsel %vm1023, %v964, 0
        %v1031 = vsel %vm1023, %v965, 0
        %v1034 = vsel %vm1023, %v966, 0
        %v1037 = vsel %vm1023, %v967, 0
        %v1040 = vsel %vm1023, %v968, 0
        %v1043 = vsel %vm1023, %v969, 0
        %v1046 = vsel %vm1023, %v970, 0
        %v1049 = vsel %vm1023, %v971, 0
        %v1052 = vsel %vm1023, %v972, 0
        %v1055 = vsel %vm1023, %v973, 0
        %v1058 = vsel %vm1023, %v974, 0
        %v1061 = vsel %vm1023, %v975, 0
        %v1064 = vsel %vm1023, %v976, 0
        %v1067 = vsel %vm1023, %v977, 0
        %v1070 = vsel %vm1023, %v978, 0
        %v1073 = vsel %vm1023, %v979, 0
        %v1076 = vsel %vm1023, %v980, 0
        %v1079 = vsel %vm1023, %v981, 0
        %v1082 = vsel %vm1023, %v982, 0
        %v1085 = vsel %vm1023, %v983, 0
        %v1088 = vsel %vm1023, %v984, 0
        %v1091 = vsel %vm1023, %v985, 0
        %v1094 = vsel %vm1023, %v986, 0
        %v1097 = vsel %vm1023, %v987, 0
        %v1100 = vsel %vm1023, %v988, 0
        %v1103 = vsel %vm1023, %v989, 0
        %v1106 = vsel %vm1023, %v990, 0
        %v1109 = vsel %vm1023, %v991, 0
        %v1112 = vsel %vm1023, %v992, 0
        %v1115 = vsel %vm1023, %v993, 0
        %v1118 = vsel %vm1023, %v994, 0
        %1120 = vmatprep.subr.mxu0 0.0
        %1121 = vmatpush1.msra.mxu0 0.0
        %1122 = vmatprep.subr.mxu0 0.0
        %1123 = vmatpush1.msra.mxu0 0.0
        %1124 = vmatprep.subr.mxu0 0.0
        %1125 = vmatpush1.msra.mxu0 0.0
        %1126 = vmatprep.subr.mxu0 0.0
        %1127 = vmatpush1.msra.mxu0 0.0
        %1128 = vmatprep.subr.mxu0 0.0
        %1129 = vmatpush1.msra.mxu0 0.0
        %1130 = vmatprep.subr.mxu0 0.0
        %1131 = vmatpush1.msra.mxu0 0.0
        %1132 = vmatprep.subr.mxu0 0.0
        %1133 = vmatpush1.msra.mxu0 0.0
        %1134 = vmatprep.subr.mxu0 0.0
        %1135 = vmatpush1.msra.mxu0 0.0
        %1136 = vmatprep.subr.mxu0 %v1010
        %1137 = vmatpush1.msra.mxu0 %v1009
        %1138 = vmatprep.subr.mxu0 %v1008
        %1139 = vmatpush1.msra.mxu0 %v1007
        %1140 = vmatprep.subr.mxu0 %v1006
        %1141 = vmatpush1.msra.mxu0 %v1005
        %1142 = vmatprep.subr.mxu0 %v1004
        %1143 = vmatpush1.msra.mxu0 %v1003
        %1144 = vmatprep.subr.mxu0 %v1002
        %1145 = vmatpush1.msra.mxu0 %v1001
        %1146 = vmatprep.subr.mxu0 %v1000
        %1147 = vmatpush1.msra.mxu0 %v999
        %1148 = vmatprep.subr.mxu0 %v998
        %1149 = vmatpush1.msra.mxu0 %v997
        %1150 = vmatprep.subr.mxu0 %v996
        %1151 = vmatpush1.msra.mxu0 %v995
        %1152 = vmatprep.subr.mxu0 0.0
        %1153 = vmatpush2.msra.mxu0 0.0
        %1154 = vmatprep.subr.mxu0 0.0
        %1155 = vmatpush2.msra.mxu0 0.0
        %1156 = vmatprep.subr.mxu0 0.0
        %1157 = vmatpush2.msra.mxu0 0.0
        %1158 = vmatprep.subr.mxu0 0.0
        %1159 = vmatpush2.msra.mxu0 0.0
        %1160 = vmatprep.subr.mxu0 0.0
        %1161 = vmatpush2.msra.mxu0 0.0
        %1162 = vmatprep.subr.mxu0 0.0
        %1163 = vmatpush2.msra.mxu0 0.0
        %1164 = vmatprep.subr.mxu0 0.0
        %1165 = vmatpush2.msra.mxu0 0.0
        %1166 = vmatprep.subr.mxu0 0.0
        %1167 = vmatpush2.msra.mxu0 0.0
        %1168 = vmatprep.subr.mxu0 0.0
        %1169 = vmatpush2.msra.mxu0 0.0
        %1170 = vmatprep.subr.mxu0 0.0
        %1171 = vmatpush2.msra.mxu0 0.0
        %1172 = vmatprep.subr.mxu0 0.0
        %1173 = vmatpush2.msra.mxu0 0.0
        %1174 = vmatprep.subr.mxu0 0.0
        %1175 = vmatpush2.msra.mxu0 0.0
        %1176 = vmatprep.subr.mxu0 0.0
        %1177 = vmatpush2.msra.mxu0 0.0
        %1178 = vmatprep.subr.mxu0 0.0
        %1179 = vmatpush2.msra.mxu0 0.0
        %1180 = vmatprep.subr.mxu0 0.0
        %1181 = vmatpush2.msra.mxu0 0.0
        %1182 = vmatprep.subr.mxu0 0.0
        %1183 = vmatpush2.msra.mxu0 0.0
        %1184 = vmatprep.mubr.f32.mxu0 0.0
        %1185 = vmatmul.mubr.f32.gmra.mxu0 %v1025
        %v1186 = vpop.f32.mrf.mxu0
        %v1187 = vadd.f32 %v1016, %v1186
        %v1188 = vpop.f32.mrf.mxu0
        %v1189 = vadd.f32 %v1020, %v1188
        %1190 = vmatprep.mubr.f32.mxu0 0.0
        %1191 = vmatmul.mubr.f32.gmra.mxu0 %v1028
        %v1192 = vpop.f32.mrf.mxu0
        %v1193 = vadd.f32 %v1016, %v1192
        %v1194 = vpop.f32.mrf.mxu0
        %v1195 = vadd.f32 %v1020, %v1194
        %1196 = vmatprep.mubr.f32.mxu0 0.0
        %1197 = vmatmul.mubr.f32.gmra.mxu0 %v1031
        %v1198 = vpop.f32.mrf.mxu0
        %v1199 = vadd.f32 %v1016, %v1198
        %v1200 = vpop.f32.mrf.mxu0
        %v1201 = vadd.f32 %v1020, %v1200
        %1202 = vmatprep.mubr.f32.mxu0 0.0
        %1203 = vmatmul.mubr.f32.gmra.mxu0 %v1034
        %v1204 = vpop.f32.mrf.mxu0
        %v1205 = vadd.f32 %v1016, %v1204
        %v1206 = vpop.f32.mrf.mxu0
        %v1207 = vadd.f32 %v1020, %v1206
        %1208 = vmatprep.mubr.f32.mxu0 0.0
        %1209 = vmatmul.mubr.f32.gmra.mxu0 %v1037
        %v1210 = vpop.f32.mrf.mxu0
        %v1211 = vadd.f32 %v1016, %v1210
        %v1212 = vpop.f32.mrf.mxu0
        %v1213 = vadd.f32 %v1020, %v1212
        %1214 = vmatprep.mubr.f32.mxu0 0.0
        %1215 = vmatmul.mubr.f32.gmra.mxu0 %v1040
        %v1216 = vpop.f32.mrf.mxu0
        %v1217 = vadd.f32 %v1016, %v1216
        %v1218 = vpop.f32.mrf.mxu0
        %v1219 = vadd.f32 %v1020, %v1218
        %1220 = vmatprep.mubr.f32.mxu0 0.0
        %1221 = vmatmul.mubr.f32.gmra.mxu0 %v1043
        %v1222 = vpop.f32.mrf.mxu0
        %v1223 = vadd.f32 %v1016, %v1222
        %v1224 = vpop.f32.mrf.mxu0
        %v1225 = vadd.f32 %v1020, %v1224
        %1226 = vmatprep.mubr.f32.mxu0 0.0
        %1227 = vmatmul.mubr.f32.gmra.mxu0 %v1046
        %v1228 = vpop.f32.mrf.mxu0
        %v1229 = vadd.f32 %v1016, %v1228
        %v1230 = vpop.f32.mrf.mxu0
        %v1231 = vadd.f32 %v1020, %v1230
        %1232 = vmatprep.mubr.f32.mxu0 0.0
        %1233 = vmatmul.mubr.f32.gmra.mxu0 %v1049
        %v1234 = vpop.f32.mrf.mxu0
        %v1235 = vadd.f32 %v1016, %v1234
        %v1236 = vpop.f32.mrf.mxu0
        %v1237 = vadd.f32 %v1020, %v1236
        %1238 = vmatprep.mubr.f32.mxu0 0.0
        %1239 = vmatmul.mubr.f32.gmra.mxu0 %v1052
        %v1240 = vpop.f32.mrf.mxu0
        %v1241 = vadd.f32 %v1016, %v1240
        %v1242 = vpop.f32.mrf.mxu0
        %v1243 = vadd.f32 %v1020, %v1242
        %1244 = vmatprep.mubr.f32.mxu0 0.0
        %1245 = vmatmul.mubr.f32.gmra.mxu0 %v1055
        %v1246 = vpop.f32.mrf.mxu0
        %v1247 = vadd.f32 %v1016, %v1246
        %v1248 = vpop.f32.mrf.mxu0
        %v1249 = vadd.f32 %v1020, %v1248
        %1250 = vmatprep.mubr.f32.mxu0 0.0
        %1251 = vmatmul.mubr.f32.gmra.mxu0 %v1058
        %v1252 = vpop.f32.mrf.mxu0
        %v1253 = vadd.f32 %v1016, %v1252
        %v1254 = vpop.f32.mrf.mxu0
        %v1255 = vadd.f32 %v1020, %v1254
        %1256 = vmatprep.mubr.f32.mxu0 0.0
        %1257 = vmatmul.mubr.f32.gmra.mxu0 %v1061
        %v1258 = vpop.f32.mrf.mxu0
        %v1259 = vadd.f32 %v1016, %v1258
        %v1260 = vpop.f32.mrf.mxu0
        %v1261 = vadd.f32 %v1020, %v1260
        %1262 = vmatprep.mubr.f32.mxu0 0.0
        %1263 = vmatmul.mubr.f32.gmra.mxu0 %v1064
        %v1264 = vpop.f32.mrf.mxu0
        %v1265 = vadd.f32 %v1016, %v1264
        %v1266 = vpop.f32.mrf.mxu0
        %v1267 = vadd.f32 %v1020, %v1266
        %1268 = vmatprep.mubr.f32.mxu0 0.0
        %1269 = vmatmul.mubr.f32.gmra.mxu0 %v1067
        %v1270 = vpop.f32.mrf.mxu0
        %v1271 = vadd.f32 %v1016, %v1270
        %v1272 = vpop.f32.mrf.mxu0
        %v1273 = vadd.f32 %v1020, %v1272
        %1274 = vmatprep.mubr.f32.mxu0 0.0
        %1275 = vmatmul.mubr.f32.gmra.mxu0 %v1070
        %v1276 = vpop.f32.mrf.mxu0
        %v1277 = vadd.f32 %v1016, %v1276
        %v1278 = vpop.f32.mrf.mxu0
        %v1279 = vadd.f32 %v1020, %v1278
        %1280 = vmatprep.mubr.f32.mxu0 0.0
        %1281 = vmatmul.mubr.f32.gmra.mxu0 %v1073
        %v1282 = vpop.f32.mrf.mxu0
        %v1283 = vadd.f32 %v1016, %v1282
        %v1284 = vpop.f32.mrf.mxu0
        %v1285 = vadd.f32 %v1020, %v1284
        %1286 = vmatprep.mubr.f32.mxu0 0.0
        %1287 = vmatmul.mubr.f32.gmra.mxu0 %v1076
        %v1288 = vpop.f32.mrf.mxu0
        %v1289 = vadd.f32 %v1016, %v1288
        %v1290 = vpop.f32.mrf.mxu0
        %v1291 = vadd.f32 %v1020, %v1290
        %1292 = vmatprep.mubr.f32.mxu0 0.0
        %1293 = vmatmul.mubr.f32.gmra.mxu0 %v1079
        %v1294 = vpop.f32.mrf.mxu0
        %v1295 = vadd.f32 %v1016, %v1294
        %v1296 = vpop.f32.mrf.mxu0
        %v1297 = vadd.f32 %v1020, %v1296
        %1298 = vmatprep.mubr.f32.mxu0 0.0
        %1299 = vmatmul.mubr.f32.gmra.mxu0 %v1082
        %v1300 = vpop.f32.mrf.mxu0
        %v1301 = vadd.f32 %v1016, %v1300
        %v1302 = vpop.f32.mrf.mxu0
        %v1303 = vadd.f32 %v1020, %v1302
        %1304 = vmatprep.mubr.f32.mxu0 0.0
        %1305 = vmatmul.mubr.f32.gmra.mxu0 %v1085
        %v1306 = vpop.f32.mrf.mxu0
        %v1307 = vadd.f32 %v1016, %v1306
        %v1308 = vpop.f32.mrf.mxu0
        %v1309 = vadd.f32 %v1020, %v1308
        %1310 = vmatprep.mubr.f32.mxu0 0.0
        %1311 = vmatmul.mubr.f32.gmra.mxu0 %v1088
        %v1312 = vpop.f32.mrf.mxu0
        %v1313 = vadd.f32 %v1016, %v1312
        %v1314 = vpop.f32.mrf.mxu0
        %v1315 = vadd.f32 %v1020, %v1314
        %1316 = vmatprep.mubr.f32.mxu0 0.0
        %1317 = vmatmul.mubr.f32.gmra.mxu0 %v1091
        %v1318 = vpop.f32.mrf.mxu0
        %v1319 = vadd.f32 %v1016, %v1318
        %v1320 = vpop.f32.mrf.mxu0
        %v1321 = vadd.f32 %v1020, %v1320
        %1322 = vmatprep.mubr.f32.mxu0 0.0
        %1323 = vmatmul.mubr.f32.gmra.mxu0 %v1094
        %v1324 = vpop.f32.mrf.mxu0
        %v1325 = vadd.f32 %v1016, %v1324
        %v1326 = vpop.f32.mrf.mxu0
        %v1327 = vadd.f32 %v1020, %v1326
        %1328 = vmatprep.mubr.f32.mxu0 0.0
        %1329 = vmatmul.mubr.f32.gmra.mxu0 %v1097
        %v1330 = vpop.f32.mrf.mxu0
        %v1331 = vadd.f32 %v1016, %v1330
        %v1332 = vpop.f32.mrf.mxu0
        %v1333 = vadd.f32 %v1020, %v1332
        %1334 = vmatprep.mubr.f32.mxu0 0.0
        %1335 = vmatmul.mubr.f32.gmra.mxu0 %v1100
        %v1336 = vpop.f32.mrf.mxu0
        %v1337 = vadd.f32 %v1016, %v1336
        %v1338 = vpop.f32.mrf.mxu0
        %v1339 = vadd.f32 %v1020, %v1338
        %1340 = vmatprep.mubr.f32.mxu0 0.0
        %1341 = vmatmul.mubr.f32.gmra.mxu0 %v1103
        %v1342 = vpop.f32.mrf.mxu0
        %v1343 = vadd.f32 %v1016, %v1342
        %v1344 = vpop.f32.mrf.mxu0
        %v1345 = vadd.f32 %v1020, %v1344
        %1346 = vmatprep.mubr.f32.mxu0 0.0
        %1347 = vmatmul.mubr.f32.gmra.mxu0 %v1106
        %v1348 = vpop.f32.mrf.mxu0
        %v1349 = vadd.f32 %v1016, %v1348
        %v1350 = vpop.f32.mrf.mxu0
        %v1351 = vadd.f32 %v1020, %v1350
        %1352 = vmatprep.mubr.f32.mxu0 0.0
        %1353 = vmatmul.mubr.f32.gmra.mxu0 %v1109
        %v1354 = vpop.f32.mrf.mxu0
        %v1355 = vadd.f32 %v1016, %v1354
        %v1356 = vpop.f32.mrf.mxu0
        %v1357 = vadd.f32 %v1020, %v1356
        %1358 = vmatprep.mubr.f32.mxu0 0.0
        %1359 = vmatmul.mubr.f32.gmra.mxu0 %v1112
        %v1360 = vpop.f32.mrf.mxu0
        %v1361 = vadd.f32 %v1016, %v1360
        %v1362 = vpop.f32.mrf.mxu0
        %v1363 = vadd.f32 %v1020, %v1362
        %1364 = vmatprep.mubr.f32.mxu0 0.0
        %1365 = vmatmul.mubr.f32.gmra.mxu0 %v1115
        %v1366 = vpop.f32.mrf.mxu0
        %v1367 = vadd.f32 %v1016, %v1366
        %v1368 = vpop.f32.mrf.mxu0
        %v1369 = vadd.f32 %v1020, %v1368
        %1370 = vmatprep.mubr.f32.mxu0 0.0
        %1371 = vmatmul.mubr.f32.gmra.mxu0 %v1118
        %v1372 = vpop.f32.mrf.mxu0
        %v1373 = vadd.f32 %v1016, %v1372
        %v1374 = vpop.f32.mrf.mxu0
        %v1375 = vadd.f32 %v1020, %v1374
        %1376 = vdwg.mxu0
        %v1377 = vadd.f32 %v283, %v1187
        %v1378 = vadd.f32 %v284, %v1189
        %v1379 = vadd.f32 %v285, %v1193
        %v1380 = vadd.f32 %v286, %v1195
        %v1381 = vadd.f32 %v287, %v1199
        %v1382 = vadd.f32 %v288, %v1201
        %v1383 = vadd.f32 %v289, %v1205
        %v1384 = vadd.f32 %v290, %v1207
        %v1385 = vadd.f32 %v291, %v1211
        %v1386 = vadd.f32 %v292, %v1213
        %v1387 = vadd.f32 %v293, %v1217
        %v1388 = vadd.f32 %v294, %v1219
        %v1389 = vadd.f32 %v295, %v1223
        %v1390 = vadd.f32 %v296, %v1225
        %v1391 = vadd.f32 %v297, %v1229
        %v1392 = vadd.f32 %v298, %v1231
        %v1393 = vadd.f32 %v299, %v1235
        %v1394 = vadd.f32 %v300, %v1237
        %v1395 = vadd.f32 %v301, %v1241
        %v1396 = vadd.f32 %v302, %v1243
        %v1397 = vadd.f32 %v303, %v1247
        %v1398 = vadd.f32 %v304, %v1249
        %v1399 = vadd.f32 %v305, %v1253
        %v1400 = vadd.f32 %v306, %v1255
        %v1401 = vadd.f32 %v307, %v1259
        %v1402 = vadd.f32 %v308, %v1261
        %v1403 = vadd.f32 %v309, %v1265
        %v1404 = vadd.f32 %v310, %v1267
        %v1405 = vadd.f32 %v311, %v1271
        %v1406 = vadd.f32 %v312, %v1273
        %v1407 = vadd.f32 %v313, %v1277
        %v1408 = vadd.f32 %v314, %v1279
        %v1409 = vadd.f32 %v315, %v1283
        %v1410 = vadd.f32 %v316, %v1285
        %v1411 = vadd.f32 %v317, %v1289
        %v1412 = vadd.f32 %v318, %v1291
        %v1413 = vadd.f32 %v319, %v1295
        %v1414 = vadd.f32 %v320, %v1297
        %v1415 = vadd.f32 %v321, %v1301
        %v1416 = vadd.f32 %v322, %v1303
        %v1417 = vadd.f32 %v323, %v1307
        %v1418 = vadd.f32 %v324, %v1309
        %v1419 = vadd.f32 %v325, %v1313
        %v1420 = vadd.f32 %v326, %v1315
        %v1421 = vadd.f32 %v327, %v1319
        %v1422 = vadd.f32 %v328, %v1321
        %v1423 = vadd.f32 %v329, %v1325
        %v1424 = vadd.f32 %v330, %v1327
        %v1425 = vadd.f32 %v331, %v1331
        %v1426 = vadd.f32 %v332, %v1333
        %v1427 = vadd.f32 %v333, %v1337
        %v1428 = vadd.f32 %v334, %v1339
        %v1429 = vadd.f32 %v335, %v1343
        %v1430 = vadd.f32 %v336, %v1345
        %v1431 = vadd.f32 %v337, %v1349
        %v1432 = vadd.f32 %v338, %v1351
        %v1433 = vadd.f32 %v339, %v1355
        %v1434 = vadd.f32 %v340, %v1357
        %v1435 = vadd.f32 %v341, %v1361
        %v1436 = vadd.f32 %v342, %v1363
        %v1437 = vadd.f32 %v343, %v1367
        %v1438 = vadd.f32 %v344, %v1369
        %v1439 = vadd.f32 %v345, %v1373
        %v1440 = vadd.f32 %v346, %v1375
        %1441 = vst [vmem:[%s274] sm:$0xff] %v1377
        %1442 = vst [vmem:[%s274 + $0x8] sm:$0xff] %v1378
        %1443 = vst [vmem:[%s274 + $0x10] sm:$0xff] %v1379
        %1444 = vst [vmem:[%s274 + $0x18] sm:$0xff] %v1380
        %1445 = vst [vmem:[%s274 + $0x20] sm:$0xff] %v1381
        %1446 = vst [vmem:[%s274 + $0x28] sm:$0xff] %v1382
        %1447 = vst [vmem:[%s274 + $0x30] sm:$0xff] %v1383
        %1448 = vst [vmem:[%s274 + $0x38] sm:$0xff] %v1384
        %1449 = vst [vmem:[%s274 + $0x40] sm:$0xff] %v1385
        %1450 = vst [vmem:[%s274 + $0x48] sm:$0xff] %v1386
        %1451 = vst [vmem:[%s274 + $0x50] sm:$0xff] %v1387
        %1452 = vst [vmem:[%s274 + $0x58] sm:$0xff] %v1388
        %1453 = vst [vmem:[%s274 + $0x60] sm:$0xff] %v1389
        %1454 = vst [vmem:[%s274 + $0x68] sm:$0xff] %v1390
        %1455 = vst [vmem:[%s274 + $0x70] sm:$0xff] %v1391
        %1456 = vst [vmem:[%s274 + $0x78] sm:$0xff] %v1392
        %1457 = vst [vmem:[%s274 + $0x80] sm:$0xff] %v1393
        %1458 = vst [vmem:[%s274 + $0x88] sm:$0xff] %v1394
        %1459 = vst [vmem:[%s274 + $0x90] sm:$0xff] %v1395
        %1460 = vst [vmem:[%s274 + $0x98] sm:$0xff] %v1396
        %1461 = vst [vmem:[%s274 + $0xa0] sm:$0xff] %v1397
        %1462 = vst [vmem:[%s274 + $0xa8] sm:$0xff] %v1398
        %1463 = vst [vmem:[%s274 + $0xb0] sm:$0xff] %v1399
        %1464 = vst [vmem:[%s274 + $0xb8] sm:$0xff] %v1400
        %1465 = vst [vmem:[%s274 + $0xc0] sm:$0xff] %v1401
        %1466 = vst [vmem:[%s274 + $0xc8] sm:$0xff] %v1402
        %1467 = vst [vmem:[%s274 + $0xd0] sm:$0xff] %v1403
        %1468 = vst [vmem:[%s274 + $0xd8] sm:$0xff] %v1404
        %1469 = vst [vmem:[%s274 + $0xe0] sm:$0xff] %v1405
        %1470 = vst [vmem:[%s274 + $0xe8] sm:$0xff] %v1406
        %1471 = vst [vmem:[%s274 + $0xf0] sm:$0xff] %v1407
        %1472 = vst [vmem:[%s274 + $0xf8] sm:$0xff] %v1408
        %1473 = vst [vmem:[%s274 + $0x100] sm:$0xff] %v1409
        %1474 = vst [vmem:[%s274 + $0x108] sm:$0xff] %v1410
        %1475 = vst [vmem:[%s274 + $0x110] sm:$0xff] %v1411
        %1476 = vst [vmem:[%s274 + $0x118] sm:$0xff] %v1412
        %1477 = vst [vmem:[%s274 + $0x120] sm:$0xff] %v1413
        %1478 = vst [vmem:[%s274 + $0x128] sm:$0xff] %v1414
        %1479 = vst [vmem:[%s274 + $0x130] sm:$0xff] %v1415
        %1480 = vst [vmem:[%s274 + $0x138] sm:$0xff] %v1416
        %1481 = vst [vmem:[%s274 + $0x140] sm:$0xff] %v1417
        %1482 = vst [vmem:[%s274 + $0x148] sm:$0xff] %v1418
        %1483 = vst [vmem:[%s274 + $0x150] sm:$0xff] %v1419
        %1484 = vst [vmem:[%s274 + $0x158] sm:$0xff] %v1420
        %1485 = vst [vmem:[%s274 + $0x160] sm:$0xff] %v1421
        %1486 = vst [vmem:[%s274 + $0x168] sm:$0xff] %v1422
        %1487 = vst [vmem:[%s274 + $0x170] sm:$0xff] %v1423
        %1488 = vst [vmem:[%s274 + $0x178] sm:$0xff] %v1424
        %1489 = vst [vmem:[%s274 + $0x180] sm:$0xff] %v1425
        %1490 = vst [vmem:[%s274 + $0x188] sm:$0xff] %v1426
        %1491 = vst [vmem:[%s274 + $0x190] sm:$0xff] %v1427
        %1492 = vst [vmem:[%s274 + $0x198] sm:$0xff] %v1428
        %1493 = vst [vmem:[%s274 + $0x1a0] sm:$0xff] %v1429
        %1494 = vst [vmem:[%s274 + $0x1a8] sm:$0xff] %v1430
        %1495 = vst [vmem:[%s274 + $0x1b0] sm:$0xff] %v1431
        %1496 = vst [vmem:[%s274 + $0x1b8] sm:$0xff] %v1432
        %1497 = vst [vmem:[%s274 + $0x1c0] sm:$0xff] %v1433
        %1498 = vst [vmem:[%s274 + $0x1c8] sm:$0xff] %v1434
        %1499 = vst [vmem:[%s274 + $0x1d0] sm:$0xff] %v1435
        %1500 = vst [vmem:[%s274 + $0x1d8] sm:$0xff] %v1436
        %1501 = vst [vmem:[%s274 + $0x1e0] sm:$0xff] %v1437
        %1502 = vst [vmem:[%s274 + $0x1e8] sm:$0xff] %v1438
        %1503 = vst [vmem:[%s274 + $0x1f0] sm:$0xff] %v1439
        %1504 = vst [vmem:[%s274 + $0x1f8] sm:$0xff] %v1440
        %s1505 = sand.u32 %s181, 1
        %s1506 = scalar_lea.sflag [#allocation3], %s1505
        %s1507 = sand.u32 %s181, 1
        %s1508 = smul.addr %s1507, 512
        %s1509 = scalar_lea.vmem [#allocation2], %s1508
        // Predicated region
        $region49: #{mlp_mixer_layer.5} parent=47 // pred_check
          %p1510 = pneg %p191
        $region50: #{mlp_mixer_layer.5} parent=47 // pred_check_branch
          %1512 = sbr.rel (%p1510) target = $region52
        $region51: #{mlp_mixer_layer.5} parent=47 // pred_region
          %s1513 = smul.u32 4, %s21
          %s1515 = ssub.s32 8192, 8192
          %1516 = vsyncadd %s1506, %s1515
          %s1517 = smul.addr %s1513, 16
          %s1518 = smul.addr %s1517, 128
          %s1519 = scalar_lea.hbm %s7, %s1518
          %s1520 = sshll.u32 %s1509, 4
          %s1521 = int_to_ptr.vmem [resolvable:$true] %s1520
          %1526 = dma.vmem_to_hbm [thread:$0]  %s1521, 8192, %s1519, %s1506, 256, 256, 16
        $region52: #{mlp_mixer_layer.5} parent=47 // pred_fallthru
          _
      $region48: #{mlp_mixer_layer.5} parent=5 // pred_fallthru
        _
      %p1527 = scmp.le.s32.totalorder 2, %s16
      // Predicated region
      $region53: #{mlp_mixer_layer.5} parent=5 // pred_check
        %p1528 = pneg %p1527
      $region54: #{mlp_mixer_layer.5} parent=5 // pred_check_branch
        %1530 = sbr.rel (%p1528) target = $region56
      $region55: #{mlp_mixer_layer.5} parent=5 // pred_region
        %s1531 = ssub.s32 %s16, 2
        // Predicated region
        $region57: #{mlp_mixer_layer.5} parent=55 // pred_check
          %p1532 = pneg %p197
        $region58: #{mlp_mixer_layer.5} parent=55 // pred_check_branch
          %1534 = sbr.rel (%p1532) target = $region60
        $region59: #{mlp_mixer_layer.5} parent=55 // pred_region
          %s1535 = sand.u32 %s182, 1
          %s1536 = scalar_lea.sflag [#allocation3], %s1535
          %s1537 = sand.u32 %s182, 1
          %s1538 = smul.addr %s1537, 512
          %s1539 = scalar_lea.vmem [#allocation2], %s1538
          %1540 = dma.done %s1536, 8192
        $region60: #{mlp_mixer_layer.5} parent=55 // pred_fallthru
          _
      $region56: #{mlp_mixer_layer.5} parent=5 // pred_fallthru
        _
    $region6: #{mlp_mixer_layer.5} parent=1 // loop_footer
      %s20 = sadd.s32 1, %s16
    $region7: #{mlp_mixer_layer.5} parent=1 // loop_footer_branch
      %15 = sbr.rel target = $region3
    $region8: #{mlp_mixer_layer.5} parent=1 // loop_exit
      _
    %1541 = vsyncpa [#allocation3], 1
    %s1542 = scalar_lea.sflag [#allocation3], 1
    %1543 = vsyncpa %s1542, 1

// kernel: mlp_mixer_layer.4
$region0: #{mlp_mixer_layer.4}
  #allocation0 [shape = 'u32[]', space=smem, size = 0x4, offset = 0x4, fixed_abs, tag = 'smem constant byte address 0x4 - core index']
  #allocation1 [shape = 'u32[144,128]{1,0:T(1,128)}', space=vmem, size = 0x12000, scoped, tag = 'internal scratch']
  %s0 = inlined_call_operand.vmem [shape: f32[8,64,256], index: 0, kind: input, shape index: {}]
  %s1 = inlined_call_operand.vmem [shape: f32[64,1], index: 1, kind: input, shape index: {}]
  %s2 = inlined_call_operand.vmem [shape: f32[64,1], index: 2, kind: input, shape index: {}]
  %s3 = inlined_call_operand.vmem [shape: f32[64,64], index: 3, kind: input, shape index: {}]
  %s4 = inlined_call_operand.vmem [shape: f32[64,1], index: 4, kind: input, shape index: {}]
  %s5 = inlined_call_operand.vmem [shape: f32[64,64], index: 5, kind: input, shape index: {}]
  %s6 = inlined_call_operand.vmem [shape: f32[64,1], index: 6, kind: input, shape index: {}]
  %s7 = inlined_call_operand.vmem [shape: f32[8,64,256], index: 7, kind: output, shape index: {0}]
  %s8 = inlined_call_operand.vmem [shape: f32[2,64,2], index: 8, kind: output, shape index: {1}]
  %9 = xla_tuple %s7, %s8
  %s10 = sld [smem:[#allocation0]]
  $region69: #{mlp_mixer_layer.4} parent=0
    _
  %s12 = ssub.s32 1, %s10
  %s13 = scalar_select 0, %s12, %s10
  loop: start=0, step=1, limit=4
  $region2: #{mlp_mixer_layer.4} parent=0 // loop_pre_header
    _
  $region3: #{mlp_mixer_layer.4} parent=0 // loop_header
    %s15 = sphi 0, %s19
    %p16 = scmp.ge.s32.totalorder %s15, 4
    %s25 = sphi 0, %s27
    %s28 = sphi 0, %s25
    %s29 = sphi 0, %s28
    %s45 = sphi 0, %s29
    %s49 = sphi 0, %s49
    %s51 = sphi 0, %s49
    %s52 = sphi 0, %s51
    %s66 = sphi 0, %s52
    %s70 = sphi 0, %s70
    %s72 = sphi 0, %s70
    %s73 = sphi 0, %s72
    %s87 = sphi 0, %s73
    %s91 = sphi 0, %s91
    %s93 = sphi 0, %s91
    %s94 = sphi 0, %s93
    %s108 = sphi 0, %s94
    %s112 = sphi 0, %s112
    %s114 = sphi 0, %s112
    %s115 = sphi 0, %s114
    %s129 = sphi 0, %s115
    %s133 = sphi 0, %s133
    %s135 = sphi 0, %s133
    %s136 = sphi 0, %s135
    %s150 = sphi 0, %s136
    %s154 = sphi 0, %s154
    %s156 = sphi 0, %s154
    %s157 = sphi 0, %s156
    %s171 = sphi 0, %s157
    %s177 = sphi 0, %s179
    %s180 = sphi 0, %s177
    %s181 = sphi 0, %s180
    %s197 = sphi 0, %s181
    %s203 = sphi 0, %s205
    %s206 = sphi 0, %s203
    %s207 = sphi 0, %s206
    %s223 = sphi 0, %s207
  $region4: #{mlp_mixer_layer.4} parent=0 // loop_header_branch
    %18 = sbr.rel (%p16) target = $region8
  $region5: #{mlp_mixer_layer.4} parent=0 // loop_body
    %s20 = ssub.s32 %s15, 1
    %s21 = ssub.s32 %s15, 2
    %s22 = sadd.s32 %s15, 1
    %s23 = ssub.s32 %s15, %s22
    %p24 = scmp.eq.s32.totalorder %s23, 0
    %s26 = sadd.s32 %s25, 1
    %s27 = scalar_select %p24, %s25, %s26
    %p30 = pneg %p24
    %p31 = scmp.eq.s32.totalorder %s15, 1
    %p32 = por %p30, %p31
    %p33 = scmp.ne.s32.totalorder %s25, %s28
    %p34 = scmp.eq.s32.totalorder %s15, 0
    %p35 = por %p33, %p34
    %p36 = scmp.ne.s32.totalorder %s25, %s28
    %p37 = scmp.eq.s32.totalorder %s20, 1
    %p38 = por %p36, %p37
    %p39 = scmp.ne.s32.totalorder %s28, %s29
    %p40 = scmp.eq.s32.totalorder %s20, 0
    %p41 = por %p39, %p40
    %p42 = scmp.ne.s32.totalorder %s28, %s29
    %p43 = scmp.eq.s32.totalorder %s21, 1
    %p44 = por %p42, %p43
    %p46 = scmp.ne.s32.totalorder %s29, %s45
    %p47 = scmp.eq.s32.totalorder %s21, 0
    %p48 = por %p46, %p47
    %s50 = sadd.s32 %s49, 1
    %p53 = scmp.eq.s32.totalorder %s15, 1
    %p54 = scmp.ne.s32.totalorder %s49, %s51
    %p55 = scmp.eq.s32.totalorder %s15, 0
    %p56 = por %p54, %p55
    %p57 = scmp.ne.s32.totalorder %s49, %s51
    %p58 = scmp.eq.s32.totalorder %s20, 1
    %p59 = por %p57, %p58
    %p60 = scmp.ne.s32.totalorder %s51, %s52
    %p61 = scmp.eq.s32.totalorder %s20, 0
    %p62 = por %p60, %p61
    %p63 = scmp.ne.s32.totalorder %s51, %s52
    %p64 = scmp.eq.s32.totalorder %s21, 1
    %p65 = por %p63, %p64
    %p67 = scmp.ne.s32.totalorder %s52, %s66
    %p68 = scmp.eq.s32.totalorder %s21, 0
    %p69 = por %p67, %p68
    %s71 = sadd.s32 %s70, 1
    %p74 = scmp.eq.s32.totalorder %s15, 1
    %p75 = scmp.ne.s32.totalorder %s70, %s72
    %p76 = scmp.eq.s32.totalorder %s15, 0
    %p77 = por %p75, %p76
    %p78 = scmp.ne.s32.totalorder %s70, %s72
    %p79 = scmp.eq.s32.totalorder %s20, 1
    %p80 = por %p78, %p79
    %p81 = scmp.ne.s32.totalorder %s72, %s73
    %p82 = scmp.eq.s32.totalorder %s20, 0
    %p83 = por %p81, %p82
    %p84 = scmp.ne.s32.totalorder %s72, %s73
    %p85 = scmp.eq.s32.totalorder %s21, 1
    %p86 = por %p84, %p85
    %p88 = scmp.ne.s32.totalorder %s73, %s87
    %p89 = scmp.eq.s32.totalorder %s21, 0
    %p90 = por %p88, %p89
    %s92 = sadd.s32 %s91, 1
    %p95 = scmp.eq.s32.totalorder %s15, 1
    %p96 = scmp.ne.s32.totalorder %s91, %s93
    %p97 = scmp.eq.s32.totalorder %s15, 0
    %p98 = por %p96, %p97
    %p99 = scmp.ne.s32.totalorder %s91, %s93
    %p100 = scmp.eq.s32.totalorder %s20, 1
    %p101 = por %p99, %p100
    %p102 = scmp.ne.s32.totalorder %s93, %s94
    %p103 = scmp.eq.s32.totalorder %s20, 0
    %p104 = por %p102, %p103
    %p105 = scmp.ne.s32.totalorder %s93, %s94
    %p106 = scmp.eq.s32.totalorder %s21, 1
    %p107 = por %p105, %p106
    %p109 = scmp.ne.s32.totalorder %s94, %s108
    %p110 = scmp.eq.s32.totalorder %s21, 0
    %p111 = por %p109, %p110
    %s113 = sadd.s32 %s112, 1
    %p116 = scmp.eq.s32.totalorder %s15, 1
    %p117 = scmp.ne.s32.totalorder %s112, %s114
    %p118 = scmp.eq.s32.totalorder %s15, 0
    %p119 = por %p117, %p118
    %p120 = scmp.ne.s32.totalorder %s112, %s114
    %p121 = scmp.eq.s32.totalorder %s20, 1
    %p122 = por %p120, %p121
    %p123 = scmp.ne.s32.totalorder %s114, %s115
    %p124 = scmp.eq.s32.totalorder %s20, 0
    %p125 = por %p123, %p124
    %p126 = scmp.ne.s32.totalorder %s114, %s115
    %p127 = scmp.eq.s32.totalorder %s21, 1
    %p128 = por %p126, %p127
    %p130 = scmp.ne.s32.totalorder %s115, %s129
    %p131 = scmp.eq.s32.totalorder %s21, 0
    %p132 = por %p130, %p131
    %s134 = sadd.s32 %s133, 1
    %p137 = scmp.eq.s32.totalorder %s15, 1
    %p138 = scmp.ne.s32.totalorder %s133, %s135
    %p139 = scmp.eq.s32.totalorder %s15, 0
    %p140 = por %p138, %p139
    %p141 = scmp.ne.s32.totalorder %s133, %s135
    %p142 = scmp.eq.s32.totalorder %s20, 1
    %p143 = por %p141, %p142
    %p144 = scmp.ne.s32.totalorder %s135, %s136
    %p145 = scmp.eq.s32.totalorder %s20, 0
    %p146 = por %p144, %p145
    %p147 = scmp.ne.s32.totalorder %s135, %s136
    %p148 = scmp.eq.s32.totalorder %s21, 1
    %p149 = por %p147, %p148
    %p151 = scmp.ne.s32.totalorder %s136, %s150
    %p152 = scmp.eq.s32.totalorder %s21, 0
    %p153 = por %p151, %p152
    %s155 = sadd.s32 %s154, 1
    %p158 = scmp.eq.s32.totalorder %s15, 1
    %p159 = scmp.ne.s32.totalorder %s154, %s156
    %p160 = scmp.eq.s32.totalorder %s15, 0
    %p161 = por %p159, %p160
    %p162 = scmp.ne.s32.totalorder %s154, %s156
    %p163 = scmp.eq.s32.totalorder %s20, 1
    %p164 = por %p162, %p163
    %p165 = scmp.ne.s32.totalorder %s156, %s157
    %p166 = scmp.eq.s32.totalorder %s20, 0
    %p167 = por %p165, %p166
    %p168 = scmp.ne.s32.totalorder %s156, %s157
    %p169 = scmp.eq.s32.totalorder %s21, 1
    %p170 = por %p168, %p169
    %p172 = scmp.ne.s32.totalorder %s157, %s171
    %p173 = scmp.eq.s32.totalorder %s21, 0
    %p174 = por %p172, %p173
    %s175 = ssub.s32 %s15, %s22
    %p176 = scmp.eq.s32.totalorder %s175, 0
    %s178 = sadd.s32 %s177, 1
    %s179 = scalar_select %p176, %s177, %s178
    %p182 = pneg %p176
    %p183 = scmp.eq.s32.totalorder %s15, 1
    %p184 = por %p182, %p183
    %p185 = scmp.ne.s32.totalorder %s177, %s180
    %p186 = scmp.eq.s32.totalorder %s15, 0
    %p187 = por %p185, %p186
    %p188 = scmp.ne.s32.totalorder %s177, %s180
    %p189 = scmp.eq.s32.totalorder %s20, 1
    %p190 = por %p188, %p189
    %p191 = scmp.ne.s32.totalorder %s180, %s181
    %p192 = scmp.eq.s32.totalorder %s20, 0
    %p193 = por %p191, %p192
    %p194 = scmp.ne.s32.totalorder %s180, %s181
    %p195 = scmp.eq.s32.totalorder %s21, 1
    %p196 = por %p194, %p195
    %p198 = scmp.ne.s32.totalorder %s181, %s197
    %p199 = scmp.eq.s32.totalorder %s21, 0
    %p200 = por %p198, %p199
    %s201 = ssub.s32 %s15, %s22
    %p202 = scmp.eq.s32.totalorder %s201, 0
    %s204 = sadd.s32 %s203, 1
    %s205 = scalar_select %p202, %s203, %s204
    %p208 = pneg %p202
    %p209 = scmp.eq.s32.totalorder %s15, 1
    %p210 = por %p208, %p209
    %p211 = scmp.ne.s32.totalorder %s203, %s206
    %p212 = scmp.eq.s32.totalorder %s15, 0
    %p213 = por %p211, %p212
    %p214 = scmp.ne.s32.totalorder %s203, %s206
    %p215 = scmp.eq.s32.totalorder %s20, 1
    %p216 = por %p214, %p215
    %p217 = scmp.ne.s32.totalorder %s206, %s207
    %p218 = scmp.eq.s32.totalorder %s20, 0
    %p219 = por %p217, %p218
    %p220 = scmp.ne.s32.totalorder %s206, %s207
    %p221 = scmp.eq.s32.totalorder %s21, 1
    %p222 = por %p220, %p221
    %p224 = scmp.ne.s32.totalorder %s207, %s223
    %p225 = scmp.eq.s32.totalorder %s21, 0
    %p226 = por %p224, %p225
    %p227 = scmp.le.s32.totalorder 1, %s15
    %p228 = scmp.lt.s32.totalorder %s15, 3
    %p229 = pnand %p227, %p228
    %p230 = pneg %p229
    // Predicated region
    $region9: #{mlp_mixer_layer.4} parent=5 // pred_check
      _
    $region10: #{mlp_mixer_layer.4} parent=5 // pred_check_branch
      %232 = sbr.rel (%p229) target = $region12
    $region11: #{mlp_mixer_layer.4} parent=5 // pred_region
      %s233 = ssub.s32 %s15, 1
      // Predicated region
      $region13: #{mlp_mixer_layer.4} parent=11 // pred_check
        %p234 = pneg %p62
      $region14: #{mlp_mixer_layer.4} parent=11 // pred_check_branch
        %236 = sbr.rel (%p234) target = $region16
      $region15: #{mlp_mixer_layer.4} parent=11 // pred_region
        _
      $region16: #{mlp_mixer_layer.4} parent=11 // pred_fallthru
        _
      // Predicated region
      $region17: #{mlp_mixer_layer.4} parent=11 // pred_check
        %p237 = pneg %p83
      $region18: #{mlp_mixer_layer.4} parent=11 // pred_check_branch
        %239 = sbr.rel (%p237) target = $region20
      $region19: #{mlp_mixer_layer.4} parent=11 // pred_region
        _
      $region20: #{mlp_mixer_layer.4} parent=11 // pred_fallthru
        _
      // Predicated region
      $region21: #{mlp_mixer_layer.4} parent=11 // pred_check
        %p240 = pneg %p104
      $region22: #{mlp_mixer_layer.4} parent=11 // pred_check_branch
        %242 = sbr.rel (%p240) target = $region24
      $region23: #{mlp_mixer_layer.4} parent=11 // pred_region
        _
      $region24: #{mlp_mixer_layer.4} parent=11 // pred_fallthru
        _
      // Predicated region
      $region25: #{mlp_mixer_layer.4} parent=11 // pred_check
        %p243 = pneg %p125
      $region26: #{mlp_mixer_layer.4} parent=11 // pred_check_branch
        %245 = sbr.rel (%p243) target = $region28
      $region27: #{mlp_mixer_layer.4} parent=11 // pred_region
        _
      $region28: #{mlp_mixer_layer.4} parent=11 // pred_fallthru
        _
      // Predicated region
      $region29: #{mlp_mixer_layer.4} parent=11 // pred_check
        %p246 = pneg %p146
      $region30: #{mlp_mixer_layer.4} parent=11 // pred_check_branch
        %248 = sbr.rel (%p246) target = $region32
      $region31: #{mlp_mixer_layer.4} parent=11 // pred_region
        _
      $region32: #{mlp_mixer_layer.4} parent=11 // pred_fallthru
        _
      // Predicated region
      $region33: #{mlp_mixer_layer.4} parent=11 // pred_check
        %p249 = pneg %p167
      $region34: #{mlp_mixer_layer.4} parent=11 // pred_check_branch
        %251 = sbr.rel (%p249) target = $region36
      $region35: #{mlp_mixer_layer.4} parent=11 // pred_region
        _
      $region36: #{mlp_mixer_layer.4} parent=11 // pred_fallthru
        _
    $region12: #{mlp_mixer_layer.4} parent=5 // pred_fallthru
      _
    %p252 = scmp.lt.s32.totalorder %s15, 2
    // Predicated region
    $region37: #{mlp_mixer_layer.4} parent=5 // pred_check
      %p253 = pneg %p252
    $region38: #{mlp_mixer_layer.4} parent=5 // pred_check_branch
      %255 = sbr.rel (%p253) target = $region40
    $region39: #{mlp_mixer_layer.4} parent=5 // pred_region
      // Predicated region
      $region41: #{mlp_mixer_layer.4} parent=39 // pred_check
        %p256 = pneg %p35
      $region42: #{mlp_mixer_layer.4} parent=39 // pred_check_branch
        %258 = sbr.rel (%p256) target = $region44
      $region43: #{mlp_mixer_layer.4} parent=39 // pred_region
        %s259 = smul.u32 4, %s15
        %p260 = scmp.lt.s32.totalorder %s259, 7
        %s261 = scalar_select %p260, %s259, 7
        %s262 = smul.addr %s261, 16
        %s263 = smul.addr %s262, 8
        %s264 = scalar_lea.vmem %s0, %s263
        %s265 = smul.u32 4, %s15
      $region44: #{mlp_mixer_layer.4} parent=39 // pred_fallthru
        _
    $region40: #{mlp_mixer_layer.4} parent=5 // pred_fallthru
      _
    %p266 = scmp.le.s32.totalorder 1, %s15
    %p267 = scmp.lt.s32.totalorder %s15, 3
    %p268 = pnand %p266, %p267
    %p269 = pneg %p268
    // Predicated region
    $region45: #{mlp_mixer_layer.4} parent=5 // pred_check
      _
    $region46: #{mlp_mixer_layer.4} parent=5 // pred_check_branch
      %271 = sbr.rel (%p268) target = $region48
    $region47: #{mlp_mixer_layer.4} parent=5 // pred_region
      %s272 = ssub.s32 %s15, 1
      %s273 = smul.u32 4, %s20
      %p274 = scmp.lt.s32.totalorder %s273, 7
      %s275 = scalar_select %p274, %s273, 7
      %s276 = smul.addr %s275, 16
      %s277 = smul.addr %s276, 8
      %s278 = scalar_lea.vmem %s0, %s277
      %p279 = pneg %p41
      %p280 = pneg %p38
      %p281 = pneg %p62
      %p282 = pneg %p59
      %p283 = pneg %p83
      %p284 = pneg %p80
      %p285 = pneg %p104
      %p286 = pneg %p101
      %p287 = pneg %p125
      %p288 = pneg %p122
      %p289 = pneg %p146
      %p290 = pneg %p143
      %p291 = pneg %p167
      %p292 = pneg %p164
      %p293 = pneg %p193
      %p294 = pneg %p190
      %s295 = smul.u32 4, %s20
      %p296 = scmp.lt.s32.totalorder %s295, 7
      %s297 = scalar_select %p296, %s295, 7
      %s298 = smul.addr %s297, 16
      %s299 = smul.addr %s298, 8
      %s300 = scalar_lea.vmem %s7, %s299
      %p301 = pneg %p219
      %p302 = pneg %p216
      %p303 = scmp.lt.s32.totalorder %s20, 1
      %s304 = scalar_select %p303, %s20, 1
      %s305 = smul.addr %s304, 8
      %s306 = smul.addr %s305, 8
      %s307 = scalar_lea.vmem %s8, %s306
      %s308 = smul.u32 4, %s20
      %p309 = scmp.lt.s32.totalorder %s308, 7
      %s310 = scalar_select %p309, %s308, 7
      %s311 = smul.addr %s310, 16
      %s312 = smul.addr %s311, 8
      %s313 = scalar_lea.vmem %s0, %s312
      %s314 = smul.u32 4, %s20
      %s315 = smul.u32 4, %s20
      %p316 = scmp.lt.s32.totalorder %s315, 7
      %s317 = scalar_select %p316, %s315, 7
      %s318 = smul.addr %s317, 16
      %s319 = smul.addr %s318, 8
      %s320 = scalar_lea.vmem %s7, %s319
      %s321 = smul.u32 4, %s20
      %p322 = scmp.lt.s32.totalorder %s20, 1
      %s323 = scalar_select %p322, %s20, 1
      %s324 = smul.addr %s323, 8
      %s325 = smul.addr %s324, 8
      %s326 = scalar_lea.vmem %s8, %s325
      %v327 = vld [vmem:[%s1] sm:$0xff]
      %v328 = vld [vmem:[%s1 + $0x8] sm:$0xff]
      %v329 = vld [vmem:[%s1 + $0x10] sm:$0xff]
      %v330 = vld [vmem:[%s1 + $0x18] sm:$0xff]
      %v331 = vld [vmem:[%s1 + $0x20] sm:$0xff]
      %v332 = vld [vmem:[%s1 + $0x28] sm:$0xff]
      %v333 = vld [vmem:[%s1 + $0x30] sm:$0xff]
      %v334 = vld [vmem:[%s1 + $0x38] sm:$0xff]
      %v335 = vld [vmem:[%s2] sm:$0xff]
      %v336 = vld [vmem:[%s2 + $0x8] sm:$0xff]
      %v337 = vld [vmem:[%s2 + $0x10] sm:$0xff]
      %v338 = vld [vmem:[%s2 + $0x18] sm:$0xff]
      %v339 = vld [vmem:[%s2 + $0x20] sm:$0xff]
      %v340 = vld [vmem:[%s2 + $0x28] sm:$0xff]
      %v341 = vld [vmem:[%s2 + $0x30] sm:$0xff]
      %v342 = vld [vmem:[%s2 + $0x38] sm:$0xff]
      %v343 = vld [vmem:[%s3] sm:$0xff]
      %v344 = vld [vmem:[%s3 + $0x8] sm:$0xff]
      %v345 = vld [vmem:[%s3 + $0x10] sm:$0xff]
      %v346 = vld [vmem:[%s3 + $0x18] sm:$0xff]
      %v347 = vld [vmem:[%s3 + $0x20] sm:$0xff]
      %v348 = vld [vmem:[%s3 + $0x28] sm:$0xff]
      %v349 = vld [vmem:[%s3 + $0x30] sm:$0xff]
      %v350 = vld [vmem:[%s3 + $0x38] sm:$0xff]
      %v351 = vld [vmem:[%s5] sm:$0xff]
      %v352 = vld [vmem:[%s5 + $0x8] sm:$0xff]
      %v353 = vld [vmem:[%s5 + $0x10] sm:$0xff]
      %v354 = vld [vmem:[%s5 + $0x18] sm:$0xff]
      %v355 = vld [vmem:[%s5 + $0x20] sm:$0xff]
      %v356 = vld [vmem:[%s5 + $0x28] sm:$0xff]
      %v357 = vld [vmem:[%s5 + $0x30] sm:$0xff]
      %v358 = vld [vmem:[%s5 + $0x38] sm:$0xff]
      %v359 = vld [vmem:[%s4] sm:$0xff]
      %v360 = vld [vmem:[%s4 + $0x8] sm:$0xff]
      %v361 = vld [vmem:[%s4 + $0x10] sm:$0xff]
      %v362 = vld [vmem:[%s4 + $0x18] sm:$0xff]
      %v363 = vld [vmem:[%s4 + $0x20] sm:$0xff]
      %v364 = vld [vmem:[%s4 + $0x28] sm:$0xff]
      %v365 = vld [vmem:[%s4 + $0x30] sm:$0xff]
      %v366 = vld [vmem:[%s4 + $0x38] sm:$0xff]
      %v367 = vld [vmem:[%s6] sm:$0xff]
      %v368 = vld [vmem:[%s6 + $0x8] sm:$0xff]
      %v369 = vld [vmem:[%s6 + $0x10] sm:$0xff]
      %v370 = vld [vmem:[%s6 + $0x18] sm:$0xff]
      %v371 = vld [vmem:[%s6 + $0x20] sm:$0xff]
      %v372 = vld [vmem:[%s6 + $0x28] sm:$0xff]
      %v373 = vld [vmem:[%s6 + $0x30] sm:$0xff]
      %v374 = vld [vmem:[%s6 + $0x38] sm:$0xff]
      %v375 = vld [vmem:[%s313] sm:$0xff]
      %v376 = vld [vmem:[%s313 + $0x8] sm:$0xff]
      %v377 = vld [vmem:[%s313 + $0x10] sm:$0xff]
      %v378 = vld [vmem:[%s313 + $0x18] sm:$0xff]
      %v379 = vld [vmem:[%s313 + $0x20] sm:$0xff]
      %v380 = vld [vmem:[%s313 + $0x28] sm:$0xff]
      %v381 = vld [vmem:[%s313 + $0x30] sm:$0xff]
      %v382 = vld [vmem:[%s313 + $0x38] sm:$0xff]
      %v383 = vld [vmem:[%s313 + $0x40] sm:$0xff]
      %v384 = vld [vmem:[%s313 + $0x48] sm:$0xff]
      %v385 = vld [vmem:[%s313 + $0x50] sm:$0xff]
      %v386 = vld [vmem:[%s313 + $0x58] sm:$0xff]
      %v387 = vld [vmem:[%s313 + $0x60] sm:$0xff]
      %v388 = vld [vmem:[%s313 + $0x68] sm:$0xff]
      %v389 = vld [vmem:[%s313 + $0x70] sm:$0xff]
      %v390 = vld [vmem:[%s313 + $0x78] sm:$0xff]
      %392 = vset.pattern.permute.xlu0 0
      %393 = vperm.xlu0 %392, %v327
      %v394 = vpop.permute.xlu0 %393
      %397 = vset.pattern.permute.xlu0 0
      %398 = vperm.xlu0 %397, %v328
      %v399 = vpop.permute.xlu0 %398
      %402 = vset.pattern.permute.xlu0 0
      %403 = vperm.xlu0 %402, %v329
      %v404 = vpop.permute.xlu0 %403
      %407 = vset.pattern.permute.xlu0 0
      %408 = vperm.xlu0 %407, %v330
      %v409 = vpop.permute.xlu0 %408
      %412 = vset.pattern.permute.xlu0 0
      %413 = vperm.xlu0 %412, %v331
      %v414 = vpop.permute.xlu0 %413
      %417 = vset.pattern.permute.xlu0 0
      %418 = vperm.xlu0 %417, %v332
      %v419 = vpop.permute.xlu0 %418
      %422 = vset.pattern.permute.xlu0 0
      %423 = vperm.xlu0 %422, %v333
      %v424 = vpop.permute.xlu0 %423
      %427 = vset.pattern.permute.xlu0 0
      %428 = vperm.xlu0 %427, %v334
      %v429 = vpop.permute.xlu0 %428
      %v431 = vmul.f32 %v375, %v394
      %v432 = vmul.f32 %v376, %v394
      %v433 = vmul.f32 %v377, %v399
      %v434 = vmul.f32 %v378, %v399
      %v435 = vmul.f32 %v379, %v404
      %v436 = vmul.f32 %v380, %v404
      %v437 = vmul.f32 %v381, %v409
      %v438 = vmul.f32 %v382, %v409
      %v439 = vmul.f32 %v383, %v414
      %v440 = vmul.f32 %v384, %v414
      %v441 = vmul.f32 %v385, %v419
      %v442 = vmul.f32 %v386, %v419
      %v443 = vmul.f32 %v387, %v424
      %v444 = vmul.f32 %v388, %v424
      %v445 = vmul.f32 %v389, %v429
      %v446 = vmul.f32 %v390, %v429
      %448 = vset.pattern.permute.xlu0 0
      %449 = vperm.xlu0 %448, %v335
      %v450 = vpop.permute.xlu0 %449
      %453 = vset.pattern.permute.xlu0 0
      %454 = vperm.xlu0 %453, %v336
      %v455 = vpop.permute.xlu0 %454
      %458 = vset.pattern.permute.xlu0 0
      %459 = vperm.xlu0 %458, %v337
      %v460 = vpop.permute.xlu0 %459
      %463 = vset.pattern.permute.xlu0 0
      %464 = vperm.xlu0 %463, %v338
      %v465 = vpop.permute.xlu0 %464
      %468 = vset.pattern.permute.xlu0 0
      %469 = vperm.xlu0 %468, %v339
      %v470 = vpop.permute.xlu0 %469
      %473 = vset.pattern.permute.xlu0 0
      %474 = vperm.xlu0 %473, %v340
      %v475 = vpop.permute.xlu0 %474
      %478 = vset.pattern.permute.xlu0 0
      %479 = vperm.xlu0 %478, %v341
      %v480 = vpop.permute.xlu0 %479
      %483 = vset.pattern.permute.xlu0 0
      %484 = vperm.xlu0 %483, %v342
      %v485 = vpop.permute.xlu0 %484
      %v487 = vadd.f32 %v431, %v450
      %v488 = vadd.f32 %v432, %v450
      %v489 = vadd.f32 %v433, %v455
      %v490 = vadd.f32 %v434, %v455
      %v491 = vadd.f32 %v435, %v460
      %v492 = vadd.f32 %v436, %v460
      %v493 = vadd.f32 %v437, %v465
      %v494 = vadd.f32 %v438, %v465
      %v495 = vadd.f32 %v439, %v470
      %v496 = vadd.f32 %v440, %v470
      %v497 = vadd.f32 %v441, %v475
      %v498 = vadd.f32 %v442, %v475
      %v499 = vadd.f32 %v443, %v480
      %v500 = vadd.f32 %v444, %v480
      %v501 = vadd.f32 %v445, %v485
      %v502 = vadd.f32 %v446, %v485
      %504 = vset.pattern.permute.xlu0 0
      %505 = vperm.xlu0 %504, %v359
      %v506 = vpop.permute.xlu0 %505
      %509 = vset.pattern.permute.xlu0 0
      %510 = vperm.xlu0 %509, %v360
      %v511 = vpop.permute.xlu0 %510
      %514 = vset.pattern.permute.xlu0 0
      %515 = vperm.xlu0 %514, %v361
      %v516 = vpop.permute.xlu0 %515
      %519 = vset.pattern.permute.xlu0 0
      %520 = vperm.xlu0 %519, %v362
      %v521 = vpop.permute.xlu0 %520
      %524 = vset.pattern.permute.xlu0 0
      %525 = vperm.xlu0 %524, %v363
      %v526 = vpop.permute.xlu0 %525
      %529 = vset.pattern.permute.xlu0 0
      %530 = vperm.xlu0 %529, %v364
      %v531 = vpop.permute.xlu0 %530
      %534 = vset.pattern.permute.xlu0 0
      %535 = vperm.xlu0 %534, %v365
      %v536 = vpop.permute.xlu0 %535
      %539 = vset.pattern.permute.xlu0 0
      %540 = vperm.xlu0 %539, %v366
      %v541 = vpop.permute.xlu0 %540
      %vm543 = vcmask 523264
      %v545 = vsel %vm543, %v343, 0
      %v548 = vsel %vm543, %v344, 0
      %v551 = vsel %vm543, %v345, 0
      %v554 = vsel %vm543, %v346, 0
      %v557 = vsel %vm543, %v347, 0
      %v560 = vsel %vm543, %v348, 0
      %v563 = vsel %vm543, %v349, 0
      %v566 = vsel %vm543, %v350, 0
      %568 = vmatprep.subr.mxu0 0.0
      %569 = vmatpush1.msra.mxu0 0.0
      %570 = vmatprep.subr.mxu0 0.0
      %571 = vmatpush1.msra.mxu0 0.0
      %572 = vmatprep.subr.mxu0 0.0
      %573 = vmatpush1.msra.mxu0 0.0
      %574 = vmatprep.subr.mxu0 0.0
      %575 = vmatpush1.msra.mxu0 0.0
      %576 = vmatprep.subr.mxu0 0.0
      %577 = vmatpush1.msra.mxu0 0.0
      %578 = vmatprep.subr.mxu0 0.0
      %579 = vmatpush1.msra.mxu0 0.0
      %580 = vmatprep.subr.mxu0 0.0
      %581 = vmatpush1.msra.mxu0 0.0
      %582 = vmatprep.subr.mxu0 0.0
      %583 = vmatpush1.msra.mxu0 0.0
      %584 = vmatprep.subr.mxu0 %v502
      %585 = vmatpush1.msra.mxu0 %v501
      %586 = vmatprep.subr.mxu0 %v500
      %587 = vmatpush1.msra.mxu0 %v499
      %588 = vmatprep.subr.mxu0 %v498
      %589 = vmatpush1.msra.mxu0 %v497
      %590 = vmatprep.subr.mxu0 %v496
      %591 = vmatpush1.msra.mxu0 %v495
      %592 = vmatprep.subr.mxu0 %v494
      %593 = vmatpush1.msra.mxu0 %v493
      %594 = vmatprep.subr.mxu0 %v492
      %595 = vmatpush1.msra.mxu0 %v491
      %596 = vmatprep.subr.mxu0 %v490
      %597 = vmatpush1.msra.mxu0 %v489
      %598 = vmatprep.subr.mxu0 %v488
      %599 = vmatpush1.msra.mxu0 %v487
      %600 = vmatprep.subr.mxu0 0.0
      %601 = vmatpush2.msra.mxu0 0.0
      %602 = vmatprep.subr.mxu0 0.0
      %603 = vmatpush2.msra.mxu0 0.0
      %604 = vmatprep.subr.mxu0 0.0
      %605 = vmatpush2.msra.mxu0 0.0
      %606 = vmatprep.subr.mxu0 0.0
      %607 = vmatpush2.msra.mxu0 0.0
      %608 = vmatprep.subr.mxu0 0.0
      %609 = vmatpush2.msra.mxu0 0.0
      %610 = vmatprep.subr.mxu0 0.0
      %611 = vmatpush2.msra.mxu0 0.0
      %612 = vmatprep.subr.mxu0 0.0
      %613 = vmatpush2.msra.mxu0 0.0
      %614 = vmatprep.subr.mxu0 0.0
      %615 = vmatpush2.msra.mxu0 0.0
      %616 = vmatprep.subr.mxu0 0.0
      %617 = vmatpush2.msra.mxu0 0.0
      %618 = vmatprep.subr.mxu0 0.0
      %619 = vmatpush2.msra.mxu0 0.0
      %620 = vmatprep.subr.mxu0 0.0
      %621 = vmatpush2.msra.mxu0 0.0
      %622 = vmatprep.subr.mxu0 0.0
      %623 = vmatpush2.msra.mxu0 0.0
      %624 = vmatprep.subr.mxu0 0.0
      %625 = vmatpush2.msra.mxu0 0.0
      %626 = vmatprep.subr.mxu0 0.0
      %627 = vmatpush2.msra.mxu0 0.0
      %628 = vmatprep.subr.mxu0 0.0
      %629 = vmatpush2.msra.mxu0 0.0
      %630 = vmatprep.subr.mxu0 0.0
      %631 = vmatpush2.msra.mxu0 0.0
      %632 = vmatprep.mubr.f32.mxu0 0.0
      %633 = vmatmul.mubr.f32.gmra.mxu0 %v545
      %v634 = vpop.f32.mrf.mxu0
      %v635 = vadd.f32 %v506, %v634
      %v636 = vpop.f32.mrf.mxu0
      %v637 = vadd.f32 %v506, %v636
      %638 = vmatprep.mubr.f32.mxu0 0.0
      %639 = vmatmul.mubr.f32.gmra.mxu0 %v548
      %v640 = vpop.f32.mrf.mxu0
      %v641 = vadd.f32 %v511, %v640
      %v642 = vpop.f32.mrf.mxu0
      %v643 = vadd.f32 %v511, %v642
      %644 = vmatprep.mubr.f32.mxu0 0.0
      %645 = vmatmul.mubr.f32.gmra.mxu0 %v551
      %v646 = vpop.f32.mrf.mxu0
      %v647 = vadd.f32 %v516, %v646
      %v648 = vpop.f32.mrf.mxu0
      %v649 = vadd.f32 %v516, %v648
      %650 = vmatprep.mubr.f32.mxu0 0.0
      %651 = vmatmul.mubr.f32.gmra.mxu0 %v554
      %v652 = vpop.f32.mrf.mxu0
      %v653 = vadd.f32 %v521, %v652
      %v654 = vpop.f32.mrf.mxu0
      %v655 = vadd.f32 %v521, %v654
      %656 = vmatprep.mubr.f32.mxu0 0.0
      %657 = vmatmul.mubr.f32.gmra.mxu0 %v557
      %v658 = vpop.f32.mrf.mxu0
      %v659 = vadd.f32 %v526, %v658
      %v660 = vpop.f32.mrf.mxu0
      %v661 = vadd.f32 %v526, %v660
      %662 = vmatprep.mubr.f32.mxu0 0.0
      %663 = vmatmul.mubr.f32.gmra.mxu0 %v560
      %v664 = vpop.f32.mrf.mxu0
      %v665 = vadd.f32 %v531, %v664
      %v666 = vpop.f32.mrf.mxu0
      %v667 = vadd.f32 %v531, %v666
      %668 = vmatprep.mubr.f32.mxu0 0.0
      %669 = vmatmul.mubr.f32.gmra.mxu0 %v563
      %v670 = vpop.f32.mrf.mxu0
      %v671 = vadd.f32 %v536, %v670
      %v672 = vpop.f32.mrf.mxu0
      %v673 = vadd.f32 %v536, %v672
      %674 = vmatprep.mubr.f32.mxu0 0.0
      %675 = vmatmul.mubr.f32.gmra.mxu0 %v566
      %v676 = vpop.f32.mrf.mxu0
      %v677 = vadd.f32 %v541, %v676
      %v678 = vpop.f32.mrf.mxu0
      %v679 = vadd.f32 %v541, %v678
      %680 = vdwg.mxu0
      %v681 = vmul.f32 %v635, 0.5
      %v682 = vmul.f32 %v637, 0.5
      %v683 = vmul.f32 %v641, 0.5
      %v684 = vmul.f32 %v643, 0.5
      %v685 = vmul.f32 %v647, 0.5
      %v686 = vmul.f32 %v649, 0.5
      %v687 = vmul.f32 %v653, 0.5
      %v688 = vmul.f32 %v655, 0.5
      %v689 = vmul.f32 %v659, 0.5
      %v690 = vmul.f32 %v661, 0.5
      %v691 = vmul.f32 %v665, 0.5
      %v692 = vmul.f32 %v667, 0.5
      %v693 = vmul.f32 %v671, 0.5
      %v694 = vmul.f32 %v673, 0.5
      %v695 = vmul.f32 %v677, 0.5
      %v696 = vmul.f32 %v679, 0.5
      %v697 = vmul.f32 %v635, 0.70710677
      %v698 = vmul.f32 %v637, 0.70710677
      %v699 = vmul.f32 %v641, 0.70710677
      %v700 = vmul.f32 %v643, 0.70710677
      %v701 = vmul.f32 %v647, 0.70710677
      %v702 = vmul.f32 %v649, 0.70710677
      %v703 = vmul.f32 %v653, 0.70710677
      %v704 = vmul.f32 %v655, 0.70710677
      %v705 = vmul.f32 %v659, 0.70710677
      %v706 = vmul.f32 %v661, 0.70710677
      %v707 = vmul.f32 %v665, 0.70710677
      %v708 = vmul.f32 %v667, 0.70710677
      %v709 = vmul.f32 %v671, 0.70710677
      %v710 = vmul.f32 %v673, 0.70710677
      %v711 = vmul.f32 %v677, 0.70710677
      %v712 = vmul.f32 %v679, 0.70710677
      %v713 = verf.f32.pop %v697
      %v714 = verf.f32.pop %v698
      %v715 = verf.f32.pop %v699
      %v716 = verf.f32.pop %v700
      %v717 = verf.f32.pop %v701
      %v718 = verf.f32.pop %v702
      %v719 = verf.f32.pop %v703
      %v720 = verf.f32.pop %v704
      %v721 = verf.f32.pop %v705
      %v722 = verf.f32.pop %v706
      %v723 = verf.f32.pop %v707
      %v724 = verf.f32.pop %v708
      %v725 = verf.f32.pop %v709
      %v726 = verf.f32.pop %v710
      %v727 = verf.f32.pop %v711
      %v728 = verf.f32.pop %v712
      %v729 = vadd.f32 %v713, 1.0
      %v730 = vadd.f32 %v714, 1.0
      %v731 = vadd.f32 %v715, 1.0
      %v732 = vadd.f32 %v716, 1.0
      %v733 = vadd.f32 %v717, 1.0
      %v734 = vadd.f32 %v718, 1.0
      %v735 = vadd.f32 %v719, 1.0
      %v736 = vadd.f32 %v720, 1.0
      %v737 = vadd.f32 %v721, 1.0
      %v738 = vadd.f32 %v722, 1.0
      %v739 = vadd.f32 %v723, 1.0
      %v740 = vadd.f32 %v724, 1.0
      %v741 = vadd.f32 %v725, 1.0
      %v742 = vadd.f32 %v726, 1.0
      %v743 = vadd.f32 %v727, 1.0
      %v744 = vadd.f32 %v728, 1.0
      %v745 = vmul.f32 %v681, %v729
      %v746 = vmul.f32 %v682, %v730
      %v747 = vmul.f32 %v683, %v731
      %v748 = vmul.f32 %v684, %v732
      %v749 = vmul.f32 %v685, %v733
      %v750 = vmul.f32 %v686, %v734
      %v751 = vmul.f32 %v687, %v735
      %v752 = vmul.f32 %v688, %v736
      %v753 = vmul.f32 %v689, %v737
      %v754 = vmul.f32 %v690, %v738
      %v755 = vmul.f32 %v691, %v739
      %v756 = vmul.f32 %v692, %v740
      %v757 = vmul.f32 %v693, %v741
      %v758 = vmul.f32 %v694, %v742
      %v759 = vmul.f32 %v695, %v743
      %v760 = vmul.f32 %v696, %v744
      %762 = vset.pattern.permute.xlu0 0
      %763 = vperm.xlu0 %762, %v367
      %v764 = vpop.permute.xlu0 %763
      %767 = vset.pattern.permute.xlu0 0
      %768 = vperm.xlu0 %767, %v368
      %v769 = vpop.permute.xlu0 %768
      %772 = vset.pattern.permute.xlu0 0
      %773 = vperm.xlu0 %772, %v369
      %v774 = vpop.permute.xlu0 %773
      %777 = vset.pattern.permute.xlu0 0
      %778 = vperm.xlu0 %777, %v370
      %v779 = vpop.permute.xlu0 %778
      %782 = vset.pattern.permute.xlu0 0
      %783 = vperm.xlu0 %782, %v371
      %v784 = vpop.permute.xlu0 %783
      %787 = vset.pattern.permute.xlu0 0
      %788 = vperm.xlu0 %787, %v372
      %v789 = vpop.permute.xlu0 %788
      %792 = vset.pattern.permute.xlu0 0
      %793 = vperm.xlu0 %792, %v373
      %v794 = vpop.permute.xlu0 %793
      %797 = vset.pattern.permute.xlu0 0
      %798 = vperm.xlu0 %797, %v374
      %v799 = vpop.permute.xlu0 %798
      %v802 = vsel %vm543, %v351, 0
      %v805 = vsel %vm543, %v352, 0
      %v808 = vsel %vm543, %v353, 0
      %v811 = vsel %vm543, %v354, 0
      %v814 = vsel %vm543, %v355, 0
      %v817 = vsel %vm543, %v356, 0
      %v820 = vsel %vm543, %v357, 0
      %v823 = vsel %vm543, %v358, 0
      %825 = vmatprep.subr.mxu0 0.0
      %826 = vmatpush1.msra.mxu0 0.0
      %827 = vmatprep.subr.mxu0 0.0
      %828 = vmatpush1.msra.mxu0 0.0
      %829 = vmatprep.subr.mxu0 0.0
      %830 = vmatpush1.msra.mxu0 0.0
      %831 = vmatprep.subr.mxu0 0.0
      %832 = vmatpush1.msra.mxu0 0.0
      %833 = vmatprep.subr.mxu0 0.0
      %834 = vmatpush1.msra.mxu0 0.0
      %835 = vmatprep.subr.mxu0 0.0
      %836 = vmatpush1.msra.mxu0 0.0
      %837 = vmatprep.subr.mxu0 0.0
      %838 = vmatpush1.msra.mxu0 0.0
      %839 = vmatprep.subr.mxu0 0.0
      %840 = vmatpush1.msra.mxu0 0.0
      %841 = vmatprep.subr.mxu0 %v760
      %842 = vmatpush1.msra.mxu0 %v759
      %843 = vmatprep.subr.mxu0 %v758
      %844 = vmatpush1.msra.mxu0 %v757
      %845 = vmatprep.subr.mxu0 %v756
      %846 = vmatpush1.msra.mxu0 %v755
      %847 = vmatprep.subr.mxu0 %v754
      %848 = vmatpush1.msra.mxu0 %v753
      %849 = vmatprep.subr.mxu0 %v752
      %850 = vmatpush1.msra.mxu0 %v751
      %851 = vmatprep.subr.mxu0 %v750
      %852 = vmatpush1.msra.mxu0 %v749
      %853 = vmatprep.subr.mxu0 %v748
      %854 = vmatpush1.msra.mxu0 %v747
      %855 = vmatprep.subr.mxu0 %v746
      %856 = vmatpush1.msra.mxu0 %v745
      %857 = vmatprep.subr.mxu0 0.0
      %858 = vmatpush2.msra.mxu0 0.0
      %859 = vmatprep.subr.mxu0 0.0
      %860 = vmatpush2.msra.mxu0 0.0
      %861 = vmatprep.subr.mxu0 0.0
      %862 = vmatpush2.msra.mxu0 0.0
      %863 = vmatprep.subr.mxu0 0.0
      %864 = vmatpush2.msra.mxu0 0.0
      %865 = vmatprep.subr.mxu0 0.0
      %866 = vmatpush2.msra.mxu0 0.0
      %867 = vmatprep.subr.mxu0 0.0
      %868 = vmatpush2.msra.mxu0 0.0
      %869 = vmatprep.subr.mxu0 0.0
      %870 = vmatpush2.msra.mxu0 0.0
      %871 = vmatprep.subr.mxu0 0.0
      %872 = vmatpush2.msra.mxu0 0.0
      %873 = vmatprep.subr.mxu0 0.0
      %874 = vmatpush2.msra.mxu0 0.0
      %875 = vmatprep.subr.mxu0 0.0
      %876 = vmatpush2.msra.mxu0 0.0
      %877 = vmatprep.subr.mxu0 0.0
      %878 = vmatpush2.msra.mxu0 0.0
      %879 = vmatprep.subr.mxu0 0.0
      %880 = vmatpush2.msra.mxu0 0.0
      %881 = vmatprep.subr.mxu0 0.0
      %882 = vmatpush2.msra.mxu0 0.0
      %883 = vmatprep.subr.mxu0 0.0
      %884 = vmatpush2.msra.mxu0 0.0
      %885 = vmatprep.subr.mxu0 0.0
      %886 = vmatpush2.msra.mxu0 0.0
      %887 = vmatprep.subr.mxu0 0.0
      %888 = vmatpush2.msra.mxu0 0.0
      %889 = vmatprep.mubr.f32.mxu0 0.0
      %890 = vmatmul.mubr.f32.gmra.mxu0 %v802
      %v891 = vpop.f32.mrf.mxu0
      %v892 = vadd.f32 %v764, %v891
      %v893 = vpop.f32.mrf.mxu0
      %v894 = vadd.f32 %v764, %v893
      %895 = vmatprep.mubr.f32.mxu0 0.0
      %896 = vmatmul.mubr.f32.gmra.mxu0 %v805
      %v897 = vpop.f32.mrf.mxu0
      %v898 = vadd.f32 %v769, %v897
      %v899 = vpop.f32.mrf.mxu0
      %v900 = vadd.f32 %v769, %v899
      %901 = vmatprep.mubr.f32.mxu0 0.0
      %902 = vmatmul.mubr.f32.gmra.mxu0 %v808
      %v903 = vpop.f32.mrf.mxu0
      %v904 = vadd.f32 %v774, %v903
      %v905 = vpop.f32.mrf.mxu0
      %v906 = vadd.f32 %v774, %v905
      %907 = vmatprep.mubr.f32.mxu0 0.0
      %908 = vmatmul.mubr.f32.gmra.mxu0 %v811
      %v909 = vpop.f32.mrf.mxu0
      %v910 = vadd.f32 %v779, %v909
      %v911 = vpop.f32.mrf.mxu0
      %v912 = vadd.f32 %v779, %v911
      %913 = vmatprep.mubr.f32.mxu0 0.0
      %914 = vmatmul.mubr.f32.gmra.mxu0 %v814
      %v915 = vpop.f32.mrf.mxu0
      %v916 = vadd.f32 %v784, %v915
      %v917 = vpop.f32.mrf.mxu0
      %v918 = vadd.f32 %v784, %v917
      %919 = vmatprep.mubr.f32.mxu0 0.0
      %920 = vmatmul.mubr.f32.gmra.mxu0 %v817
      %v921 = vpop.f32.mrf.mxu0
      %v922 = vadd.f32 %v789, %v921
      %v923 = vpop.f32.mrf.mxu0
      %v924 = vadd.f32 %v789, %v923
      %925 = vmatprep.mubr.f32.mxu0 0.0
      %926 = vmatmul.mubr.f32.gmra.mxu0 %v820
      %v927 = vpop.f32.mrf.mxu0
      %v928 = vadd.f32 %v794, %v927
      %v929 = vpop.f32.mrf.mxu0
      %v930 = vadd.f32 %v794, %v929
      %931 = vmatprep.mubr.f32.mxu0 0.0
      %932 = vmatmul.mubr.f32.gmra.mxu0 %v823
      %v933 = vpop.f32.mrf.mxu0
      %v934 = vadd.f32 %v799, %v933
      %v935 = vpop.f32.mrf.mxu0
      %v936 = vadd.f32 %v799, %v935
      %937 = vdwg.mxu0
      %v938 = vadd.f32 %v375, %v892
      %v939 = vadd.f32 %v376, %v894
      %v940 = vadd.f32 %v377, %v898
      %v941 = vadd.f32 %v378, %v900
      %v942 = vadd.f32 %v379, %v904
      %v943 = vadd.f32 %v380, %v906
      %v944 = vadd.f32 %v381, %v910
      %v945 = vadd.f32 %v382, %v912
      %v946 = vadd.f32 %v383, %v916
      %v947 = vadd.f32 %v384, %v918
      %v948 = vadd.f32 %v385, %v922
      %v949 = vadd.f32 %v386, %v924
      %v950 = vadd.f32 %v387, %v928
      %v951 = vadd.f32 %v388, %v930
      %v952 = vadd.f32 %v389, %v934
      %v953 = vadd.f32 %v390, %v936
      %954 = vst [vmem:[%s320] sm:$0xff] %v938
      %955 = vst [vmem:[%s320 + $0x8] sm:$0xff] %v939
      %956 = vst [vmem:[%s320 + $0x10] sm:$0xff] %v940
      %957 = vst [vmem:[%s320 + $0x18] sm:$0xff] %v941
      %958 = vst [vmem:[%s320 + $0x20] sm:$0xff] %v942
      %959 = vst [vmem:[%s320 + $0x28] sm:$0xff] %v943
      %960 = vst [vmem:[%s320 + $0x30] sm:$0xff] %v944
      %961 = vst [vmem:[%s320 + $0x38] sm:$0xff] %v945
      %962 = vst [vmem:[%s320 + $0x40] sm:$0xff] %v946
      %963 = vst [vmem:[%s320 + $0x48] sm:$0xff] %v947
      %964 = vst [vmem:[%s320 + $0x50] sm:$0xff] %v948
      %965 = vst [vmem:[%s320 + $0x58] sm:$0xff] %v949
      %966 = vst [vmem:[%s320 + $0x60] sm:$0xff] %v950
      %967 = vst [vmem:[%s320 + $0x68] sm:$0xff] %v951
      %968 = vst [vmem:[%s320 + $0x70] sm:$0xff] %v952
      %969 = vst [vmem:[%s320 + $0x78] sm:$0xff] %v953
      %v970 = vadd.f32 %v938, %v939
      %971 = vadd.xlane.f32.xlu0 %v970
      %v972 = vpop.xlane.xlu0 %971
      %v973 = vadd.f32 %v940, %v941
      %974 = vadd.xlane.f32.xlu0 %v973
      %v975 = vpop.xlane.xlu0 %974
      %v976 = vadd.f32 %v942, %v943
      %977 = vadd.xlane.f32.xlu0 %v976
      %v978 = vpop.xlane.xlu0 %977
      %v979 = vadd.f32 %v944, %v945
      %980 = vadd.xlane.f32.xlu0 %v979
      %v981 = vpop.xlane.xlu0 %980
      %v982 = vadd.f32 %v946, %v947
      %983 = vadd.xlane.f32.xlu0 %v982
      %v984 = vpop.xlane.xlu0 %983
      %v985 = vadd.f32 %v948, %v949
      %986 = vadd.xlane.f32.xlu0 %v985
      %v987 = vpop.xlane.xlu0 %986
      %v988 = vadd.f32 %v950, %v951
      %989 = vadd.xlane.f32.xlu0 %v988
      %v990 = vpop.xlane.xlu0 %989
      %v991 = vadd.f32 %v952, %v953
      %992 = vadd.xlane.f32.xlu0 %v991
      %v993 = vpop.xlane.xlu0 %992
      %v994 = vadd.f32 %v972, 0.0
      %v995 = vadd.f32 %v975, 0.0
      %v996 = vadd.f32 %v978, 0.0
      %v997 = vadd.f32 %v981, 0.0
      %v998 = vadd.f32 %v984, 0.0
      %v999 = vadd.f32 %v987, 0.0
      %v1000 = vadd.f32 %v990, 0.0
      %v1001 = vadd.f32 %v993, 0.0
      %v1002 = vmul.f32 %v938, %v938
      %v1003 = vmul.f32 %v939, %v939
      %v1004 = vmul.f32 %v940, %v940
      %v1005 = vmul.f32 %v941, %v941
      %v1006 = vmul.f32 %v942, %v942
      %v1007 = vmul.f32 %v943, %v943
      %v1008 = vmul.f32 %v944, %v944
      %v1009 = vmul.f32 %v945, %v945
      %v1010 = vmul.f32 %v946, %v946
      %v1011 = vmul.f32 %v947, %v947
      %v1012 = vmul.f32 %v948, %v948
      %v1013 = vmul.f32 %v949, %v949
      %v1014 = vmul.f32 %v950, %v950
      %v1015 = vmul.f32 %v951, %v951
      %v1016 = vmul.f32 %v952, %v952
      %v1017 = vmul.f32 %v953, %v953
      %v1018 = vadd.f32 %v1002, %v1003
      %1019 = vadd.xlane.f32.xlu0 %v1018
      %v1020 = vpop.xlane.xlu0 %1019
      %v1021 = vadd.f32 %v1004, %v1005
      %1022 = vadd.xlane.f32.xlu0 %v1021
      %v1023 = vpop.xlane.xlu0 %1022
      %v1024 = vadd.f32 %v1006, %v1007
      %1025 = vadd.xlane.f32.xlu0 %v1024
      %v1026 = vpop.xlane.xlu0 %1025
      %v1027 = vadd.f32 %v1008, %v1009
      %1028 = vadd.xlane.f32.xlu0 %v1027
      %v1029 = vpop.xlane.xlu0 %1028
      %v1030 = vadd.f32 %v1010, %v1011
      %1031 = vadd.xlane.f32.xlu0 %v1030
      %v1032 = vpop.xlane.xlu0 %1031
      %v1033 = vadd.f32 %v1012, %v1013
      %1034 = vadd.xlane.f32.xlu0 %v1033
      %v1035 = vpop.xlane.xlu0 %1034
      %v1036 = vadd.f32 %v1014, %v1015
      %1037 = vadd.xlane.f32.xlu0 %v1036
      %v1038 = vpop.xlane.xlu0 %1037
      %v1039 = vadd.f32 %v1016, %v1017
      %1040 = vadd.xlane.f32.xlu0 %v1039
      %v1041 = vpop.xlane.xlu0 %1040
      %v1042 = vadd.f32 %v1020, 0.0
      %v1043 = vadd.f32 %v1023, 0.0
      %v1044 = vadd.f32 %v1026, 0.0
      %v1045 = vadd.f32 %v1029, 0.0
      %v1046 = vadd.f32 %v1032, 0.0
      %v1047 = vadd.f32 %v1035, 0.0
      %v1048 = vadd.f32 %v1038, 0.0
      %v1049 = vadd.f32 %v1041, 0.0
      %s1050 = scalar_lea.vmem %s313, 128
      %v1051 = vld [vmem:[%s1050] sm:$0xff]
      %v1052 = vld [vmem:[%s1050 + $0x8] sm:$0xff]
      %v1053 = vld [vmem:[%s1050 + $0x10] sm:$0xff]
      %v1054 = vld [vmem:[%s1050 + $0x18] sm:$0xff]
      %v1055 = vld [vmem:[%s1050 + $0x20] sm:$0xff]
      %v1056 = vld [vmem:[%s1050 + $0x28] sm:$0xff]
      %v1057 = vld [vmem:[%s1050 + $0x30] sm:$0xff]
      %v1058 = vld [vmem:[%s1050 + $0x38] sm:$0xff]
      %v1059 = vld [vmem:[%s1050 + $0x40] sm:$0xff]
      %v1060 = vld [vmem:[%s1050 + $0x48] sm:$0xff]
      %v1061 = vld [vmem:[%s1050 + $0x50] sm:$0xff]
      %v1062 = vld [vmem:[%s1050 + $0x58] sm:$0xff]
      %v1063 = vld [vmem:[%s1050 + $0x60] sm:$0xff]
      %v1064 = vld [vmem:[%s1050 + $0x68] sm:$0xff]
      %v1065 = vld [vmem:[%s1050 + $0x70] sm:$0xff]
      %v1066 = vld [vmem:[%s1050 + $0x78] sm:$0xff]
      %v1067 = vmul.f32 %v1051, %v394
      %v1068 = vmul.f32 %v1052, %v394
      %v1069 = vmul.f32 %v1053, %v399
      %v1070 = vmul.f32 %v1054, %v399
      %v1071 = vmul.f32 %v1055, %v404
      %v1072 = vmul.f32 %v1056, %v404
      %v1073 = vmul.f32 %v1057, %v409
      %v1074 = vmul.f32 %v1058, %v409
      %v1075 = vmul.f32 %v1059, %v414
      %v1076 = vmul.f32 %v1060, %v414
      %v1077 = vmul.f32 %v1061, %v419
      %v1078 = vmul.f32 %v1062, %v419
      %v1079 = vmul.f32 %v1063, %v424
      %v1080 = vmul.f32 %v1064, %v424
      %v1081 = vmul.f32 %v1065, %v429
      %v1082 = vmul.f32 %v1066, %v429
      %v1083 = vadd.f32 %v1067, %v450
      %v1084 = vadd.f32 %v1068, %v450
      %v1085 = vadd.f32 %v1069, %v455
      %v1086 = vadd.f32 %v1070, %v455
      %v1087 = vadd.f32 %v1071, %v460
      %v1088 = vadd.f32 %v1072, %v460
      %v1089 = vadd.f32 %v1073, %v465
      %v1090 = vadd.f32 %v1074, %v465
      %v1091 = vadd.f32 %v1075, %v470
      %v1092 = vadd.f32 %v1076, %v470
      %v1093 = vadd.f32 %v1077, %v475
      %v1094 = vadd.f32 %v1078, %v475
      %v1095 = vadd.f32 %v1079, %v480
      %v1096 = vadd.f32 %v1080, %v480
      %v1097 = vadd.f32 %v1081, %v485
      %v1098 = vadd.f32 %v1082, %v485
      %1099 = vmatprep.subr.mxu0 0.0
      %1100 = vmatpush1.msra.mxu0 0.0
      %1101 = vmatprep.subr.mxu0 0.0
      %1102 = vmatpush1.msra.mxu0 0.0
      %1103 = vmatprep.subr.mxu0 0.0
      %1104 = vmatpush1.msra.mxu0 0.0
      %1105 = vmatprep.subr.mxu0 0.0
      %1106 = vmatpush1.msra.mxu0 0.0
      %1107 = vmatprep.subr.mxu0 0.0
      %1108 = vmatpush1.msra.mxu0 0.0
      %1109 = vmatprep.subr.mxu0 0.0
      %1110 = vmatpush1.msra.mxu0 0.0
      %1111 = vmatprep.subr.mxu0 0.0
      %1112 = vmatpush1.msra.mxu0 0.0
      %1113 = vmatprep.subr.mxu0 0.0
      %1114 = vmatpush1.msra.mxu0 0.0
      %1115 = vmatprep.subr.mxu0 %v1098
      %1116 = vmatpush1.msra.mxu0 %v1097
      %1117 = vmatprep.subr.mxu0 %v1096
      %1118 = vmatpush1.msra.mxu0 %v1095
      %1119 = vmatprep.subr.mxu0 %v1094
      %1120 = vmatpush1.msra.mxu0 %v1093
      %1121 = vmatprep.subr.mxu0 %v1092
      %1122 = vmatpush1.msra.mxu0 %v1091
      %1123 = vmatprep.subr.mxu0 %v1090
      %1124 = vmatpush1.msra.mxu0 %v1089
      %1125 = vmatprep.subr.mxu0 %v1088
      %1126 = vmatpush1.msra.mxu0 %v1087
      %1127 = vmatprep.subr.mxu0 %v1086
      %1128 = vmatpush1.msra.mxu0 %v1085
      %1129 = vmatprep.subr.mxu0 %v1084
      %1130 = vmatpush1.msra.mxu0 %v1083
      %1131 = vmatprep.subr.mxu0 0.0
      %1132 = vmatpush2.msra.mxu0 0.0
      %1133 = vmatprep.subr.mxu0 0.0
      %1134 = vmatpush2.msra.mxu0 0.0
      %1135 = vmatprep.subr.mxu0 0.0
      %1136 = vmatpush2.msra.mxu0 0.0
      %1137 = vmatprep.subr.mxu0 0.0
      %1138 = vmatpush2.msra.mxu0 0.0
      %1139 = vmatprep.subr.mxu0 0.0
      %1140 = vmatpush2.msra.mxu0 0.0
      %1141 = vmatprep.subr.mxu0 0.0
      %1142 = vmatpush2.msra.mxu0 0.0
      %1143 = vmatprep.subr.mxu0 0.0
      %1144 = vmatpush2.msra.mxu0 0.0
      %1145 = vmatprep.subr.mxu0 0.0
      %1146 = vmatpush2.msra.mxu0 0.0
      %1147 = vmatprep.subr.mxu0 0.0
      %1148 = vmatpush2.msra.mxu0 0.0
      %1149 = vmatprep.subr.mxu0 0.0
      %1150 = vmatpush2.msra.mxu0 0.0
      %1151 = vmatprep.subr.mxu0 0.0
      %1152 = vmatpush2.msra.mxu0 0.0
      %1153 = vmatprep.subr.mxu0 0.0
      %1154 = vmatpush2.msra.mxu0 0.0
      %1155 = vmatprep.subr.mxu0 0.0
      %1156 = vmatpush2.msra.mxu0 0.0
      %1157 = vmatprep.subr.mxu0 0.0
      %1158 = vmatpush2.msra.mxu0 0.0
      %1159 = vmatprep.subr.mxu0 0.0
      %1160 = vmatpush2.msra.mxu0 0.0
      %1161 = vmatprep.subr.mxu0 0.0
      %1162 = vmatpush2.msra.mxu0 0.0
      %1163 = vmatprep.mubr.f32.mxu0 0.0
      %1164 = vmatmul.mubr.f32.gmra.mxu0 %v545
      %v1165 = vpop.f32.mrf.mxu0
      %v1166 = vadd.f32 %v506, %v1165
      %v1167 = vpop.f32.mrf.mxu0
      %v1168 = vadd.f32 %v506, %v1167
      %1169 = vmatprep.mubr.f32.mxu0 0.0
      %1170 = vmatmul.mubr.f32.gmra.mxu0 %v548
      %v1171 = vpop.f32.mrf.mxu0
      %v1172 = vadd.f32 %v511, %v1171
      %v1173 = vpop.f32.mrf.mxu0
      %v1174 = vadd.f32 %v511, %v1173
      %1175 = vmatprep.mubr.f32.mxu0 0.0
      %1176 = vmatmul.mubr.f32.gmra.mxu0 %v551
      %v1177 = vpop.f32.mrf.mxu0
      %v1178 = vadd.f32 %v516, %v1177
      %v1179 = vpop.f32.mrf.mxu0
      %v1180 = vadd.f32 %v516, %v1179
      %1181 = vmatprep.mubr.f32.mxu0 0.0
      %1182 = vmatmul.mubr.f32.gmra.mxu0 %v554
      %v1183 = vpop.f32.mrf.mxu0
      %v1184 = vadd.f32 %v521, %v1183
      %v1185 = vpop.f32.mrf.mxu0
      %v1186 = vadd.f32 %v521, %v1185
      %1187 = vmatprep.mubr.f32.mxu0 0.0
      %1188 = vmatmul.mubr.f32.gmra.mxu0 %v557
      %v1189 = vpop.f32.mrf.mxu0
      %v1190 = vadd.f32 %v526, %v1189
      %v1191 = vpop.f32.mrf.mxu0
      %v1192 = vadd.f32 %v526, %v1191
      %1193 = vmatprep.mubr.f32.mxu0 0.0
      %1194 = vmatmul.mubr.f32.gmra.mxu0 %v560
      %v1195 = vpop.f32.mrf.mxu0
      %v1196 = vadd.f32 %v531, %v1195
      %v1197 = vpop.f32.mrf.mxu0
      %v1198 = vadd.f32 %v531, %v1197
      %1199 = vmatprep.mubr.f32.mxu0 0.0
      %1200 = vmatmul.mubr.f32.gmra.mxu0 %v563
      %v1201 = vpop.f32.mrf.mxu0
      %v1202 = vadd.f32 %v536, %v1201
      %v1203 = vpop.f32.mrf.mxu0
      %v1204 = vadd.f32 %v536, %v1203
      %1205 = vmatprep.mubr.f32.mxu0 0.0
      %1206 = vmatmul.mubr.f32.gmra.mxu0 %v566
      %v1207 = vpop.f32.mrf.mxu0
      %v1208 = vadd.f32 %v541, %v1207
      %v1209 = vpop.f32.mrf.mxu0
      %v1210 = vadd.f32 %v541, %v1209
      %1211 = vdwg.mxu0
      %v1212 = vmul.f32 %v1166, 0.5
      %v1213 = vmul.f32 %v1168, 0.5
      %v1214 = vmul.f32 %v1172, 0.5
      %v1215 = vmul.f32 %v1174, 0.5
      %v1216 = vmul.f32 %v1178, 0.5
      %v1217 = vmul.f32 %v1180, 0.5
      %v1218 = vmul.f32 %v1184, 0.5
      %v1219 = vmul.f32 %v1186, 0.5
      %v1220 = vmul.f32 %v1190, 0.5
      %v1221 = vmul.f32 %v1192, 0.5
      %v1222 = vmul.f32 %v1196, 0.5
      %v1223 = vmul.f32 %v1198, 0.5
      %v1224 = vmul.f32 %v1202, 0.5
      %v1225 = vmul.f32 %v1204, 0.5
      %v1226 = vmul.f32 %v1208, 0.5
      %v1227 = vmul.f32 %v1210, 0.5
      %v1228 = vmul.f32 %v1166, 0.70710677
      %v1229 = vmul.f32 %v1168, 0.70710677
      %v1230 = vmul.f32 %v1172, 0.70710677
      %v1231 = vmul.f32 %v1174, 0.70710677
      %v1232 = vmul.f32 %v1178, 0.70710677
      %v1233 = vmul.f32 %v1180, 0.70710677
      %v1234 = vmul.f32 %v1184, 0.70710677
      %v1235 = vmul.f32 %v1186, 0.70710677
      %v1236 = vmul.f32 %v1190, 0.70710677
      %v1237 = vmul.f32 %v1192, 0.70710677
      %v1238 = vmul.f32 %v1196, 0.70710677
      %v1239 = vmul.f32 %v1198, 0.70710677
      %v1240 = vmul.f32 %v1202, 0.70710677
      %v1241 = vmul.f32 %v1204, 0.70710677
      %v1242 = vmul.f32 %v1208, 0.70710677
      %v1243 = vmul.f32 %v1210, 0.70710677
      %v1244 = verf.f32.pop %v1228
      %v1245 = verf.f32.pop %v1229
      %v1246 = verf.f32.pop %v1230
      %v1247 = verf.f32.pop %v1231
      %v1248 = verf.f32.pop %v1232
      %v1249 = verf.f32.pop %v1233
      %v1250 = verf.f32.pop %v1234
      %v1251 = verf.f32.pop %v1235
      %v1252 = verf.f32.pop %v1236
      %v1253 = verf.f32.pop %v1237
      %v1254 = verf.f32.pop %v1238
      %v1255 = verf.f32.pop %v1239
      %v1256 = verf.f32.pop %v1240
      %v1257 = verf.f32.pop %v1241
      %v1258 = verf.f32.pop %v1242
      %v1259 = verf.f32.pop %v1243
      %v1260 = vadd.f32 %v1244, 1.0
      %v1261 = vadd.f32 %v1245, 1.0
      %v1262 = vadd.f32 %v1246, 1.0
      %v1263 = vadd.f32 %v1247, 1.0
      %v1264 = vadd.f32 %v1248, 1.0
      %v1265 = vadd.f32 %v1249, 1.0
      %v1266 = vadd.f32 %v1250, 1.0
      %v1267 = vadd.f32 %v1251, 1.0
      %v1268 = vadd.f32 %v1252, 1.0
      %v1269 = vadd.f32 %v1253, 1.0
      %v1270 = vadd.f32 %v1254, 1.0
      %v1271 = vadd.f32 %v1255, 1.0
      %v1272 = vadd.f32 %v1256, 1.0
      %v1273 = vadd.f32 %v1257, 1.0
      %v1274 = vadd.f32 %v1258, 1.0
      %v1275 = vadd.f32 %v1259, 1.0
      %v1276 = vmul.f32 %v1212, %v1260
      %v1277 = vmul.f32 %v1213, %v1261
      %v1278 = vmul.f32 %v1214, %v1262
      %v1279 = vmul.f32 %v1215, %v1263
      %v1280 = vmul.f32 %v1216, %v1264
      %v1281 = vmul.f32 %v1217, %v1265
      %v1282 = vmul.f32 %v1218, %v1266
      %v1283 = vmul.f32 %v1219, %v1267
      %v1284 = vmul.f32 %v1220, %v1268
      %v1285 = vmul.f32 %v1221, %v1269
      %v1286 = vmul.f32 %v1222, %v1270
      %v1287 = vmul.f32 %v1223, %v1271
      %v1288 = vmul.f32 %v1224, %v1272
      %v1289 = vmul.f32 %v1225, %v1273
      %v1290 = vmul.f32 %v1226, %v1274
      %v1291 = vmul.f32 %v1227, %v1275
      %1292 = vmatprep.subr.mxu0 0.0
      %1293 = vmatpush1.msra.mxu0 0.0
      %1294 = vmatprep.subr.mxu0 0.0
      %1295 = vmatpush1.msra.mxu0 0.0
      %1296 = vmatprep.subr.mxu0 0.0
      %1297 = vmatpush1.msra.mxu0 0.0
      %1298 = vmatprep.subr.mxu0 0.0
      %1299 = vmatpush1.msra.mxu0 0.0
      %1300 = vmatprep.subr.mxu0 0.0
      %1301 = vmatpush1.msra.mxu0 0.0
      %1302 = vmatprep.subr.mxu0 0.0
      %1303 = vmatpush1.msra.mxu0 0.0
      %1304 = vmatprep.subr.mxu0 0.0
      %1305 = vmatpush1.msra.mxu0 0.0
      %1306 = vmatprep.subr.mxu0 0.0
      %1307 = vmatpush1.msra.mxu0 0.0
      %1308 = vmatprep.subr.mxu0 %v1291
      %1309 = vmatpush1.msra.mxu0 %v1290
      %1310 = vmatprep.subr.mxu0 %v1289
      %1311 = vmatpush1.msra.mxu0 %v1288
      %1312 = vmatprep.subr.mxu0 %v1287
      %1313 = vmatpush1.msra.mxu0 %v1286
      %1314 = vmatprep.subr.mxu0 %v1285
      %1315 = vmatpush1.msra.mxu0 %v1284
      %1316 = vmatprep.subr.mxu0 %v1283
      %1317 = vmatpush1.msra.mxu0 %v1282
      %1318 = vmatprep.subr.mxu0 %v1281
      %1319 = vmatpush1.msra.mxu0 %v1280
      %1320 = vmatprep.subr.mxu0 %v1279
      %1321 = vmatpush1.msra.mxu0 %v1278
      %1322 = vmatprep.subr.mxu0 %v1277
      %1323 = vmatpush1.msra.mxu0 %v1276
      %1324 = vmatprep.subr.mxu0 0.0
      %1325 = vmatpush2.msra.mxu0 0.0
      %1326 = vmatprep.subr.mxu0 0.0
      %1327 = vmatpush2.msra.mxu0 0.0
      %1328 = vmatprep.subr.mxu0 0.0
      %1329 = vmatpush2.msra.mxu0 0.0
      %1330 = vmatprep.subr.mxu0 0.0
      %1331 = vmatpush2.msra.mxu0 0.0
      %1332 = vmatprep.subr.mxu0 0.0
      %1333 = vmatpush2.msra.mxu0 0.0
      %1334 = vmatprep.subr.mxu0 0.0
      %1335 = vmatpush2.msra.mxu0 0.0
      %1336 = vmatprep.subr.mxu0 0.0
      %1337 = vmatpush2.msra.mxu0 0.0
      %1338 = vmatprep.subr.mxu0 0.0
      %1339 = vmatpush2.msra.mxu0 0.0
      %1340 = vmatprep.subr.mxu0 0.0
      %1341 = vmatpush2.msra.mxu0 0.0
      %1342 = vmatprep.subr.mxu0 0.0
      %1343 = vmatpush2.msra.mxu0 0.0
      %1344 = vmatprep.subr.mxu0 0.0
      %1345 = vmatpush2.msra.mxu0 0.0
      %1346 = vmatprep.subr.mxu0 0.0
      %1347 = vmatpush2.msra.mxu0 0.0
      %1348 = vmatprep.subr.mxu0 0.0
      %1349 = vmatpush2.msra.mxu0 0.0
      %1350 = vmatprep.subr.mxu0 0.0
      %1351 = vmatpush2.msra.mxu0 0.0
      %1352 = vmatprep.subr.mxu0 0.0
      %1353 = vmatpush2.msra.mxu0 0.0
      %1354 = vmatprep.subr.mxu0 0.0
      %1355 = vmatpush2.msra.mxu0 0.0
      %1356 = vmatprep.mubr.f32.mxu0 0.0
      %1357 = vmatmul.mubr.f32.gmra.mxu0 %v802
      %v1358 = vpop.f32.mrf.mxu0
      %v1359 = vadd.f32 %v764, %v1358
      %v1360 = vpop.f32.mrf.mxu0
      %v1361 = vadd.f32 %v764, %v1360
      %1362 = vmatprep.mubr.f32.mxu0 0.0
      %1363 = vmatmul.mubr.f32.gmra.mxu0 %v805
      %v1364 = vpop.f32.mrf.mxu0
      %v1365 = vadd.f32 %v769, %v1364
      %v1366 = vpop.f32.mrf.mxu0
      %v1367 = vadd.f32 %v769, %v1366
      %1368 = vmatprep.mubr.f32.mxu0 0.0
      %1369 = vmatmul.mubr.f32.gmra.mxu0 %v808
      %v1370 = vpop.f32.mrf.mxu0
      %v1371 = vadd.f32 %v774, %v1370
      %v1372 = vpop.f32.mrf.mxu0
      %v1373 = vadd.f32 %v774, %v1372
      %1374 = vmatprep.mubr.f32.mxu0 0.0
      %1375 = vmatmul.mubr.f32.gmra.mxu0 %v811
      %v1376 = vpop.f32.mrf.mxu0
      %v1377 = vadd.f32 %v779, %v1376
      %v1378 = vpop.f32.mrf.mxu0
      %v1379 = vadd.f32 %v779, %v1378
      %1380 = vmatprep.mubr.f32.mxu0 0.0
      %1381 = vmatmul.mubr.f32.gmra.mxu0 %v814
      %v1382 = vpop.f32.mrf.mxu0
      %v1383 = vadd.f32 %v784, %v1382
      %v1384 = vpop.f32.mrf.mxu0
      %v1385 = vadd.f32 %v784, %v1384
      %1386 = vmatprep.mubr.f32.mxu0 0.0
      %1387 = vmatmul.mubr.f32.gmra.mxu0 %v817
      %v1388 = vpop.f32.mrf.mxu0
      %v1389 = vadd.f32 %v789, %v1388
      %v1390 = vpop.f32.mrf.mxu0
      %v1391 = vadd.f32 %v789, %v1390
      %1392 = vmatprep.mubr.f32.mxu0 0.0
      %1393 = vmatmul.mubr.f32.gmra.mxu0 %v820
      %v1394 = vpop.f32.mrf.mxu0
      %v1395 = vadd.f32 %v794, %v1394
      %v1396 = vpop.f32.mrf.mxu0
      %v1397 = vadd.f32 %v794, %v1396
      %1398 = vmatprep.mubr.f32.mxu0 0.0
      %1399 = vmatmul.mubr.f32.gmra.mxu0 %v823
      %v1400 = vpop.f32.mrf.mxu0
      %v1401 = vadd.f32 %v799, %v1400
      %v1402 = vpop.f32.mrf.mxu0
      %v1403 = vadd.f32 %v799, %v1402
      %1404 = vdwg.mxu0
      %v1405 = vadd.f32 %v1051, %v1359
      %v1406 = vadd.f32 %v1052, %v1361
      %v1407 = vadd.f32 %v1053, %v1365
      %v1408 = vadd.f32 %v1054, %v1367
      %v1409 = vadd.f32 %v1055, %v1371
      %v1410 = vadd.f32 %v1056, %v1373
      %v1411 = vadd.f32 %v1057, %v1377
      %v1412 = vadd.f32 %v1058, %v1379
      %v1413 = vadd.f32 %v1059, %v1383
      %v1414 = vadd.f32 %v1060, %v1385
      %v1415 = vadd.f32 %v1061, %v1389
      %v1416 = vadd.f32 %v1062, %v1391
      %v1417 = vadd.f32 %v1063, %v1395
      %v1418 = vadd.f32 %v1064, %v1397
      %v1419 = vadd.f32 %v1065, %v1401
      %v1420 = vadd.f32 %v1066, %v1403
      %s1421 = scalar_lea.vmem %s320, 128
      %1422 = vst [vmem:[%s1421] sm:$0xff] %v1405
      %1423 = vst [vmem:[%s1421 + $0x8] sm:$0xff] %v1406
      %1424 = vst [vmem:[%s1421 + $0x10] sm:$0xff] %v1407
      %1425 = vst [vmem:[%s1421 + $0x18] sm:$0xff] %v1408
      %1426 = vst [vmem:[%s1421 + $0x20] sm:$0xff] %v1409
      %1427 = vst [vmem:[%s1421 + $0x28] sm:$0xff] %v1410
      %1428 = vst [vmem:[%s1421 + $0x30] sm:$0xff] %v1411
      %1429 = vst [vmem:[%s1421 + $0x38] sm:$0xff] %v1412
      %1430 = vst [vmem:[%s1421 + $0x40] sm:$0xff] %v1413
      %1431 = vst [vmem:[%s1421 + $0x48] sm:$0xff] %v1414
      %1432 = vst [vmem:[%s1421 + $0x50] sm:$0xff] %v1415
      %1433 = vst [vmem:[%s1421 + $0x58] sm:$0xff] %v1416
      %1434 = vst [vmem:[%s1421 + $0x60] sm:$0xff] %v1417
      %1435 = vst [vmem:[%s1421 + $0x68] sm:$0xff] %v1418
      %1436 = vst [vmem:[%s1421 + $0x70] sm:$0xff] %v1419
      %1437 = vst [vmem:[%s1421 + $0x78] sm:$0xff] %v1420
      %v1438 = vadd.f32 %v1405, %v1406
      %1439 = vadd.xlane.f32.xlu0 %v1438
      %v1440 = vpop.xlane.xlu0 %1439
      %v1441 = vadd.f32 %v1407, %v1408
      %1442 = vadd.xlane.f32.xlu0 %v1441
      %v1443 = vpop.xlane.xlu0 %1442
      %v1444 = vadd.f32 %v1409, %v1410
      %1445 = vadd.xlane.f32.xlu0 %v1444
      %v1446 = vpop.xlane.xlu0 %1445
      %v1447 = vadd.f32 %v1411, %v1412
      %1448 = vadd.xlane.f32.xlu0 %v1447
      %v1449 = vpop.xlane.xlu0 %1448
      %v1450 = vadd.f32 %v1413, %v1414
      %1451 = vadd.xlane.f32.xlu0 %v1450
      %v1452 = vpop.xlane.xlu0 %1451
      %v1453 = vadd.f32 %v1415, %v1416
      %1454 = vadd.xlane.f32.xlu0 %v1453
      %v1455 = vpop.xlane.xlu0 %1454
      %v1456 = vadd.f32 %v1417, %v1418
      %1457 = vadd.xlane.f32.xlu0 %v1456
      %v1458 = vpop.xlane.xlu0 %1457
      %v1459 = vadd.f32 %v1419, %v1420
      %1460 = vadd.xlane.f32.xlu0 %v1459
      %v1461 = vpop.xlane.xlu0 %1460
      %v1462 = vadd.f32 %v994, %v1440
      %v1463 = vadd.f32 %v995, %v1443
      %v1464 = vadd.f32 %v996, %v1446
      %v1465 = vadd.f32 %v997, %v1449
      %v1466 = vadd.f32 %v998, %v1452
      %v1467 = vadd.f32 %v999, %v1455
      %v1468 = vadd.f32 %v1000, %v1458
      %v1469 = vadd.f32 %v1001, %v1461
      %v1470 = vmul.f32 %v1405, %v1405
      %v1471 = vmul.f32 %v1406, %v1406
      %v1472 = vmul.f32 %v1407, %v1407
      %v1473 = vmul.f32 %v1408, %v1408
      %v1474 = vmul.f32 %v1409, %v1409
      %v1475 = vmul.f32 %v1410, %v1410
      %v1476 = vmul.f32 %v1411, %v1411
      %v1477 = vmul.f32 %v1412, %v1412
      %v1478 = vmul.f32 %v1413, %v1413
      %v1479 = vmul.f32 %v1414, %v1414
      %v1480 = vmul.f32 %v1415, %v1415
      %v1481 = vmul.f32 %v1416, %v1416
      %v1482 = vmul.f32 %v1417, %v1417
      %v1483 = vmul.f32 %v1418, %v1418
      %v1484 = vmul.f32 %v1419, %v1419
      %v1485 = vmul.f32 %v1420, %v1420
      %v1486 = vadd.f32 %v1470, %v1471
      %1487 = vadd.xlane.f32.xlu0 %v1486
      %v1488 = vpop.xlane.xlu0 %1487
      %v1489 = vadd.f32 %v1472, %v1473
      %1490 = vadd.xlane.f32.xlu0 %v1489
      %v1491 = vpop.xlane.xlu0 %1490
      %v1492 = vadd.f32 %v1474, %v1475
      %1493 = vadd.xlane.f32.xlu0 %v1492
      %v1494 = vpop.xlane.xlu0 %1493
      %v1495 = vadd.f32 %v1476, %v1477
      %1496 = vadd.xlane.f32.xlu0 %v1495
      %v1497 = vpop.xlane.xlu0 %1496
      %v1498 = vadd.f32 %v1478, %v1479
      %1499 = vadd.xlane.f32.xlu0 %v1498
      %v1500 = vpop.xlane.xlu0 %1499
      %v1501 = vadd.f32 %v1480, %v1481
      %1502 = vadd.xlane.f32.xlu0 %v1501
      %v1503 = vpop.xlane.xlu0 %1502
      %v1504 = vadd.f32 %v1482, %v1483
      %1505 = vadd.xlane.f32.xlu0 %v1504
      %v1506 = vpop.xlane.xlu0 %1505
      %v1507 = vadd.f32 %v1484, %v1485
      %1508 = vadd.xlane.f32.xlu0 %v1507
      %v1509 = vpop.xlane.xlu0 %1508
      %v1510 = vadd.f32 %v1042, %v1488
      %v1511 = vadd.f32 %v1043, %v1491
      %v1512 = vadd.f32 %v1044, %v1494
      %v1513 = vadd.f32 %v1045, %v1497
      %v1514 = vadd.f32 %v1046, %v1500
      %v1515 = vadd.f32 %v1047, %v1503
      %v1516 = vadd.f32 %v1048, %v1506
      %v1517 = vadd.f32 %v1049, %v1509
      %s1518 = scalar_lea.vmem %s313, 256
      %v1519 = vld [vmem:[%s1518] sm:$0xff]
      %v1520 = vld [vmem:[%s1518 + $0x8] sm:$0xff]
      %v1521 = vld [vmem:[%s1518 + $0x10] sm:$0xff]
      %v1522 = vld [vmem:[%s1518 + $0x18] sm:$0xff]
      %v1523 = vld [vmem:[%s1518 + $0x20] sm:$0xff]
      %v1524 = vld [vmem:[%s1518 + $0x28] sm:$0xff]
      %v1525 = vld [vmem:[%s1518 + $0x30] sm:$0xff]
      %v1526 = vld [vmem:[%s1518 + $0x38] sm:$0xff]
      %v1527 = vld [vmem:[%s1518 + $0x40] sm:$0xff]
      %v1528 = vld [vmem:[%s1518 + $0x48] sm:$0xff]
      %v1529 = vld [vmem:[%s1518 + $0x50] sm:$0xff]
      %v1530 = vld [vmem:[%s1518 + $0x58] sm:$0xff]
      %v1531 = vld [vmem:[%s1518 + $0x60] sm:$0xff]
      %v1532 = vld [vmem:[%s1518 + $0x68] sm:$0xff]
      %v1533 = vld [vmem:[%s1518 + $0x70] sm:$0xff]
      %v1534 = vld [vmem:[%s1518 + $0x78] sm:$0xff]
      %v1535 = vmul.f32 %v1519, %v394
      %v1536 = vmul.f32 %v1520, %v394
      %v1537 = vmul.f32 %v1521, %v399
      %v1538 = vmul.f32 %v1522, %v399
      %v1539 = vmul.f32 %v1523, %v404
      %v1540 = vmul.f32 %v1524, %v404
      %v1541 = vmul.f32 %v1525, %v409
      %v1542 = vmul.f32 %v1526, %v409
      %v1543 = vmul.f32 %v1527, %v414
      %v1544 = vmul.f32 %v1528, %v414
      %v1545 = vmul.f32 %v1529, %v419
      %v1546 = vmul.f32 %v1530, %v419
      %v1547 = vmul.f32 %v1531, %v424
      %v1548 = vmul.f32 %v1532, %v424
      %v1549 = vmul.f32 %v1533, %v429
      %v1550 = vmul.f32 %v1534, %v429
      %v1551 = vadd.f32 %v1535, %v450
      %v1552 = vadd.f32 %v1536, %v450
      %v1553 = vadd.f32 %v1537, %v455
      %v1554 = vadd.f32 %v1538, %v455
      %v1555 = vadd.f32 %v1539, %v460
      %v1556 = vadd.f32 %v1540, %v460
      %v1557 = vadd.f32 %v1541, %v465
      %v1558 = vadd.f32 %v1542, %v465
      %v1559 = vadd.f32 %v1543, %v470
      %v1560 = vadd.f32 %v1544, %v470
      %v1561 = vadd.f32 %v1545, %v475
      %v1562 = vadd.f32 %v1546, %v475
      %v1563 = vadd.f32 %v1547, %v480
      %v1564 = vadd.f32 %v1548, %v480
      %v1565 = vadd.f32 %v1549, %v485
      %v1566 = vadd.f32 %v1550, %v485
      %1567 = vmatprep.subr.mxu0 0.0
      %1568 = vmatpush1.msra.mxu0 0.0
      %1569 = vmatprep.subr.mxu0 0.0
      %1570 = vmatpush1.msra.mxu0 0.0
      %1571 = vmatprep.subr.mxu0 0.0
      %1572 = vmatpush1.msra.mxu0 0.0
      %1573 = vmatprep.subr.mxu0 0.0
      %1574 = vmatpush1.msra.mxu0 0.0
      %1575 = vmatprep.subr.mxu0 0.0
      %1576 = vmatpush1.msra.mxu0 0.0
      %1577 = vmatprep.subr.mxu0 0.0
      %1578 = vmatpush1.msra.mxu0 0.0
      %1579 = vmatprep.subr.mxu0 0.0
      %1580 = vmatpush1.msra.mxu0 0.0
      %1581 = vmatprep.subr.mxu0 0.0
      %1582 = vmatpush1.msra.mxu0 0.0
      %1583 = vmatprep.subr.mxu0 %v1566
      %1584 = vmatpush1.msra.mxu0 %v1565
      %1585 = vmatprep.subr.mxu0 %v1564
      %1586 = vmatpush1.msra.mxu0 %v1563
      %1587 = vmatprep.subr.mxu0 %v1562
      %1588 = vmatpush1.msra.mxu0 %v1561
      %1589 = vmatprep.subr.mxu0 %v1560
      %1590 = vmatpush1.msra.mxu0 %v1559
      %1591 = vmatprep.subr.mxu0 %v1558
      %1592 = vmatpush1.msra.mxu0 %v1557
      %1593 = vmatprep.subr.mxu0 %v1556
      %1594 = vmatpush1.msra.mxu0 %v1555
      %1595 = vmatprep.subr.mxu0 %v1554
      %1596 = vmatpush1.msra.mxu0 %v1553
      %1597 = vmatprep.subr.mxu0 %v1552
      %1598 = vmatpush1.msra.mxu0 %v1551
      %1599 = vmatprep.subr.mxu0 0.0
      %1600 = vmatpush2.msra.mxu0 0.0
      %1601 = vmatprep.subr.mxu0 0.0
      %1602 = vmatpush2.msra.mxu0 0.0
      %1603 = vmatprep.subr.mxu0 0.0
      %1604 = vmatpush2.msra.mxu0 0.0
      %1605 = vmatprep.subr.mxu0 0.0
      %1606 = vmatpush2.msra.mxu0 0.0
      %1607 = vmatprep.subr.mxu0 0.0
      %1608 = vmatpush2.msra.mxu0 0.0
      %1609 = vmatprep.subr.mxu0 0.0
      %1610 = vmatpush2.msra.mxu0 0.0
      %1611 = vmatprep.subr.mxu0 0.0
      %1612 = vmatpush2.msra.mxu0 0.0
      %1613 = vmatprep.subr.mxu0 0.0
      %1614 = vmatpush2.msra.mxu0 0.0
      %1615 = vmatprep.subr.mxu0 0.0
      %1616 = vmatpush2.msra.mxu0 0.0
      %1617 = vmatprep.subr.mxu0 0.0
      %1618 = vmatpush2.msra.mxu0 0.0
      %1619 = vmatprep.subr.mxu0 0.0
      %1620 = vmatpush2.msra.mxu0 0.0
      %1621 = vmatprep.subr.mxu0 0.0
      %1622 = vmatpush2.msra.mxu0 0.0
      %1623 = vmatprep.subr.mxu0 0.0
      %1624 = vmatpush2.msra.mxu0 0.0
      %1625 = vmatprep.subr.mxu0 0.0
      %1626 = vmatpush2.msra.mxu0 0.0
      %1627 = vmatprep.subr.mxu0 0.0
      %1628 = vmatpush2.msra.mxu0 0.0
      %1629 = vmatprep.subr.mxu0 0.0
      %1630 = vmatpush2.msra.mxu0 0.0
      %1631 = vmatprep.mubr.f32.mxu0 0.0
      %1632 = vmatmul.mubr.f32.gmra.mxu0 %v545
      %v1633 = vpop.f32.mrf.mxu0
      %v1634 = vadd.f32 %v506, %v1633
      %v1635 = vpop.f32.mrf.mxu0
      %v1636 = vadd.f32 %v506, %v1635
      %1637 = vmatprep.mubr.f32.mxu0 0.0
      %1638 = vmatmul.mubr.f32.gmra.mxu0 %v548
      %v1639 = vpop.f32.mrf.mxu0
      %v1640 = vadd.f32 %v511, %v1639
      %v1641 = vpop.f32.mrf.mxu0
      %v1642 = vadd.f32 %v511, %v1641
      %1643 = vmatprep.mubr.f32.mxu0 0.0
      %1644 = vmatmul.mubr.f32.gmra.mxu0 %v551
      %v1645 = vpop.f32.mrf.mxu0
      %v1646 = vadd.f32 %v516, %v1645
      %v1647 = vpop.f32.mrf.mxu0
      %v1648 = vadd.f32 %v516, %v1647
      %1649 = vmatprep.mubr.f32.mxu0 0.0
      %1650 = vmatmul.mubr.f32.gmra.mxu0 %v554
      %v1651 = vpop.f32.mrf.mxu0
      %v1652 = vadd.f32 %v521, %v1651
      %v1653 = vpop.f32.mrf.mxu0
      %v1654 = vadd.f32 %v521, %v1653
      %1655 = vmatprep.mubr.f32.mxu0 0.0
      %1656 = vmatmul.mubr.f32.gmra.mxu0 %v557
      %v1657 = vpop.f32.mrf.mxu0
      %v1658 = vadd.f32 %v526, %v1657
      %v1659 = vpop.f32.mrf.mxu0
      %v1660 = vadd.f32 %v526, %v1659
      %1661 = vmatprep.mubr.f32.mxu0 0.0
      %1662 = vmatmul.mubr.f32.gmra.mxu0 %v560
      %v1663 = vpop.f32.mrf.mxu0
      %v1664 = vadd.f32 %v531, %v1663
      %v1665 = vpop.f32.mrf.mxu0
      %v1666 = vadd.f32 %v531, %v1665
      %1667 = vmatprep.mubr.f32.mxu0 0.0
      %1668 = vmatmul.mubr.f32.gmra.mxu0 %v563
      %v1669 = vpop.f32.mrf.mxu0
      %v1670 = vadd.f32 %v536, %v1669
      %v1671 = vpop.f32.mrf.mxu0
      %v1672 = vadd.f32 %v536, %v1671
      %1673 = vmatprep.mubr.f32.mxu0 0.0
      %1674 = vmatmul.mubr.f32.gmra.mxu0 %v566
      %v1675 = vpop.f32.mrf.mxu0
      %v1676 = vadd.f32 %v541, %v1675
      %v1677 = vpop.f32.mrf.mxu0
      %v1678 = vadd.f32 %v541, %v1677
      %1679 = vdwg.mxu0
      %v1680 = vmul.f32 %v1634, 0.5
      %v1681 = vmul.f32 %v1636, 0.5
      %v1682 = vmul.f32 %v1640, 0.5
      %v1683 = vmul.f32 %v1642, 0.5
      %v1684 = vmul.f32 %v1646, 0.5
      %v1685 = vmul.f32 %v1648, 0.5
      %v1686 = vmul.f32 %v1652, 0.5
      %v1687 = vmul.f32 %v1654, 0.5
      %v1688 = vmul.f32 %v1658, 0.5
      %v1689 = vmul.f32 %v1660, 0.5
      %v1690 = vmul.f32 %v1664, 0.5
      %v1691 = vmul.f32 %v1666, 0.5
      %v1692 = vmul.f32 %v1670, 0.5
      %v1693 = vmul.f32 %v1672, 0.5
      %v1694 = vmul.f32 %v1676, 0.5
      %v1695 = vmul.f32 %v1678, 0.5
      %v1696 = vmul.f32 %v1634, 0.70710677
      %v1697 = vmul.f32 %v1636, 0.70710677
      %v1698 = vmul.f32 %v1640, 0.70710677
      %v1699 = vmul.f32 %v1642, 0.70710677
      %v1700 = vmul.f32 %v1646, 0.70710677
      %v1701 = vmul.f32 %v1648, 0.70710677
      %v1702 = vmul.f32 %v1652, 0.70710677
      %v1703 = vmul.f32 %v1654, 0.70710677
      %v1704 = vmul.f32 %v1658, 0.70710677
      %v1705 = vmul.f32 %v1660, 0.70710677
      %v1706 = vmul.f32 %v1664, 0.70710677
      %v1707 = vmul.f32 %v1666, 0.70710677
      %v1708 = vmul.f32 %v1670, 0.70710677
      %v1709 = vmul.f32 %v1672, 0.70710677
      %v1710 = vmul.f32 %v1676, 0.70710677
      %v1711 = vmul.f32 %v1678, 0.70710677
      %v1712 = verf.f32.pop %v1696
      %v1713 = verf.f32.pop %v1697
      %v1714 = verf.f32.pop %v1698
      %v1715 = verf.f32.pop %v1699
      %v1716 = verf.f32.pop %v1700
      %v1717 = verf.f32.pop %v1701
      %v1718 = verf.f32.pop %v1702
      %v1719 = verf.f32.pop %v1703
      %v1720 = verf.f32.pop %v1704
      %v1721 = verf.f32.pop %v1705
      %v1722 = verf.f32.pop %v1706
      %v1723 = verf.f32.pop %v1707
      %v1724 = verf.f32.pop %v1708
      %v1725 = verf.f32.pop %v1709
      %v1726 = verf.f32.pop %v1710
      %v1727 = verf.f32.pop %v1711
      %v1728 = vadd.f32 %v1712, 1.0
      %v1729 = vadd.f32 %v1713, 1.0
      %v1730 = vadd.f32 %v1714, 1.0
      %v1731 = vadd.f32 %v1715, 1.0
      %v1732 = vadd.f32 %v1716, 1.0
      %v1733 = vadd.f32 %v1717, 1.0
      %v1734 = vadd.f32 %v1718, 1.0
      %v1735 = vadd.f32 %v1719, 1.0
      %v1736 = vadd.f32 %v1720, 1.0
      %v1737 = vadd.f32 %v1721, 1.0
      %v1738 = vadd.f32 %v1722, 1.0
      %v1739 = vadd.f32 %v1723, 1.0
      %v1740 = vadd.f32 %v1724, 1.0
      %v1741 = vadd.f32 %v1725, 1.0
      %v1742 = vadd.f32 %v1726, 1.0
      %v1743 = vadd.f32 %v1727, 1.0
      %v1744 = vmul.f32 %v1680, %v1728
      %v1745 = vmul.f32 %v1681, %v1729
      %v1746 = vmul.f32 %v1682, %v1730
      %v1747 = vmul.f32 %v1683, %v1731
      %v1748 = vmul.f32 %v1684, %v1732
      %v1749 = vmul.f32 %v1685, %v1733
      %v1750 = vmul.f32 %v1686, %v1734
      %v1751 = vmul.f32 %v1687, %v1735
      %v1752 = vmul.f32 %v1688, %v1736
      %v1753 = vmul.f32 %v1689, %v1737
      %v1754 = vmul.f32 %v1690, %v1738
      %v1755 = vmul.f32 %v1691, %v1739
      %v1756 = vmul.f32 %v1692, %v1740
      %v1757 = vmul.f32 %v1693, %v1741
      %v1758 = vmul.f32 %v1694, %v1742
      %v1759 = vmul.f32 %v1695, %v1743
      %1760 = vmatprep.subr.mxu0 0.0
      %1761 = vmatpush1.msra.mxu0 0.0
      %1762 = vmatprep.subr.mxu0 0.0
      %1763 = vmatpush1.msra.mxu0 0.0
      %1764 = vmatprep.subr.mxu0 0.0
      %1765 = vmatpush1.msra.mxu0 0.0
      %1766 = vmatprep.subr.mxu0 0.0
      %1767 = vmatpush1.msra.mxu0 0.0
      %1768 = vmatprep.subr.mxu0 0.0
      %1769 = vmatpush1.msra.mxu0 0.0
      %1770 = vmatprep.subr.mxu0 0.0
      %1771 = vmatpush1.msra.mxu0 0.0
      %1772 = vmatprep.subr.mxu0 0.0
      %1773 = vmatpush1.msra.mxu0 0.0
      %1774 = vmatprep.subr.mxu0 0.0
      %1775 = vmatpush1.msra.mxu0 0.0
      %1776 = vmatprep.subr.mxu0 %v1759
      %1777 = vmatpush1.msra.mxu0 %v1758
      %1778 = vmatprep.subr.mxu0 %v1757
      %1779 = vmatpush1.msra.mxu0 %v1756
      %1780 = vmatprep.subr.mxu0 %v1755
      %1781 = vmatpush1.msra.mxu0 %v1754
      %1782 = vmatprep.subr.mxu0 %v1753
      %1783 = vmatpush1.msra.mxu0 %v1752
      %1784 = vmatprep.subr.mxu0 %v1751
      %1785 = vmatpush1.msra.mxu0 %v1750
      %1786 = vmatprep.subr.mxu0 %v1749
      %1787 = vmatpush1.msra.mxu0 %v1748
      %1788 = vmatprep.subr.mxu0 %v1747
      %1789 = vmatpush1.msra.mxu0 %v1746
      %1790 = vmatprep.subr.mxu0 %v1745
      %1791 = vmatpush1.msra.mxu0 %v1744
      %1792 = vmatprep.subr.mxu0 0.0
      %1793 = vmatpush2.msra.mxu0 0.0
      %1794 = vmatprep.subr.mxu0 0.0
      %1795 = vmatpush2.msra.mxu0 0.0
      %1796 = vmatprep.subr.mxu0 0.0
      %1797 = vmatpush2.msra.mxu0 0.0
      %1798 = vmatprep.subr.mxu0 0.0
      %1799 = vmatpush2.msra.mxu0 0.0
      %1800 = vmatprep.subr.mxu0 0.0
      %1801 = vmatpush2.msra.mxu0 0.0
      %1802 = vmatprep.subr.mxu0 0.0
      %1803 = vmatpush2.msra.mxu0 0.0
      %1804 = vmatprep.subr.mxu0 0.0
      %1805 = vmatpush2.msra.mxu0 0.0
      %1806 = vmatprep.subr.mxu0 0.0
      %1807 = vmatpush2.msra.mxu0 0.0
      %1808 = vmatprep.subr.mxu0 0.0
      %1809 = vmatpush2.msra.mxu0 0.0
      %1810 = vmatprep.subr.mxu0 0.0
      %1811 = vmatpush2.msra.mxu0 0.0
      %1812 = vmatprep.subr.mxu0 0.0
      %1813 = vmatpush2.msra.mxu0 0.0
      %1814 = vmatprep.subr.mxu0 0.0
      %1815 = vmatpush2.msra.mxu0 0.0
      %1816 = vmatprep.subr.mxu0 0.0
      %1817 = vmatpush2.msra.mxu0 0.0
      %1818 = vmatprep.subr.mxu0 0.0
      %1819 = vmatpush2.msra.mxu0 0.0
      %1820 = vmatprep.subr.mxu0 0.0
      %1821 = vmatpush2.msra.mxu0 0.0
      %1822 = vmatprep.subr.mxu0 0.0
      %1823 = vmatpush2.msra.mxu0 0.0
      %1824 = vmatprep.mubr.f32.mxu0 0.0
      %1825 = vmatmul.mubr.f32.gmra.mxu0 %v802
      %v1826 = vpop.f32.mrf.mxu0
      %v1827 = vadd.f32 %v764, %v1826
      %v1828 = vpop.f32.mrf.mxu0
      %v1829 = vadd.f32 %v764, %v1828
      %1830 = vmatprep.mubr.f32.mxu0 0.0
      %1831 = vmatmul.mubr.f32.gmra.mxu0 %v805
      %v1832 = vpop.f32.mrf.mxu0
      %v1833 = vadd.f32 %v769, %v1832
      %v1834 = vpop.f32.mrf.mxu0
      %v1835 = vadd.f32 %v769, %v1834
      %1836 = vmatprep.mubr.f32.mxu0 0.0
      %1837 = vmatmul.mubr.f32.gmra.mxu0 %v808
      %v1838 = vpop.f32.mrf.mxu0
      %v1839 = vadd.f32 %v774, %v1838
      %v1840 = vpop.f32.mrf.mxu0
      %v1841 = vadd.f32 %v774, %v1840
      %1842 = vmatprep.mubr.f32.mxu0 0.0
      %1843 = vmatmul.mubr.f32.gmra.mxu0 %v811
      %v1844 = vpop.f32.mrf.mxu0
      %v1845 = vadd.f32 %v779, %v1844
      %v1846 = vpop.f32.mrf.mxu0
      %v1847 = vadd.f32 %v779, %v1846
      %1848 = vmatprep.mubr.f32.mxu0 0.0
      %1849 = vmatmul.mubr.f32.gmra.mxu0 %v814
      %v1850 = vpop.f32.mrf.mxu0
      %v1851 = vadd.f32 %v784, %v1850
      %v1852 = vpop.f32.mrf.mxu0
      %v1853 = vadd.f32 %v784, %v1852
      %1854 = vmatprep.mubr.f32.mxu0 0.0
      %1855 = vmatmul.mubr.f32.gmra.mxu0 %v817
      %v1856 = vpop.f32.mrf.mxu0
      %v1857 = vadd.f32 %v789, %v1856
      %v1858 = vpop.f32.mrf.mxu0
      %v1859 = vadd.f32 %v789, %v1858
      %1860 = vmatprep.mubr.f32.mxu0 0.0
      %1861 = vmatmul.mubr.f32.gmra.mxu0 %v820
      %v1862 = vpop.f32.mrf.mxu0
      %v1863 = vadd.f32 %v794, %v1862
      %v1864 = vpop.f32.mrf.mxu0
      %v1865 = vadd.f32 %v794, %v1864
      %1866 = vmatprep.mubr.f32.mxu0 0.0
      %1867 = vmatmul.mubr.f32.gmra.mxu0 %v823
      %v1868 = vpop.f32.mrf.mxu0
      %v1869 = vadd.f32 %v799, %v1868
      %v1870 = vpop.f32.mrf.mxu0
      %v1871 = vadd.f32 %v799, %v1870
      %1872 = vdwg.mxu0
      %v1873 = vadd.f32 %v1519, %v1827
      %v1874 = vadd.f32 %v1520, %v1829
      %v1875 = vadd.f32 %v1521, %v1833
      %v1876 = vadd.f32 %v1522, %v1835
      %v1877 = vadd.f32 %v1523, %v1839
      %v1878 = vadd.f32 %v1524, %v1841
      %v1879 = vadd.f32 %v1525, %v1845
      %v1880 = vadd.f32 %v1526, %v1847
      %v1881 = vadd.f32 %v1527, %v1851
      %v1882 = vadd.f32 %v1528, %v1853
      %v1883 = vadd.f32 %v1529, %v1857
      %v1884 = vadd.f32 %v1530, %v1859
      %v1885 = vadd.f32 %v1531, %v1863
      %v1886 = vadd.f32 %v1532, %v1865
      %v1887 = vadd.f32 %v1533, %v1869
      %v1888 = vadd.f32 %v1534, %v1871
      %s1889 = scalar_lea.vmem %s320, 256
      %1890 = vst [vmem:[%s1889] sm:$0xff] %v1873
      %1891 = vst [vmem:[%s1889 + $0x8] sm:$0xff] %v1874
      %1892 = vst [vmem:[%s1889 + $0x10] sm:$0xff] %v1875
      %1893 = vst [vmem:[%s1889 + $0x18] sm:$0xff] %v1876
      %1894 = vst [vmem:[%s1889 + $0x20] sm:$0xff] %v1877
      %1895 = vst [vmem:[%s1889 + $0x28] sm:$0xff] %v1878
      %1896 = vst [vmem:[%s1889 + $0x30] sm:$0xff] %v1879
      %1897 = vst [vmem:[%s1889 + $0x38] sm:$0xff] %v1880
      %1898 = vst [vmem:[%s1889 + $0x40] sm:$0xff] %v1881
      %1899 = vst [vmem:[%s1889 + $0x48] sm:$0xff] %v1882
      %1900 = vst [vmem:[%s1889 + $0x50] sm:$0xff] %v1883
      %1901 = vst [vmem:[%s1889 + $0x58] sm:$0xff] %v1884
      %1902 = vst [vmem:[%s1889 + $0x60] sm:$0xff] %v1885
      %1903 = vst [vmem:[%s1889 + $0x68] sm:$0xff] %v1886
      %1904 = vst [vmem:[%s1889 + $0x70] sm:$0xff] %v1887
      %1905 = vst [vmem:[%s1889 + $0x78] sm:$0xff] %v1888
      %v1906 = vadd.f32 %v1873, %v1874
      %1907 = vadd.xlane.f32.xlu0 %v1906
      %v1908 = vpop.xlane.xlu0 %1907
      %v1909 = vadd.f32 %v1875, %v1876
      %1910 = vadd.xlane.f32.xlu0 %v1909
      %v1911 = vpop.xlane.xlu0 %1910
      %v1912 = vadd.f32 %v1877, %v1878
      %1913 = vadd.xlane.f32.xlu0 %v1912
      %v1914 = vpop.xlane.xlu0 %1913
      %v1915 = vadd.f32 %v1879, %v1880
      %1916 = vadd.xlane.f32.xlu0 %v1915
      %v1917 = vpop.xlane.xlu0 %1916
      %v1918 = vadd.f32 %v1881, %v1882
      %1919 = vadd.xlane.f32.xlu0 %v1918
      %v1920 = vpop.xlane.xlu0 %1919
      %v1921 = vadd.f32 %v1883, %v1884
      %1922 = vadd.xlane.f32.xlu0 %v1921
      %v1923 = vpop.xlane.xlu0 %1922
      %v1924 = vadd.f32 %v1885, %v1886
      %1925 = vadd.xlane.f32.xlu0 %v1924
      %v1926 = vpop.xlane.xlu0 %1925
      %v1927 = vadd.f32 %v1887, %v1888
      %1928 = vadd.xlane.f32.xlu0 %v1927
      %v1929 = vpop.xlane.xlu0 %1928
      %v1930 = vadd.f32 %v1462, %v1908
      %v1931 = vadd.f32 %v1463, %v1911
      %v1932 = vadd.f32 %v1464, %v1914
      %v1933 = vadd.f32 %v1465, %v1917
      %v1934 = vadd.f32 %v1466, %v1920
      %v1935 = vadd.f32 %v1467, %v1923
      %v1936 = vadd.f32 %v1468, %v1926
      %v1937 = vadd.f32 %v1469, %v1929
      %v1938 = vmul.f32 %v1873, %v1873
      %v1939 = vmul.f32 %v1874, %v1874
      %v1940 = vmul.f32 %v1875, %v1875
      %v1941 = vmul.f32 %v1876, %v1876
      %v1942 = vmul.f32 %v1877, %v1877
      %v1943 = vmul.f32 %v1878, %v1878
      %v1944 = vmul.f32 %v1879, %v1879
      %v1945 = vmul.f32 %v1880, %v1880
      %v1946 = vmul.f32 %v1881, %v1881
      %v1947 = vmul.f32 %v1882, %v1882
      %v1948 = vmul.f32 %v1883, %v1883
      %v1949 = vmul.f32 %v1884, %v1884
      %v1950 = vmul.f32 %v1885, %v1885
      %v1951 = vmul.f32 %v1886, %v1886
      %v1952 = vmul.f32 %v1887, %v1887
      %v1953 = vmul.f32 %v1888, %v1888
      %v1954 = vadd.f32 %v1938, %v1939
      %1955 = vadd.xlane.f32.xlu0 %v1954
      %v1956 = vpop.xlane.xlu0 %1955
      %v1957 = vadd.f32 %v1940, %v1941
      %1958 = vadd.xlane.f32.xlu0 %v1957
      %v1959 = vpop.xlane.xlu0 %1958
      %v1960 = vadd.f32 %v1942, %v1943
      %1961 = vadd.xlane.f32.xlu0 %v1960
      %v1962 = vpop.xlane.xlu0 %1961
      %v1963 = vadd.f32 %v1944, %v1945
      %1964 = vadd.xlane.f32.xlu0 %v1963
      %v1965 = vpop.xlane.xlu0 %1964
      %v1966 = vadd.f32 %v1946, %v1947
      %1967 = vadd.xlane.f32.xlu0 %v1966
      %v1968 = vpop.xlane.xlu0 %1967
      %v1969 = vadd.f32 %v1948, %v1949
      %1970 = vadd.xlane.f32.xlu0 %v1969
      %v1971 = vpop.xlane.xlu0 %1970
      %v1972 = vadd.f32 %v1950, %v1951
      %1973 = vadd.xlane.f32.xlu0 %v1972
      %v1974 = vpop.xlane.xlu0 %1973
      %v1975 = vadd.f32 %v1952, %v1953
      %1976 = vadd.xlane.f32.xlu0 %v1975
      %v1977 = vpop.xlane.xlu0 %1976
      %v1978 = vadd.f32 %v1510, %v1956
      %v1979 = vadd.f32 %v1511, %v1959
      %v1980 = vadd.f32 %v1512, %v1962
      %v1981 = vadd.f32 %v1513, %v1965
      %v1982 = vadd.f32 %v1514, %v1968
      %v1983 = vadd.f32 %v1515, %v1971
      %v1984 = vadd.f32 %v1516, %v1974
      %v1985 = vadd.f32 %v1517, %v1977
      %s1986 = scalar_lea.vmem %s313, 384
      %v1987 = vld [vmem:[%s1986] sm:$0xff]
      %v1988 = vld [vmem:[%s1986 + $0x8] sm:$0xff]
      %v1989 = vld [vmem:[%s1986 + $0x10] sm:$0xff]
      %v1990 = vld [vmem:[%s1986 + $0x18] sm:$0xff]
      %v1991 = vld [vmem:[%s1986 + $0x20] sm:$0xff]
      %v1992 = vld [vmem:[%s1986 + $0x28] sm:$0xff]
      %v1993 = vld [vmem:[%s1986 + $0x30] sm:$0xff]
      %v1994 = vld [vmem:[%s1986 + $0x38] sm:$0xff]
      %v1995 = vld [vmem:[%s1986 + $0x40] sm:$0xff]
      %v1996 = vld [vmem:[%s1986 + $0x48] sm:$0xff]
      %v1997 = vld [vmem:[%s1986 + $0x50] sm:$0xff]
      %v1998 = vld [vmem:[%s1986 + $0x58] sm:$0xff]
      %v1999 = vld [vmem:[%s1986 + $0x60] sm:$0xff]
      %v2000 = vld [vmem:[%s1986 + $0x68] sm:$0xff]
      %v2001 = vld [vmem:[%s1986 + $0x70] sm:$0xff]
      %v2002 = vld [vmem:[%s1986 + $0x78] sm:$0xff]
      %v2003 = vmul.f32 %v1987, %v394
      %v2004 = vmul.f32 %v1988, %v394
      %v2005 = vmul.f32 %v1989, %v399
      %v2006 = vmul.f32 %v1990, %v399
      %v2007 = vmul.f32 %v1991, %v404
      %v2008 = vmul.f32 %v1992, %v404
      %v2009 = vmul.f32 %v1993, %v409
      %v2010 = vmul.f32 %v1994, %v409
      %v2011 = vmul.f32 %v1995, %v414
      %v2012 = vmul.f32 %v1996, %v414
      %v2013 = vmul.f32 %v1997, %v419
      %v2014 = vmul.f32 %v1998, %v419
      %v2015 = vmul.f32 %v1999, %v424
      %v2016 = vmul.f32 %v2000, %v424
      %v2017 = vmul.f32 %v2001, %v429
      %v2018 = vmul.f32 %v2002, %v429
      %v2019 = vadd.f32 %v2003, %v450
      %v2020 = vadd.f32 %v2004, %v450
      %v2021 = vadd.f32 %v2005, %v455
      %v2022 = vadd.f32 %v2006, %v455
      %v2023 = vadd.f32 %v2007, %v460
      %v2024 = vadd.f32 %v2008, %v460
      %v2025 = vadd.f32 %v2009, %v465
      %v2026 = vadd.f32 %v2010, %v465
      %v2027 = vadd.f32 %v2011, %v470
      %v2028 = vadd.f32 %v2012, %v470
      %v2029 = vadd.f32 %v2013, %v475
      %v2030 = vadd.f32 %v2014, %v475
      %v2031 = vadd.f32 %v2015, %v480
      %v2032 = vadd.f32 %v2016, %v480
      %v2033 = vadd.f32 %v2017, %v485
      %v2034 = vadd.f32 %v2018, %v485
      %2035 = vmatprep.subr.mxu0 0.0
      %2036 = vmatpush1.msra.mxu0 0.0
      %2037 = vmatprep.subr.mxu0 0.0
      %2038 = vmatpush1.msra.mxu0 0.0
      %2039 = vmatprep.subr.mxu0 0.0
      %2040 = vmatpush1.msra.mxu0 0.0
      %2041 = vmatprep.subr.mxu0 0.0
      %2042 = vmatpush1.msra.mxu0 0.0
      %2043 = vmatprep.subr.mxu0 0.0
      %2044 = vmatpush1.msra.mxu0 0.0
      %2045 = vmatprep.subr.mxu0 0.0
      %2046 = vmatpush1.msra.mxu0 0.0
      %2047 = vmatprep.subr.mxu0 0.0
      %2048 = vmatpush1.msra.mxu0 0.0
      %2049 = vmatprep.subr.mxu0 0.0
      %2050 = vmatpush1.msra.mxu0 0.0
      %2051 = vmatprep.subr.mxu0 %v2034
      %2052 = vmatpush1.msra.mxu0 %v2033
      %2053 = vmatprep.subr.mxu0 %v2032
      %2054 = vmatpush1.msra.mxu0 %v2031
      %2055 = vmatprep.subr.mxu0 %v2030
      %2056 = vmatpush1.msra.mxu0 %v2029
      %2057 = vmatprep.subr.mxu0 %v2028
      %2058 = vmatpush1.msra.mxu0 %v2027
      %2059 = vmatprep.subr.mxu0 %v2026
      %2060 = vmatpush1.msra.mxu0 %v2025
      %2061 = vmatprep.subr.mxu0 %v2024
      %2062 = vmatpush1.msra.mxu0 %v2023
      %2063 = vmatprep.subr.mxu0 %v2022
      %2064 = vmatpush1.msra.mxu0 %v2021
      %2065 = vmatprep.subr.mxu0 %v2020
      %2066 = vmatpush1.msra.mxu0 %v2019
      %2067 = vmatprep.subr.mxu0 0.0
      %2068 = vmatpush2.msra.mxu0 0.0
      %2069 = vmatprep.subr.mxu0 0.0
      %2070 = vmatpush2.msra.mxu0 0.0
      %2071 = vmatprep.subr.mxu0 0.0
      %2072 = vmatpush2.msra.mxu0 0.0
      %2073 = vmatprep.subr.mxu0 0.0
      %2074 = vmatpush2.msra.mxu0 0.0
      %2075 = vmatprep.subr.mxu0 0.0
      %2076 = vmatpush2.msra.mxu0 0.0
      %2077 = vmatprep.subr.mxu0 0.0
      %2078 = vmatpush2.msra.mxu0 0.0
      %2079 = vmatprep.subr.mxu0 0.0
      %2080 = vmatpush2.msra.mxu0 0.0
      %2081 = vmatprep.subr.mxu0 0.0
      %2082 = vmatpush2.msra.mxu0 0.0
      %2083 = vmatprep.subr.mxu0 0.0
      %2084 = vmatpush2.msra.mxu0 0.0
      %2085 = vmatprep.subr.mxu0 0.0
      %2086 = vmatpush2.msra.mxu0 0.0
      %2087 = vmatprep.subr.mxu0 0.0
      %2088 = vmatpush2.msra.mxu0 0.0
      %2089 = vmatprep.subr.mxu0 0.0
      %2090 = vmatpush2.msra.mxu0 0.0
      %2091 = vmatprep.subr.mxu0 0.0
      %2092 = vmatpush2.msra.mxu0 0.0
      %2093 = vmatprep.subr.mxu0 0.0
      %2094 = vmatpush2.msra.mxu0 0.0
      %2095 = vmatprep.subr.mxu0 0.0
      %2096 = vmatpush2.msra.mxu0 0.0
      %2097 = vmatprep.subr.mxu0 0.0
      %2098 = vmatpush2.msra.mxu0 0.0
      %2099 = vmatprep.mubr.f32.mxu0 0.0
      %2100 = vmatmul.mubr.f32.gmra.mxu0 %v545
      %v2101 = vpop.f32.mrf.mxu0
      %v2102 = vadd.f32 %v506, %v2101
      %v2103 = vpop.f32.mrf.mxu0
      %v2104 = vadd.f32 %v506, %v2103
      %2105 = vmatprep.mubr.f32.mxu0 0.0
      %2106 = vmatmul.mubr.f32.gmra.mxu0 %v548
      %v2107 = vpop.f32.mrf.mxu0
      %v2108 = vadd.f32 %v511, %v2107
      %v2109 = vpop.f32.mrf.mxu0
      %v2110 = vadd.f32 %v511, %v2109
      %2111 = vmatprep.mubr.f32.mxu0 0.0
      %2112 = vmatmul.mubr.f32.gmra.mxu0 %v551
      %v2113 = vpop.f32.mrf.mxu0
      %v2114 = vadd.f32 %v516, %v2113
      %v2115 = vpop.f32.mrf.mxu0
      %v2116 = vadd.f32 %v516, %v2115
      %2117 = vmatprep.mubr.f32.mxu0 0.0
      %2118 = vmatmul.mubr.f32.gmra.mxu0 %v554
      %v2119 = vpop.f32.mrf.mxu0
      %v2120 = vadd.f32 %v521, %v2119
      %v2121 = vpop.f32.mrf.mxu0
      %v2122 = vadd.f32 %v521, %v2121
      %2123 = vmatprep.mubr.f32.mxu0 0.0
      %2124 = vmatmul.mubr.f32.gmra.mxu0 %v557
      %v2125 = vpop.f32.mrf.mxu0
      %v2126 = vadd.f32 %v526, %v2125
      %v2127 = vpop.f32.mrf.mxu0
      %v2128 = vadd.f32 %v526, %v2127
      %2129 = vmatprep.mubr.f32.mxu0 0.0
      %2130 = vmatmul.mubr.f32.gmra.mxu0 %v560
      %v2131 = vpop.f32.mrf.mxu0
      %v2132 = vadd.f32 %v531, %v2131
      %v2133 = vpop.f32.mrf.mxu0
      %v2134 = vadd.f32 %v531, %v2133
      %2135 = vmatprep.mubr.f32.mxu0 0.0
      %2136 = vmatmul.mubr.f32.gmra.mxu0 %v563
      %v2137 = vpop.f32.mrf.mxu0
      %v2138 = vadd.f32 %v536, %v2137
      %v2139 = vpop.f32.mrf.mxu0
      %v2140 = vadd.f32 %v536, %v2139
      %2141 = vmatprep.mubr.f32.mxu0 0.0
      %2142 = vmatmul.mubr.f32.gmra.mxu0 %v566
      %v2143 = vpop.f32.mrf.mxu0
      %v2144 = vadd.f32 %v541, %v2143
      %v2145 = vpop.f32.mrf.mxu0
      %v2146 = vadd.f32 %v541, %v2145
      %2147 = vdwg.mxu0
      %v2148 = vmul.f32 %v2102, 0.5
      %v2149 = vmul.f32 %v2104, 0.5
      %v2150 = vmul.f32 %v2108, 0.5
      %v2151 = vmul.f32 %v2110, 0.5
      %v2152 = vmul.f32 %v2114, 0.5
      %v2153 = vmul.f32 %v2116, 0.5
      %v2154 = vmul.f32 %v2120, 0.5
      %v2155 = vmul.f32 %v2122, 0.5
      %v2156 = vmul.f32 %v2126, 0.5
      %v2157 = vmul.f32 %v2128, 0.5
      %v2158 = vmul.f32 %v2132, 0.5
      %v2159 = vmul.f32 %v2134, 0.5
      %v2160 = vmul.f32 %v2138, 0.5
      %v2161 = vmul.f32 %v2140, 0.5
      %v2162 = vmul.f32 %v2144, 0.5
      %v2163 = vmul.f32 %v2146, 0.5
      %v2164 = vmul.f32 %v2102, 0.70710677
      %v2165 = vmul.f32 %v2104, 0.70710677
      %v2166 = vmul.f32 %v2108, 0.70710677
      %v2167 = vmul.f32 %v2110, 0.70710677
      %v2168 = vmul.f32 %v2114, 0.70710677
      %v2169 = vmul.f32 %v2116, 0.70710677
      %v2170 = vmul.f32 %v2120, 0.70710677
      %v2171 = vmul.f32 %v2122, 0.70710677
      %v2172 = vmul.f32 %v2126, 0.70710677
      %v2173 = vmul.f32 %v2128, 0.70710677
      %v2174 = vmul.f32 %v2132, 0.70710677
      %v2175 = vmul.f32 %v2134, 0.70710677
      %v2176 = vmul.f32 %v2138, 0.70710677
      %v2177 = vmul.f32 %v2140, 0.70710677
      %v2178 = vmul.f32 %v2144, 0.70710677
      %v2179 = vmul.f32 %v2146, 0.70710677
      %v2180 = verf.f32.pop %v2164
      %v2181 = verf.f32.pop %v2165
      %v2182 = verf.f32.pop %v2166
      %v2183 = verf.f32.pop %v2167
      %v2184 = verf.f32.pop %v2168
      %v2185 = verf.f32.pop %v2169
      %v2186 = verf.f32.pop %v2170
      %v2187 = verf.f32.pop %v2171
      %v2188 = verf.f32.pop %v2172
      %v2189 = verf.f32.pop %v2173
      %v2190 = verf.f32.pop %v2174
      %v2191 = verf.f32.pop %v2175
      %v2192 = verf.f32.pop %v2176
      %v2193 = verf.f32.pop %v2177
      %v2194 = verf.f32.pop %v2178
      %v2195 = verf.f32.pop %v2179
      %v2196 = vadd.f32 %v2180, 1.0
      %v2197 = vadd.f32 %v2181, 1.0
      %v2198 = vadd.f32 %v2182, 1.0
      %v2199 = vadd.f32 %v2183, 1.0
      %v2200 = vadd.f32 %v2184, 1.0
      %v2201 = vadd.f32 %v2185, 1.0
      %v2202 = vadd.f32 %v2186, 1.0
      %v2203 = vadd.f32 %v2187, 1.0
      %v2204 = vadd.f32 %v2188, 1.0
      %v2205 = vadd.f32 %v2189, 1.0
      %v2206 = vadd.f32 %v2190, 1.0
      %v2207 = vadd.f32 %v2191, 1.0
      %v2208 = vadd.f32 %v2192, 1.0
      %v2209 = vadd.f32 %v2193, 1.0
      %v2210 = vadd.f32 %v2194, 1.0
      %v2211 = vadd.f32 %v2195, 1.0
      %v2212 = vmul.f32 %v2148, %v2196
      %v2213 = vmul.f32 %v2149, %v2197
      %v2214 = vmul.f32 %v2150, %v2198
      %v2215 = vmul.f32 %v2151, %v2199
      %v2216 = vmul.f32 %v2152, %v2200
      %v2217 = vmul.f32 %v2153, %v2201
      %v2218 = vmul.f32 %v2154, %v2202
      %v2219 = vmul.f32 %v2155, %v2203
      %v2220 = vmul.f32 %v2156, %v2204
      %v2221 = vmul.f32 %v2157, %v2205
      %v2222 = vmul.f32 %v2158, %v2206
      %v2223 = vmul.f32 %v2159, %v2207
      %v2224 = vmul.f32 %v2160, %v2208
      %v2225 = vmul.f32 %v2161, %v2209
      %v2226 = vmul.f32 %v2162, %v2210
      %v2227 = vmul.f32 %v2163, %v2211
      %2228 = vmatprep.subr.mxu0 0.0
      %2229 = vmatpush1.msra.mxu0 0.0
      %2230 = vmatprep.subr.mxu0 0.0
      %2231 = vmatpush1.msra.mxu0 0.0
      %2232 = vmatprep.subr.mxu0 0.0
      %2233 = vmatpush1.msra.mxu0 0.0
      %2234 = vmatprep.subr.mxu0 0.0
      %2235 = vmatpush1.msra.mxu0 0.0
      %2236 = vmatprep.subr.mxu0 0.0
      %2237 = vmatpush1.msra.mxu0 0.0
      %2238 = vmatprep.subr.mxu0 0.0
      %2239 = vmatpush1.msra.mxu0 0.0
      %2240 = vmatprep.subr.mxu0 0.0
      %2241 = vmatpush1.msra.mxu0 0.0
      %2242 = vmatprep.subr.mxu0 0.0
      %2243 = vmatpush1.msra.mxu0 0.0
      %2244 = vmatprep.subr.mxu0 %v2227
      %2245 = vmatpush1.msra.mxu0 %v2226
      %2246 = vmatprep.subr.mxu0 %v2225
      %2247 = vmatpush1.msra.mxu0 %v2224
      %2248 = vmatprep.subr.mxu0 %v2223
      %2249 = vmatpush1.msra.mxu0 %v2222
      %2250 = vmatprep.subr.mxu0 %v2221
      %2251 = vmatpush1.msra.mxu0 %v2220
      %2252 = vmatprep.subr.mxu0 %v2219
      %2253 = vmatpush1.msra.mxu0 %v2218
      %2254 = vmatprep.subr.mxu0 %v2217
      %2255 = vmatpush1.msra.mxu0 %v2216
      %2256 = vmatprep.subr.mxu0 %v2215
      %2257 = vmatpush1.msra.mxu0 %v2214
      %2258 = vmatprep.subr.mxu0 %v2213
      %2259 = vmatpush1.msra.mxu0 %v2212
      %2260 = vmatprep.subr.mxu0 0.0
      %2261 = vmatpush2.msra.mxu0 0.0
      %2262 = vmatprep.subr.mxu0 0.0
      %2263 = vmatpush2.msra.mxu0 0.0
      %2264 = vmatprep.subr.mxu0 0.0
      %2265 = vmatpush2.msra.mxu0 0.0
      %2266 = vmatprep.subr.mxu0 0.0
      %2267 = vmatpush2.msra.mxu0 0.0
      %2268 = vmatprep.subr.mxu0 0.0
      %2269 = vmatpush2.msra.mxu0 0.0
      %2270 = vmatprep.subr.mxu0 0.0
      %2271 = vmatpush2.msra.mxu0 0.0
      %2272 = vmatprep.subr.mxu0 0.0
      %2273 = vmatpush2.msra.mxu0 0.0
      %2274 = vmatprep.subr.mxu0 0.0
      %2275 = vmatpush2.msra.mxu0 0.0
      %2276 = vmatprep.subr.mxu0 0.0
      %2277 = vmatpush2.msra.mxu0 0.0
      %2278 = vmatprep.subr.mxu0 0.0
      %2279 = vmatpush2.msra.mxu0 0.0
      %2280 = vmatprep.subr.mxu0 0.0
      %2281 = vmatpush2.msra.mxu0 0.0
      %2282 = vmatprep.subr.mxu0 0.0
      %2283 = vmatpush2.msra.mxu0 0.0
      %2284 = vmatprep.subr.mxu0 0.0
      %2285 = vmatpush2.msra.mxu0 0.0
      %2286 = vmatprep.subr.mxu0 0.0
      %2287 = vmatpush2.msra.mxu0 0.0
      %2288 = vmatprep.subr.mxu0 0.0
      %2289 = vmatpush2.msra.mxu0 0.0
      %2290 = vmatprep.subr.mxu0 0.0
      %2291 = vmatpush2.msra.mxu0 0.0
      %2292 = vmatprep.mubr.f32.mxu0 0.0
      %2293 = vmatmul.mubr.f32.gmra.mxu0 %v802
      %v2294 = vpop.f32.mrf.mxu0
      %v2295 = vadd.f32 %v764, %v2294
      %v2296 = vpop.f32.mrf.mxu0
      %v2297 = vadd.f32 %v764, %v2296
      %2298 = vmatprep.mubr.f32.mxu0 0.0
      %2299 = vmatmul.mubr.f32.gmra.mxu0 %v805
      %v2300 = vpop.f32.mrf.mxu0
      %v2301 = vadd.f32 %v769, %v2300
      %v2302 = vpop.f32.mrf.mxu0
      %v2303 = vadd.f32 %v769, %v2302
      %2304 = vmatprep.mubr.f32.mxu0 0.0
      %2305 = vmatmul.mubr.f32.gmra.mxu0 %v808
      %v2306 = vpop.f32.mrf.mxu0
      %v2307 = vadd.f32 %v774, %v2306
      %v2308 = vpop.f32.mrf.mxu0
      %v2309 = vadd.f32 %v774, %v2308
      %2310 = vmatprep.mubr.f32.mxu0 0.0
      %2311 = vmatmul.mubr.f32.gmra.mxu0 %v811
      %v2312 = vpop.f32.mrf.mxu0
      %v2313 = vadd.f32 %v779, %v2312
      %v2314 = vpop.f32.mrf.mxu0
      %v2315 = vadd.f32 %v779, %v2314
      %2316 = vmatprep.mubr.f32.mxu0 0.0
      %2317 = vmatmul.mubr.f32.gmra.mxu0 %v814
      %v2318 = vpop.f32.mrf.mxu0
      %v2319 = vadd.f32 %v784, %v2318
      %v2320 = vpop.f32.mrf.mxu0
      %v2321 = vadd.f32 %v784, %v2320
      %2322 = vmatprep.mubr.f32.mxu0 0.0
      %2323 = vmatmul.mubr.f32.gmra.mxu0 %v817
      %v2324 = vpop.f32.mrf.mxu0
      %v2325 = vadd.f32 %v789, %v2324
      %v2326 = vpop.f32.mrf.mxu0
      %v2327 = vadd.f32 %v789, %v2326
      %2328 = vmatprep.mubr.f32.mxu0 0.0
      %2329 = vmatmul.mubr.f32.gmra.mxu0 %v820
      %v2330 = vpop.f32.mrf.mxu0
      %v2331 = vadd.f32 %v794, %v2330
      %v2332 = vpop.f32.mrf.mxu0
      %v2333 = vadd.f32 %v794, %v2332
      %2334 = vmatprep.mubr.f32.mxu0 0.0
      %2335 = vmatmul.mubr.f32.gmra.mxu0 %v823
      %v2336 = vpop.f32.mrf.mxu0
      %v2337 = vadd.f32 %v799, %v2336
      %v2338 = vpop.f32.mrf.mxu0
      %v2339 = vadd.f32 %v799, %v2338
      %2340 = vdwg.mxu0
      %v2341 = vadd.f32 %v1987, %v2295
      %v2342 = vadd.f32 %v1988, %v2297
      %v2343 = vadd.f32 %v1989, %v2301
      %v2344 = vadd.f32 %v1990, %v2303
      %v2345 = vadd.f32 %v1991, %v2307
      %v2346 = vadd.f32 %v1992, %v2309
      %v2347 = vadd.f32 %v1993, %v2313
      %v2348 = vadd.f32 %v1994, %v2315
      %v2349 = vadd.f32 %v1995, %v2319
      %v2350 = vadd.f32 %v1996, %v2321
      %v2351 = vadd.f32 %v1997, %v2325
      %v2352 = vadd.f32 %v1998, %v2327
      %v2353 = vadd.f32 %v1999, %v2331
      %v2354 = vadd.f32 %v2000, %v2333
      %v2355 = vadd.f32 %v2001, %v2337
      %v2356 = vadd.f32 %v2002, %v2339
      %s2357 = scalar_lea.vmem %s320, 384
      %2358 = vst [vmem:[%s2357] sm:$0xff] %v2341
      %2359 = vst [vmem:[%s2357 + $0x8] sm:$0xff] %v2342
      %2360 = vst [vmem:[%s2357 + $0x10] sm:$0xff] %v2343
      %2361 = vst [vmem:[%s2357 + $0x18] sm:$0xff] %v2344
      %2362 = vst [vmem:[%s2357 + $0x20] sm:$0xff] %v2345
      %2363 = vst [vmem:[%s2357 + $0x28] sm:$0xff] %v2346
      %2364 = vst [vmem:[%s2357 + $0x30] sm:$0xff] %v2347
      %2365 = vst [vmem:[%s2357 + $0x38] sm:$0xff] %v2348
      %2366 = vst [vmem:[%s2357 + $0x40] sm:$0xff] %v2349
      %2367 = vst [vmem:[%s2357 + $0x48] sm:$0xff] %v2350
      %2368 = vst [vmem:[%s2357 + $0x50] sm:$0xff] %v2351
      %2369 = vst [vmem:[%s2357 + $0x58] sm:$0xff] %v2352
      %2370 = vst [vmem:[%s2357 + $0x60] sm:$0xff] %v2353
      %2371 = vst [vmem:[%s2357 + $0x68] sm:$0xff] %v2354
      %2372 = vst [vmem:[%s2357 + $0x70] sm:$0xff] %v2355
      %2373 = vst [vmem:[%s2357 + $0x78] sm:$0xff] %v2356
      %v2374 = vadd.f32 %v2341, %v2342
      %2375 = vadd.xlane.f32.xlu0 %v2374
      %v2376 = vpop.xlane.xlu0 %2375
      %v2377 = vadd.f32 %v2343, %v2344
      %2378 = vadd.xlane.f32.xlu0 %v2377
      %v2379 = vpop.xlane.xlu0 %2378
      %v2380 = vadd.f32 %v2345, %v2346
      %2381 = vadd.xlane.f32.xlu0 %v2380
      %v2382 = vpop.xlane.xlu0 %2381
      %v2383 = vadd.f32 %v2347, %v2348
      %2384 = vadd.xlane.f32.xlu0 %v2383
      %v2385 = vpop.xlane.xlu0 %2384
      %v2386 = vadd.f32 %v2349, %v2350
      %2387 = vadd.xlane.f32.xlu0 %v2386
      %v2388 = vpop.xlane.xlu0 %2387
      %v2389 = vadd.f32 %v2351, %v2352
      %2390 = vadd.xlane.f32.xlu0 %v2389
      %v2391 = vpop.xlane.xlu0 %2390
      %v2392 = vadd.f32 %v2353, %v2354
      %2393 = vadd.xlane.f32.xlu0 %v2392
      %v2394 = vpop.xlane.xlu0 %2393
      %v2395 = vadd.f32 %v2355, %v2356
      %2396 = vadd.xlane.f32.xlu0 %v2395
      %v2397 = vpop.xlane.xlu0 %2396
      %v2398 = vadd.f32 %v1930, %v2376
      %v2399 = vadd.f32 %v1931, %v2379
      %v2400 = vadd.f32 %v1932, %v2382
      %v2401 = vadd.f32 %v1933, %v2385
      %v2402 = vadd.f32 %v1934, %v2388
      %v2403 = vadd.f32 %v1935, %v2391
      %v2404 = vadd.f32 %v1936, %v2394
      %v2405 = vadd.f32 %v1937, %v2397
      %v2406 = vmul.f32 %v2341, %v2341
      %v2407 = vmul.f32 %v2342, %v2342
      %v2408 = vmul.f32 %v2343, %v2343
      %v2409 = vmul.f32 %v2344, %v2344
      %v2410 = vmul.f32 %v2345, %v2345
      %v2411 = vmul.f32 %v2346, %v2346
      %v2412 = vmul.f32 %v2347, %v2347
      %v2413 = vmul.f32 %v2348, %v2348
      %v2414 = vmul.f32 %v2349, %v2349
      %v2415 = vmul.f32 %v2350, %v2350
      %v2416 = vmul.f32 %v2351, %v2351
      %v2417 = vmul.f32 %v2352, %v2352
      %v2418 = vmul.f32 %v2353, %v2353
      %v2419 = vmul.f32 %v2354, %v2354
      %v2420 = vmul.f32 %v2355, %v2355
      %v2421 = vmul.f32 %v2356, %v2356
      %v2422 = vadd.f32 %v2406, %v2407
      %2423 = vadd.xlane.f32.xlu0 %v2422
      %v2424 = vpop.xlane.xlu0 %2423
      %v2425 = vadd.f32 %v2408, %v2409
      %2426 = vadd.xlane.f32.xlu0 %v2425
      %v2427 = vpop.xlane.xlu0 %2426
      %v2428 = vadd.f32 %v2410, %v2411
      %2429 = vadd.xlane.f32.xlu0 %v2428
      %v2430 = vpop.xlane.xlu0 %2429
      %v2431 = vadd.f32 %v2412, %v2413
      %2432 = vadd.xlane.f32.xlu0 %v2431
      %v2433 = vpop.xlane.xlu0 %2432
      %v2434 = vadd.f32 %v2414, %v2415
      %2435 = vadd.xlane.f32.xlu0 %v2434
      %v2436 = vpop.xlane.xlu0 %2435
      %v2437 = vadd.f32 %v2416, %v2417
      %2438 = vadd.xlane.f32.xlu0 %v2437
      %v2439 = vpop.xlane.xlu0 %2438
      %v2440 = vadd.f32 %v2418, %v2419
      %2441 = vadd.xlane.f32.xlu0 %v2440
      %v2442 = vpop.xlane.xlu0 %2441
      %v2443 = vadd.f32 %v2420, %v2421
      %2444 = vadd.xlane.f32.xlu0 %v2443
      %v2445 = vpop.xlane.xlu0 %2444
      %v2446 = vadd.f32 %v1978, %v2424
      %v2447 = vadd.f32 %v1979, %v2427
      %v2448 = vadd.f32 %v1980, %v2430
      %v2449 = vadd.f32 %v1981, %v2433
      %v2450 = vadd.f32 %v1982, %v2436
      %v2451 = vadd.f32 %v1983, %v2439
      %v2452 = vadd.f32 %v1984, %v2442
      %v2453 = vadd.f32 %v1985, %v2445
      %vm2454 = vcmask 7168
      %2455 = vst.msk [vmem:[%s326] sm:$0xff] %vm2454, %v2398
      %2456 = vst.msk [vmem:[%s326 + $0x8] sm:$0xff] %vm2454, %v2399
      %2457 = vst.msk [vmem:[%s326 + $0x10] sm:$0xff] %vm2454, %v2400
      %2458 = vst.msk [vmem:[%s326 + $0x18] sm:$0xff] %vm2454, %v2401
      %2459 = vst.msk [vmem:[%s326 + $0x20] sm:$0xff] %vm2454, %v2402
      %2460 = vst.msk [vmem:[%s326 + $0x28] sm:$0xff] %vm2454, %v2403
      %2461 = vst.msk [vmem:[%s326 + $0x30] sm:$0xff] %vm2454, %v2404
      %2462 = vst.msk [vmem:[%s326 + $0x38] sm:$0xff] %vm2454, %v2405
      %vm2463 = vcmask 15368
      %2464 = vst.msk [vmem:[%s326] sm:$0xff] %vm2463, %v2446
      %2465 = vst.msk [vmem:[%s326 + $0x8] sm:$0xff] %vm2463, %v2447
      %2466 = vst.msk [vmem:[%s326 + $0x10] sm:$0xff] %vm2463, %v2448
      %2467 = vst.msk [vmem:[%s326 + $0x18] sm:$0xff] %vm2463, %v2449
      %2468 = vst.msk [vmem:[%s326 + $0x20] sm:$0xff] %vm2463, %v2450
      %2469 = vst.msk [vmem:[%s326 + $0x28] sm:$0xff] %vm2463, %v2451
      %2470 = vst.msk [vmem:[%s326 + $0x30] sm:$0xff] %vm2463, %v2452
      %2471 = vst.msk [vmem:[%s326 + $0x38] sm:$0xff] %vm2463, %v2453
      %s2472 = smul.u32 4, %s20
      %p2473 = scmp.lt.s32.totalorder %s2472, 7
      %s2474 = scalar_select %p2473, %s2472, 7
      %s2475 = smul.addr %s2474, 16
      %s2476 = smul.addr %s2475, 8
      %s2477 = scalar_lea.vmem %s7, %s2476
      %p2478 = scmp.lt.s32.totalorder %s20, 1
      %s2479 = scalar_select %p2478, %s20, 1
      %s2480 = smul.addr %s2479, 8
      %s2481 = smul.addr %s2480, 8
      %s2482 = scalar_lea.vmem %s8, %s2481
      // Predicated region
      $region49: #{mlp_mixer_layer.4} parent=47 // pred_check
        %p2483 = pneg %p190
      $region50: #{mlp_mixer_layer.4} parent=47 // pred_check_branch
        %2485 = sbr.rel (%p2483) target = $region52
      $region51: #{mlp_mixer_layer.4} parent=47 // pred_region
        %s2486 = smul.u32 4, %s20
      $region52: #{mlp_mixer_layer.4} parent=47 // pred_fallthru
        _
      // Predicated region
      $region53: #{mlp_mixer_layer.4} parent=47 // pred_check
        %p2487 = pneg %p216
      $region54: #{mlp_mixer_layer.4} parent=47 // pred_check_branch
        %2489 = sbr.rel (%p2487) target = $region56
      $region55: #{mlp_mixer_layer.4} parent=47 // pred_region
        _
      $region56: #{mlp_mixer_layer.4} parent=47 // pred_fallthru
        _
    $region48: #{mlp_mixer_layer.4} parent=5 // pred_fallthru
      _
    %p2490 = scmp.le.s32.totalorder 2, %s15
    // Predicated region
    $region57: #{mlp_mixer_layer.4} parent=5 // pred_check
      %p2491 = pneg %p2490
    $region58: #{mlp_mixer_layer.4} parent=5 // pred_check_branch
      %2493 = sbr.rel (%p2491) target = $region60
    $region59: #{mlp_mixer_layer.4} parent=5 // pred_region
      %s2494 = ssub.s32 %s15, 2
      // Predicated region
      $region61: #{mlp_mixer_layer.4} parent=59 // pred_check
        %p2495 = pneg %p196
      $region62: #{mlp_mixer_layer.4} parent=59 // pred_check_branch
        %2497 = sbr.rel (%p2495) target = $region64
      $region63: #{mlp_mixer_layer.4} parent=59 // pred_region
        %s2498 = smul.u32 4, %s21
        %p2499 = scmp.lt.s32.totalorder %s2498, 7
        %s2500 = scalar_select %p2499, %s2498, 7
        %s2501 = smul.addr %s2500, 16
        %s2502 = smul.addr %s2501, 8
        %s2503 = scalar_lea.vmem %s7, %s2502
      $region64: #{mlp_mixer_layer.4} parent=59 // pred_fallthru
        _
      // Predicated region
      $region65: #{mlp_mixer_layer.4} parent=59 // pred_check
        %p2504 = pneg %p222
      $region66: #{mlp_mixer_layer.4} parent=59 // pred_check_branch
        %2506 = sbr.rel (%p2504) target = $region68
      $region67: #{mlp_mixer_layer.4} parent=59 // pred_region
        %p2507 = scmp.lt.s32.totalorder %s21, 1
        %s2508 = scalar_select %p2507, %s21, 1
        %s2509 = smul.addr %s2508, 8
        %s2510 = smul.addr %s2509, 8
        %s2511 = scalar_lea.vmem %s8, %s2510
      $region68: #{mlp_mixer_layer.4} parent=59 // pred_fallthru
        _
    $region60: #{mlp_mixer_layer.4} parent=5 // pred_fallthru
      _
  $region6: #{mlp_mixer_layer.4} parent=0 // loop_footer
    %s19 = sadd.s32 1, %s15
  $region7: #{mlp_mixer_layer.4} parent=0 // loop_footer_branch
    %14 = sbr.rel target = $region3
  $region8: #{mlp_mixer_layer.4} parent=0 // loop_exit
    _

</llo_original>
